<compile_context>
chip_gen: v6e
topology: v6e:2x2x1
jax: 0.10.0
libtpu: 0.0.40
codegen_flags: <defaults>
</compile_context>

<pallas_src>
import math

import jax
import jax.numpy as jnp
from jax.experimental import pallas as pl
from jax.experimental.pallas import tpu as pltpu

# ----------------------------- configuration -----------------------------
INPUT_DIM = 16
D_MODEL = 32
NHEAD = 4
NUM_LAYERS = 2
DIM_FF = 64
SEQ = 8
BATCH = 2
HEAD_DIM = D_MODEL // NHEAD
LN_EPS = 1e-5
ATTN_SCALE = 1.0 / math.sqrt(HEAD_DIM)

N_ROWS = 2 * BATCH * SEQ          # 32 flattened token rows (seq1 rows, then seq2 rows)
LANES = 128                       # lane width of the packed parameter buffer

# ------------- packed parameter buffer layout (all offsets % 8 == 0) -------------
EMB_OFF = 0                                   # (INPUT_DIM, D_MODEL)   embedding weight
PE_OFF = EMB_OFF + INPUT_DIM                  # (N_ROWS, D_MODEL)      pe + emb_bias, pre-tiled
MASK_OFF = PE_OFF + N_ROWS                    # (N_ROWS, N_ROWS)       block-diag attention mask
LAYERS_OFF = MASK_OFF + N_ROWS
#   per encoder layer (row offsets relative to the layer base):
QKV_OFF = 0                                   # (D_MODEL, 3*D_MODEL)   fused W_qkv
OUT_OFF = QKV_OFF + D_MODEL                   # (D_MODEL, D_MODEL)     W_out
L1W_OFF = OUT_OFF + D_MODEL                   # (D_MODEL, DIM_FF)      linear1
L2W_OFF = L1W_OFF + D_MODEL                   # (DIM_FF, D_MODEL)      linear2
VEC_OFF = L2W_OFF + DIM_FF                    # 8 rows: b_qkv, b_out, l1b, l2b, n1w, n1b, n2w, n2b
LAYER_ROWS = VEC_OFF + 8                      # 168
HEAD_OFF = LAYERS_OFF + NUM_LAYERS * LAYER_ROWS
FC1W_OFF = 0                                  # (D_MODEL, 32)
HVEC_OFF = FC1W_OFF + D_MODEL                 # 8 rows: fc1b, fc2w (row vector), fc2b
HEAD_ROWS = HVEC_OFF + 8
TOTAL_ROWS = HEAD_OFF + HEAD_ROWS             # 456


# --------------------------------- kernel ---------------------------------
def _layernorm(x, w, b):
    mu = jnp.mean(x, axis=-1, keepdims=True)
    var = jnp.mean((x - mu) ** 2, axis=-1, keepdims=True)
    return (x - mu) * jax.lax.rsqrt(var + LN_EPS) * w + b


def siamese_kernel(x1_ref, x2_ref, p_ref, out_ref):
    B, S, F = x1_ref.shape
    TB = 2 * B
    N = TB * S                                           # 32 token rows total

    # ---- fold seq1/seq2 into one (N, F) activation (in-VMEM, no HBM concat) ----
    x = jnp.concatenate([x1_ref[...].reshape(B * S, F),
                         x2_ref[...].reshape(B * S, F)], axis=0)

    emb_w = p_ref[EMB_OFF:EMB_OFF + F, 0:D_MODEL]        # (F, D)
    pe = p_ref[PE_OFF:PE_OFF + N, 0:D_MODEL]             # (N, D)  pe + emb bias, pre-tiled
    amask = p_ref[MASK_OFF:MASK_OFF + N, 0:N]            # (N, N)  0 / -1e9 block-diag mask

    # ---- embedding (bias folded into pe) ----
    h = jnp.dot(x, emb_w, preferred_element_type=jnp.float32) + pe     # (N, D)

    for l in range(NUM_LAYERS):                                        # static unroll
        base = LAYERS_OFF + l * LAYER_ROWS
        wqkv = p_ref[base + QKV_OFF:base + QKV_OFF + D_MODEL, 0:3 * D_MODEL]
        wout = p_ref[base + OUT_OFF:base + OUT_OFF + D_MODEL, 0:D_MODEL]
        l1w = p_ref[base + L1W_OFF:base + L1W_OFF + D_MODEL, 0:DIM_FF]
        l2w = p_ref[base + L2W_OFF:base + L2W_OFF + DIM_FF, 0:D_MODEL]
        vec = p_ref[base + VEC_OFF:base + VEC_OFF + 8, 0:3 * D_MODEL]  # one aligned load
        b_qkv = vec[0:1, 0:3 * D_MODEL]
        b_out = vec[1:2, 0:D_MODEL]
        l1b = vec[2:3, 0:DIM_FF]
        l2b = vec[3:4, 0:D_MODEL]
        n1w = vec[4:5, 0:D_MODEL]
        n1b = vec[5:6, 0:D_MODEL]
        n2w = vec[6:7, 0:D_MODEL]
        n2b = vec[7:8, 0:D_MODEL]

        # ---- fused QKV projection: one (N,32)@(32,96) matmul ----
        qkv = jnp.dot(h, wqkv, preferred_element_type=jnp.float32) + b_qkv   # (N, 96)

        # ---- block-diagonal multi-head attention ----
        heads = []
        for hd in range(NHEAD):                                        # static unroll
            lo = hd * HEAD_DIM
            qh = qkv[:, lo:lo + HEAD_DIM]                              # (N, 8)
            kh = qkv[:, D_MODEL + lo:D_MODEL + lo + HEAD_DIM]          # (N, 8)
            vh = qkv[:, 2 * D_MODEL + lo:2 * D_MODEL + lo + HEAD_DIM]  # (N, 8)
            s = jax.lax.dot_general(qh, kh, (((1,), (1,)), ((), ())),
                                    preferred_element_type=jnp.float32)      # (N, N)
            s = s * ATTN_SCALE + amask
            s = s - jnp.max(s, axis=-1, keepdims=True)
            p = jnp.exp(s)
            p = p / jnp.sum(p, axis=-1, keepdims=True)                 # exact reciprocal
            heads.append(jnp.dot(p, vh, preferred_element_type=jnp.float32))  # (N, 8)

        # ---- fused out-projection: heads are lane-adjacent -> one matmul ----
        o = jnp.concatenate(heads, axis=-1)                            # (N, D)
        attn = jnp.dot(o, wout, preferred_element_type=jnp.float32) + b_out
        h = _layernorm(h + attn, n1w, n1b)

        # ---- feed-forward ----
        ff = jnp.dot(h, l1w, preferred_element_type=jnp.float32) + l1b
        ff = jnp.maximum(ff, 0.0)
        ff = jnp.dot(ff, l2w, preferred_element_type=jnp.float32) + l2b
        h = _layernorm(h + ff, n2w, n2b)

    # ---- mean pool over sequence + fused siamese head ----
    pooled = jnp.mean(h.reshape(TB, S, D_MODEL), axis=1)               # (TB, D)
    diff = jnp.abs(pooled[0:B] - pooled[B:TB])                         # (B, D)

    hb = HEAD_OFF
    fc1w = p_ref[hb + FC1W_OFF:hb + FC1W_OFF + D_MODEL, 0:32]
    hvec = p_ref[hb + HVEC_OFF:hb + HVEC_OFF + 8, 0:32]
    fc1b = hvec[0:1, 0:32]
    fc2w = hvec[1:2, 0:32]                                             # fc2 weight as a row vector
    fc2b = hvec[2:3, 0:1]

    z = jnp.maximum(jnp.dot(diff, fc1w, preferred_element_type=jnp.float32) + fc1b, 0.0)
    # TODO(synk): dropout is identity (eval-mode semantics); no kernel-side RNG mask.
    logit = jnp.sum(z * fc2w, axis=-1, keepdims=True) + fc2b           # (B, 1)
    out_ref[...] = jax.nn.sigmoid(logit)


# -------------------------------- wrapper ----------------------------------
@jax.jit
def forward(seq1, seq2, packed_params):
    B = seq1.shape[0]
    vmem = pl.BlockSpec(memory_space=pltpu.MemorySpace.VMEM)
    return pl.pallas_call(
        siamese_kernel,
        out_shape=jax.ShapeDtypeStruct((B, 1), jnp.float32),
        in_specs=[vmem, vmem, vmem],
        out_specs=vmem,
    )(seq1, seq2, packed_params)


# ----------------------------- parameter setup -----------------------------
def positional_encoding(seq_len, d_model):
    position = jnp.arange(seq_len, dtype=jnp.float32)[:, None]
    div_term = jnp.exp(jnp.arange(0, d_model, 2, dtype=jnp.float32)
                       * (-math.log(10000.0) / d_model))
    pe = jnp.zeros((seq_len, d_model), jnp.float32)
    pe = pe.at[:, 0::2].set(jnp.sin(position * div_term))
    pe = pe.at[:, 1::2].set(jnp.cos(position * div_term))
    return pe


def make_params(key):
    def uinit(k, shape, fan_in):
        bound = 1.0 / math.sqrt(fan_in)
        return jax.random.uniform(k, shape, jnp.float32, -bound, bound)

    keys = iter(jax.random.split(key, 32))
    p = {}
    # weights stored in "x @ W + b" orientation; QKV pre-packed as (D, 3D)
    p["emb_w"] = uinit(next(keys), (INPUT_DIM, D_MODEL), INPUT_DIM)
    p["emb_b"] = uinit(next(keys), (1, D_MODEL), INPUT_DIM)
    p["layers"] = []
    for _ in range(NUM_LAYERS):
        lp = {
            "wqkv": uinit(next(keys), (D_MODEL, 3 * D_MODEL), D_MODEL),
            "bqkv": uinit(next(keys), (1, 3 * D_MODEL), D_MODEL),
            "wout": uinit(next(keys), (D_MODEL, D_MODEL), D_MODEL),
            "bout": uinit(next(keys), (1, D_MODEL), D_MODEL),
            "l1w": uinit(next(keys), (D_MODEL, DIM_FF), D_MODEL),
            "l1b": uinit(next(keys), (1, DIM_FF), D_MODEL),
            "l2w": uinit(next(keys), (DIM_FF, D_MODEL), DIM_FF),
            "l2b": uinit(next(keys), (1, D_MODEL), DIM_FF),
            "n1w": jnp.ones((1, D_MODEL), jnp.float32),
            "n1b": jnp.zeros((1, D_MODEL), jnp.float32),
            "n2w": jnp.ones((1, D_MODEL), jnp.float32),
            "n2b": jnp.zeros((1, D_MODEL), jnp.float32),
        }
        p["layers"].append(lp)
    p["fc1w"] = uinit(next(keys), (D_MODEL, 32), D_MODEL)
    p["fc1b"] = uinit(next(keys), (1, 32), D_MODEL)
    p["fc2w"] = uinit(next(keys), (1, 32), 32)      # fc2 weight as row vector
    p["fc2b"] = uinit(next(keys), (1, 1), 32)
    return p


def pack_params(p, pe):
    """Pack everything into one lane-dense (TOTAL_ROWS, 128) f32 buffer."""
    buf = jnp.zeros((TOTAL_ROWS, LANES), jnp.float32)

    def put(b, r, a):
        return b.at[r:r + a.shape[0], 0:a.shape[1]].set(a)

    buf = put(buf, EMB_OFF, p["emb_w"])
    # pe + embedding bias, pre-tiled to the flat (N_ROWS, D) activation layout
    pe_bias = jnp.tile(pe[:SEQ] + p["emb_b"], (2 * BATCH, 1))
    buf = put(buf, PE_OFF, pe_bias)
    # block-diagonal additive attention mask (0 within a sample, -1e9 across)
    sample = jnp.arange(N_ROWS) // SEQ
    amask = jnp.where(sample[:, None] == sample[None, :], 0.0, -1e9).astype(jnp.float32)
    buf = put(buf, MASK_OFF, amask)

    for l, lp in enumerate(p["layers"]):
        base = LAYERS_OFF + l * LAYER_ROWS
        buf = put(buf, base + QKV_OFF, lp["wqkv"])
        buf = put(buf, base + OUT_OFF, lp["wout"])
        buf = put(buf, base + L1W_OFF, lp["l1w"])
        buf = put(buf, base + L2W_OFF, lp["l2w"])
        v = base + VEC_OFF
        buf = put(buf, v + 0, lp["bqkv"])
        buf = put(buf, v + 1, lp["bout"])
        buf = put(buf, v + 2, lp["l1b"])
        buf = put(buf, v + 3, lp["l2b"])
        buf = put(buf, v + 4, lp["n1w"])
        buf = put(buf, v + 5, lp["n1b"])
        buf = put(buf, v + 6, lp["n2w"])
        buf = put(buf, v + 7, lp["n2b"])

    buf = put(buf, HEAD_OFF + FC1W_OFF, p["fc1w"])
    hv = HEAD_OFF + HVEC_OFF
    buf = put(buf, hv + 0, p["fc1b"])
    buf = put(buf, hv + 1, p["fc2w"])
    buf = put(buf, hv + 2, p["fc2b"])
    return buf


# ------------------------- pure-JAX reference (check) -----------------------
def _ref_ln(x, w, b):
    mu = jnp.mean(x, axis=-1, keepdims=True)
    var = jnp.mean((x - mu) ** 2, axis=-1, keepdims=True)
    return (x - mu) / jnp.sqrt(var + LN_EPS) * w + b


def reference_forward(seq1, seq2, p, pe):
    def encode(x):
        h = x @ p["emb_w"] + p["emb_b"] + pe[None, :x.shape[1], :]
        for lp in p["layers"]:
            B_, S_, _ = h.shape
            qkv = h @ lp["wqkv"] + lp["bqkv"]
            q, k, v = jnp.split(qkv, 3, axis=-1)
            split = lambda t: t.reshape(B_, S_, NHEAD, HEAD_DIM).transpose(0, 2, 1, 3)
            qh, kh, vh = split(q), split(k), split(v)
            s = jnp.einsum("bhqe,bhke->bhqk", qh, kh) * ATTN_SCALE
            pr = jax.nn.softmax(s, axis=-1)
            o = jnp.einsum("bhqk,bhke->bhqe", pr, vh)
            o = o.transpose(0, 2, 1, 3).reshape(B_, S_, D_MODEL)
            h = _ref_ln(h + o @ lp["wout"] + lp["bout"], lp["n1w"], lp["n1b"])
            ff = jax.nn.relu(h @ lp["l1w"] + lp["l1b"]) @ lp["l2w"] + lp["l2b"]
            h = _ref_ln(h + ff, lp["n2w"], lp["n2b"])
        return h.mean(axis=1)

    d = jnp.abs(encode(seq1) - encode(seq2))
    z = jax.nn.relu(d @ p["fc1w"] + p["fc1b"])
    logit = jnp.sum(z * p["fc2w"], axis=-1, keepdims=True) + p["fc2b"]
    return jax.nn.sigmoid(logit)


# ---------------------------------- main ------------------------------------
if __name__ == "__main__":
    key = jax.random.PRNGKey(0)
    k_params, k_s1, k_s2 = jax.random.split(key, 3)

    params = make_params(k_params)
    pe = positional_encoding(SEQ, D_MODEL)
    packed = pack_params(params, pe)

    seq1 = jax.random.normal(k_s1, (BATCH, SEQ, INPUT_DIM), jnp.float32)
    seq2 = jax.random.normal(k_s2, (BATCH, SEQ, INPUT_DIM), jnp.float32)

    out = forward(seq1, seq2, packed)
    out = jax.block_until_ready(out)
    assert out.shape == (BATCH, 1)
    assert bool(jnp.all(jnp.isfinite(out)))

    ref = reference_forward(seq1, seq2, params, pe)
    assert bool(jnp.allclose(out, ref, atol=1e-2)), (out, ref)
    print("KERNEL_OK")
</pallas_src>

<mosaic_0001>
module attributes {stable_mosaic.version = 11 : i64} {
  func.func @siamese_kernel(%arg0: memref<2x8x16xf32, #tpu.memory_space<vmem>>, %arg1: memref<2x8x16xf32, #tpu.memory_space<vmem>>, %arg2: memref<456x128xf32, #tpu.memory_space<vmem>>, %arg3: memref<2x1xf32, #tpu.memory_space<vmem>>) attributes {dimension_semantics = [], scalar_prefetch = 0 : i64, scratch_operands = 0 : i64, tpu.core_type = #tpu.core_type<tc>} {
    %c0 = arith.constant 0 : index
    %c0_0 = arith.constant 0 : index
    %c0_1 = arith.constant 0 : index
    %0 = vector.load %arg0[%c0, %c0_0, %c0_1] : memref<2x8x16xf32, #tpu.memory_space<vmem>>, vector<2x8x16xf32>
    %1 = vector.shape_cast %0 : vector<2x8x16xf32> to vector<16x16xf32>
    %c0_2 = arith.constant 0 : index
    %c0_3 = arith.constant 0 : index
    %c0_4 = arith.constant 0 : index
    %2 = vector.load %arg1[%c0_2, %c0_3, %c0_4] : memref<2x8x16xf32, #tpu.memory_space<vmem>>, vector<2x8x16xf32>
    %3 = vector.shape_cast %2 : vector<2x8x16xf32> to vector<16x16xf32>
    %4 = tpu.concatenate %1, %3 in 0 : vector<16x16xf32>, vector<16x16xf32> -> vector<32x16xf32>
    %c0_5 = arith.constant 0 : index
    %c0_6 = arith.constant 0 : index
    %5 = vector.load %arg2[%c0_5, %c0_6] : memref<456x128xf32, #tpu.memory_space<vmem>>, vector<16x32xf32>
    %c16 = arith.constant 16 : index
    %c0_7 = arith.constant 0 : index
    %6 = vector.load %arg2[%c16, %c0_7] : memref<456x128xf32, #tpu.memory_space<vmem>>, vector<32x32xf32>
    %c48 = arith.constant 48 : index
    %c0_8 = arith.constant 0 : index
    %7 = vector.load %arg2[%c48, %c0_8] : memref<456x128xf32, #tpu.memory_space<vmem>>, vector<32x32xf32>
    %cst = arith.constant dense<0.000000e+00> : vector<32x32xf32>
    %8 = tpu.matmul %4, %5, %cst {dimension_numbers = #tpu.dot_dimension_numbers<[1], [0], [0], [1], [0, 0, 1, 1], [], []>} : vector<32x16xf32>, vector<16x32xf32>, vector<32x32xf32> -> vector<32x32xf32>
    %9 = arith.addf %8, %6 : vector<32x32xf32>
    %c80 = arith.constant 80 : index
    %c0_9 = arith.constant 0 : index
    %10 = vector.load %arg2[%c80, %c0_9] : memref<456x128xf32, #tpu.memory_space<vmem>>, vector<32x96xf32>
    %c112 = arith.constant 112 : index
    %c0_10 = arith.constant 0 : index
    %11 = vector.load %arg2[%c112, %c0_10] : memref<456x128xf32, #tpu.memory_space<vmem>>, vector<32x32xf32>
    %c144 = arith.constant 144 : index
    %c0_11 = arith.constant 0 : index
    %12 = vector.load %arg2[%c144, %c0_11] : memref<456x128xf32, #tpu.memory_space<vmem>>, vector<32x64xf32>
    %c176 = arith.constant 176 : index
    %c0_12 = arith.constant 0 : index
    %13 = vector.load %arg2[%c176, %c0_12] : memref<456x128xf32, #tpu.memory_space<vmem>>, vector<64x32xf32>
    %c240 = arith.constant 240 : index
    %c0_13 = arith.constant 0 : index
    %14 = vector.load %arg2[%c240, %c0_13] : memref<456x128xf32, #tpu.memory_space<vmem>>, vector<8x96xf32>
    %15 = vector.extract_strided_slice %14 {offsets = [0, 0], sizes = [1, 96], strides = [1, 1]} : vector<8x96xf32> to vector<1x96xf32>
    %16 = vector.extract_strided_slice %14 {offsets = [1, 0], sizes = [1, 32], strides = [1, 1]} : vector<8x96xf32> to vector<1x32xf32>
    %17 = vector.extract_strided_slice %14 {offsets = [2, 0], sizes = [1, 64], strides = [1, 1]} : vector<8x96xf32> to vector<1x64xf32>
    %18 = vector.extract_strided_slice %14 {offsets = [3, 0], sizes = [1, 32], strides = [1, 1]} : vector<8x96xf32> to vector<1x32xf32>
    %19 = vector.extract_strided_slice %14 {offsets = [4, 0], sizes = [1, 32], strides = [1, 1]} : vector<8x96xf32> to vector<1x32xf32>
    %20 = vector.extract_strided_slice %14 {offsets = [5, 0], sizes = [1, 32], strides = [1, 1]} : vector<8x96xf32> to vector<1x32xf32>
    %21 = vector.extract_strided_slice %14 {offsets = [6, 0], sizes = [1, 32], strides = [1, 1]} : vector<8x96xf32> to vector<1x32xf32>
    %22 = vector.extract_strided_slice %14 {offsets = [7, 0], sizes = [1, 32], strides = [1, 1]} : vector<8x96xf32> to vector<1x32xf32>
    %cst_14 = arith.constant dense<0.000000e+00> : vector<32x96xf32>
    %23 = tpu.matmul %9, %10, %cst_14 {dimension_numbers = #tpu.dot_dimension_numbers<[1], [0], [0], [1], [0, 0, 1, 1], [], []>} : vector<32x32xf32>, vector<32x96xf32>, vector<32x96xf32> -> vector<32x96xf32>
    %24 = vector.broadcast %15 : vector<1x96xf32> to vector<32x96xf32>
    %25 = arith.addf %23, %24 : vector<32x96xf32>
    %26 = vector.extract_strided_slice %25 {offsets = [0, 0], sizes = [32, 8], strides = [1, 1]} : vector<32x96xf32> to vector<32x8xf32>
    %27 = vector.extract_strided_slice %25 {offsets = [0, 32], sizes = [32, 8], strides = [1, 1]} : vector<32x96xf32> to vector<32x8xf32>
    %28 = vector.extract_strided_slice %25 {offsets = [0, 64], sizes = [32, 8], strides = [1, 1]} : vector<32x96xf32> to vector<32x8xf32>
    %cst_15 = arith.constant dense<0.000000e+00> : vector<32x32xf32>
    %29 = tpu.matmul %26, %27, %cst_15 {dimension_numbers = #tpu.dot_dimension_numbers<[1], [1], [0], [0], [0, 0, 1, 0], [], []>} : vector<32x8xf32>, vector<32x8xf32>, vector<32x32xf32> -> vector<32x32xf32>
    %cst_16 = arith.constant 0.353553385 : f32
    %30 = vector.broadcast %cst_16 : f32 to vector<32x32xf32>
    %31 = arith.mulf %29, %30 : vector<32x32xf32>
    %32 = arith.addf %31, %7 : vector<32x32xf32>
    %cst_17 = arith.constant dense<0xFF800000> : vector<32xf32>
    %33 = vector.multi_reduction <maximumf>, %32, %cst_17 [1] : vector<32x32xf32> to vector<32xf32>
    %34 = vector.shape_cast %33 : vector<32xf32> to vector<32x1xf32>
    %35 = vector.broadcast %34 : vector<32x1xf32> to vector<32x32xf32>
    %36 = arith.subf %32, %35 : vector<32x32xf32>
    %37 = math.exp %36 : vector<32x32xf32>
    %cst_18 = arith.constant dense<0.000000e+00> : vector<32xf32>
    %38 = vector.multi_reduction <add>, %37, %cst_18 [1] : vector<32x32xf32> to vector<32xf32>
    %39 = vector.shape_cast %38 : vector<32xf32> to vector<32x1xf32>
    %40 = vector.broadcast %39 : vector<32x1xf32> to vector<32x32xf32>
    %41 = arith.divf %37, %40 : vector<32x32xf32>
    %cst_19 = arith.constant dense<0.000000e+00> : vector<32x8xf32>
    %42 = tpu.matmul %41, %28, %cst_19 {dimension_numbers = #tpu.dot_dimension_numbers<[1], [0], [0], [1], [0, 0, 1, 1], [], []>} : vector<32x32xf32>, vector<32x8xf32>, vector<32x8xf32> -> vector<32x8xf32>
    %43 = vector.extract_strided_slice %25 {offsets = [0, 8], sizes = [32, 8], strides = [1, 1]} : vector<32x96xf32> to vector<32x8xf32>
    %44 = vector.extract_strided_slice %25 {offsets = [0, 40], sizes = [32, 8], strides = [1, 1]} : vector<32x96xf32> to vector<32x8xf32>
    %45 = vector.extract_strided_slice %25 {offsets = [0, 72], sizes = [32, 8], strides = [1, 1]} : vector<32x96xf32> to vector<32x8xf32>
    %cst_20 = arith.constant dense<0.000000e+00> : vector<32x32xf32>
    %46 = tpu.matmul %43, %44, %cst_20 {dimension_numbers = #tpu.dot_dimension_numbers<[1], [1], [0], [0], [0, 0, 1, 0], [], []>} : vector<32x8xf32>, vector<32x8xf32>, vector<32x32xf32> -> vector<32x32xf32>
    %cst_21 = arith.constant 0.353553385 : f32
    %47 = vector.broadcast %cst_21 : f32 to vector<32x32xf32>
    %48 = arith.mulf %46, %47 : vector<32x32xf32>
    %49 = arith.addf %48, %7 : vector<32x32xf32>
    %cst_22 = arith.constant dense<0xFF800000> : vector<32xf32>
    %50 = vector.multi_reduction <maximumf>, %49, %cst_22 [1] : vector<32x32xf32> to vector<32xf32>
    %51 = vector.shape_cast %50 : vector<32xf32> to vector<32x1xf32>
    %52 = vector.broadcast %51 : vector<32x1xf32> to vector<32x32xf32>
    %53 = arith.subf %49, %52 : vector<32x32xf32>
    %54 = math.exp %53 : vector<32x32xf32>
    %cst_23 = arith.constant dense<0.000000e+00> : vector<32xf32>
    %55 = vector.multi_reduction <add>, %54, %cst_23 [1] : vector<32x32xf32> to vector<32xf32>
    %56 = vector.shape_cast %55 : vector<32xf32> to vector<32x1xf32>
    %57 = vector.broadcast %56 : vector<32x1xf32> to vector<32x32xf32>
    %58 = arith.divf %54, %57 : vector<32x32xf32>
    %cst_24 = arith.constant dense<0.000000e+00> : vector<32x8xf32>
    %59 = tpu.matmul %58, %45, %cst_24 {dimension_numbers = #tpu.dot_dimension_numbers<[1], [0], [0], [1], [0, 0, 1, 1], [], []>} : vector<32x32xf32>, vector<32x8xf32>, vector<32x8xf32> -> vector<32x8xf32>
    %60 = vector.extract_strided_slice %25 {offsets = [0, 16], sizes = [32, 8], strides = [1, 1]} : vector<32x96xf32> to vector<32x8xf32>
    %61 = vector.extract_strided_slice %25 {offsets = [0, 48], sizes = [32, 8], strides = [1, 1]} : vector<32x96xf32> to vector<32x8xf32>
    %62 = vector.extract_strided_slice %25 {offsets = [0, 80], sizes = [32, 8], strides = [1, 1]} : vector<32x96xf32> to vector<32x8xf32>
    %cst_25 = arith.constant dense<0.000000e+00> : vector<32x32xf32>
    %63 = tpu.matmul %60, %61, %cst_25 {dimension_numbers = #tpu.dot_dimension_numbers<[1], [1], [0], [0], [0, 0, 1, 0], [], []>} : vector<32x8xf32>, vector<32x8xf32>, vector<32x32xf32> -> vector<32x32xf32>
    %cst_26 = arith.constant 0.353553385 : f32
    %64 = vector.broadcast %cst_26 : f32 to vector<32x32xf32>
    %65 = arith.mulf %63, %64 : vector<32x32xf32>
    %66 = arith.addf %65, %7 : vector<32x32xf32>
    %cst_27 = arith.constant dense<0xFF800000> : vector<32xf32>
    %67 = vector.multi_reduction <maximumf>, %66, %cst_27 [1] : vector<32x32xf32> to vector<32xf32>
    %68 = vector.shape_cast %67 : vector<32xf32> to vector<32x1xf32>
    %69 = vector.broadcast %68 : vector<32x1xf32> to vector<32x32xf32>
    %70 = arith.subf %66, %69 : vector<32x32xf32>
    %71 = math.exp %70 : vector<32x32xf32>
    %cst_28 = arith.constant dense<0.000000e+00> : vector<32xf32>
    %72 = vector.multi_reduction <add>, %71, %cst_28 [1] : vector<32x32xf32> to vector<32xf32>
    %73 = vector.shape_cast %72 : vector<32xf32> to vector<32x1xf32>
    %74 = vector.broadcast %73 : vector<32x1xf32> to vector<32x32xf32>
    %75 = arith.divf %71, %74 : vector<32x32xf32>
    %cst_29 = arith.constant dense<0.000000e+00> : vector<32x8xf32>
    %76 = tpu.matmul %75, %62, %cst_29 {dimension_numbers = #tpu.dot_dimension_numbers<[1], [0], [0], [1], [0, 0, 1, 1], [], []>} : vector<32x32xf32>, vector<32x8xf32>, vector<32x8xf32> -> vector<32x8xf32>
    %77 = vector.extract_strided_slice %25 {offsets = [0, 24], sizes = [32, 8], strides = [1, 1]} : vector<32x96xf32> to vector<32x8xf32>
    %78 = vector.extract_strided_slice %25 {offsets = [0, 56], sizes = [32, 8], strides = [1, 1]} : vector<32x96xf32> to vector<32x8xf32>
    %79 = vector.extract_strided_slice %25 {offsets = [0, 88], sizes = [32, 8], strides = [1, 1]} : vector<32x96xf32> to vector<32x8xf32>
    %cst_30 = arith.constant dense<0.000000e+00> : vector<32x32xf32>
    %80 = tpu.matmul %77, %78, %cst_30 {dimension_numbers = #tpu.dot_dimension_numbers<[1], [1], [0], [0], [0, 0, 1, 0], [], []>} : vector<32x8xf32>, vector<32x8xf32>, vector<32x32xf32> -> vector<32x32xf32>
    %cst_31 = arith.constant 0.353553385 : f32
    %81 = vector.broadcast %cst_31 : f32 to vector<32x32xf32>
    %82 = arith.mulf %80, %81 : vector<32x32xf32>
    %83 = arith.addf %82, %7 : vector<32x32xf32>
    %cst_32 = arith.constant dense<0xFF800000> : vector<32xf32>
    %84 = vector.multi_reduction <maximumf>, %83, %cst_32 [1] : vector<32x32xf32> to vector<32xf32>
    %85 = vector.shape_cast %84 : vector<32xf32> to vector<32x1xf32>
    %86 = vector.broadcast %85 : vector<32x1xf32> to vector<32x32xf32>
    %87 = arith.subf %83, %86 : vector<32x32xf32>
    %88 = math.exp %87 : vector<32x32xf32>
    %cst_33 = arith.constant dense<0.000000e+00> : vector<32xf32>
    %89 = vector.multi_reduction <add>, %88, %cst_33 [1] : vector<32x32xf32> to vector<32xf32>
    %90 = vector.shape_cast %89 : vector<32xf32> to vector<32x1xf32>
    %91 = vector.broadcast %90 : vector<32x1xf32> to vector<32x32xf32>
    %92 = arith.divf %88, %91 : vector<32x32xf32>
    %cst_34 = arith.constant dense<0.000000e+00> : vector<32x8xf32>
    %93 = tpu.matmul %92, %79, %cst_34 {dimension_numbers = #tpu.dot_dimension_numbers<[1], [0], [0], [1], [0, 0, 1, 1], [], []>} : vector<32x32xf32>, vector<32x8xf32>, vector<32x8xf32> -> vector<32x8xf32>
    %94 = tpu.concatenate %42, %59, %76, %93 in 1 : vector<32x8xf32>, vector<32x8xf32>, vector<32x8xf32>, vector<32x8xf32> -> vector<32x32xf32>
    %cst_35 = arith.constant dense<0.000000e+00> : vector<32x32xf32>
    %95 = tpu.matmul %94, %11, %cst_35 {dimension_numbers = #tpu.dot_dimension_numbers<[1], [0], [0], [1], [0, 0, 1, 1], [], []>} : vector<32x32xf32>, vector<32x32xf32>, vector<32x32xf32> -> vector<32x32xf32>
    %96 = vector.broadcast %16 : vector<1x32xf32> to vector<32x32xf32>
    %97 = arith.addf %95, %96 : vector<32x32xf32>
    %98 = arith.addf %9, %97 : vector<32x32xf32>
    %cst_36 = arith.constant dense<0.000000e+00> : vector<32xf32>
    %99 = vector.multi_reduction <add>, %98, %cst_36 [1] : vector<32x32xf32> to vector<32xf32>
    %100 = vector.shape_cast %99 : vector<32xf32> to vector<32x1xf32>
    %cst_37 = arith.constant 3.200000e+01 : f32
    %101 = vector.broadcast %cst_37 : f32 to vector<32x1xf32>
    %102 = arith.divf %100, %101 : vector<32x1xf32>
    %103 = vector.broadcast %102 : vector<32x1xf32> to vector<32x32xf32>
    %104 = arith.subf %98, %103 : vector<32x32xf32>
    %105 = arith.mulf %104, %104 : vector<32x32xf32>
    %cst_38 = arith.constant dense<0.000000e+00> : vector<32xf32>
    %106 = vector.multi_reduction <add>, %105, %cst_38 [1] : vector<32x32xf32> to vector<32xf32>
    %107 = vector.shape_cast %106 : vector<32xf32> to vector<32x1xf32>
    %cst_39 = arith.constant 3.200000e+01 : f32
    %108 = vector.broadcast %cst_39 : f32 to vector<32x1xf32>
    %109 = arith.divf %107, %108 : vector<32x1xf32>
    %110 = vector.broadcast %102 : vector<32x1xf32> to vector<32x32xf32>
    %111 = arith.subf %98, %110 : vector<32x32xf32>
    %cst_40 = arith.constant 9.99999974E-6 : f32
    %112 = vector.broadcast %cst_40 : f32 to vector<32x1xf32>
    %113 = arith.addf %109, %112 : vector<32x1xf32>
    %114 = math.rsqrt %113 : vector<32x1xf32>
    %115 = vector.broadcast %114 : vector<32x1xf32> to vector<32x32xf32>
    %116 = arith.mulf %111, %115 : vector<32x32xf32>
    %117 = vector.broadcast %19 : vector<1x32xf32> to vector<32x32xf32>
    %118 = arith.mulf %116, %117 : vector<32x32xf32>
    %119 = vector.broadcast %20 : vector<1x32xf32> to vector<32x32xf32>
    %120 = arith.addf %118, %119 : vector<32x32xf32>
    %cst_41 = arith.constant dense<0.000000e+00> : vector<32x64xf32>
    %121 = tpu.matmul %120, %12, %cst_41 {dimension_numbers = #tpu.dot_dimension_numbers<[1], [0], [0], [1], [0, 0, 1, 1], [], []>} : vector<32x32xf32>, vector<32x64xf32>, vector<32x64xf32> -> vector<32x64xf32>
    %122 = vector.broadcast %17 : vector<1x64xf32> to vector<32x64xf32>
    %123 = arith.addf %121, %122 : vector<32x64xf32>
    %cst_42 = arith.constant 0.000000e+00 : f32
    %124 = vector.broadcast %cst_42 : f32 to vector<32x64xf32>
    %125 = arith.maximumf %123, %124 : vector<32x64xf32>
    %cst_43 = arith.constant dense<0.000000e+00> : vector<32x32xf32>
    %126 = tpu.matmul %125, %13, %cst_43 {dimension_numbers = #tpu.dot_dimension_numbers<[1], [0], [0], [1], [0, 0, 1, 1], [], []>} : vector<32x64xf32>, vector<64x32xf32>, vector<32x32xf32> -> vector<32x32xf32>
    %127 = vector.broadcast %18 : vector<1x32xf32> to vector<32x32xf32>
    %128 = arith.addf %126, %127 : vector<32x32xf32>
    %129 = arith.addf %120, %128 : vector<32x32xf32>
    %cst_44 = arith.constant dense<0.000000e+00> : vector<32xf32>
    %130 = vector.multi_reduction <add>, %129, %cst_44 [1] : vector<32x32xf32> to vector<32xf32>
    %131 = vector.shape_cast %130 : vector<32xf32> to vector<32x1xf32>
    %cst_45 = arith.constant 3.200000e+01 : f32
    %132 = vector.broadcast %cst_45 : f32 to vector<32x1xf32>
    %133 = arith.divf %131, %132 : vector<32x1xf32>
    %134 = vector.broadcast %133 : vector<32x1xf32> to vector<32x32xf32>
    %135 = arith.subf %129, %134 : vector<32x32xf32>
    %136 = arith.mulf %135, %135 : vector<32x32xf32>
    %cst_46 = arith.constant dense<0.000000e+00> : vector<32xf32>
    %137 = vector.multi_reduction <add>, %136, %cst_46 [1] : vector<32x32xf32> to vector<32xf32>
    %138 = vector.shape_cast %137 : vector<32xf32> to vector<32x1xf32>
    %cst_47 = arith.constant 3.200000e+01 : f32
    %139 = vector.broadcast %cst_47 : f32 to vector<32x1xf32>
    %140 = arith.divf %138, %139 : vector<32x1xf32>
    %141 = vector.broadcast %133 : vector<32x1xf32> to vector<32x32xf32>
    %142 = arith.subf %129, %141 : vector<32x32xf32>
    %cst_48 = arith.constant 9.99999974E-6 : f32
    %143 = vector.broadcast %cst_48 : f32 to vector<32x1xf32>
    %144 = arith.addf %140, %143 : vector<32x1xf32>
    %145 = math.rsqrt %144 : vector<32x1xf32>
    %146 = vector.broadcast %145 : vector<32x1xf32> to vector<32x32xf32>
    %147 = arith.mulf %142, %146 : vector<32x32xf32>
    %148 = vector.broadcast %21 : vector<1x32xf32> to vector<32x32xf32>
    %149 = arith.mulf %147, %148 : vector<32x32xf32>
    %150 = vector.broadcast %22 : vector<1x32xf32> to vector<32x32xf32>
    %151 = arith.addf %149, %150 : vector<32x32xf32>
    %c248 = arith.constant 248 : index
    %c0_49 = arith.constant 0 : index
    %152 = vector.load %arg2[%c248, %c0_49] : memref<456x128xf32, #tpu.memory_space<vmem>>, vector<32x96xf32>
    %c280 = arith.constant 280 : index
    %c0_50 = arith.constant 0 : index
    %153 = vector.load %arg2[%c280, %c0_50] : memref<456x128xf32, #tpu.memory_space<vmem>>, vector<32x32xf32>
    %c312 = arith.constant 312 : index
    %c0_51 = arith.constant 0 : index
    %154 = vector.load %arg2[%c312, %c0_51] : memref<456x128xf32, #tpu.memory_space<vmem>>, vector<32x64xf32>
    %c344 = arith.constant 344 : index
    %c0_52 = arith.constant 0 : index
    %155 = vector.load %arg2[%c344, %c0_52] : memref<456x128xf32, #tpu.memory_space<vmem>>, vector<64x32xf32>
    %c408 = arith.constant 408 : index
    %c0_53 = arith.constant 0 : index
    %156 = vector.load %arg2[%c408, %c0_53] : memref<456x128xf32, #tpu.memory_space<vmem>>, vector<8x96xf32>
    %157 = vector.extract_strided_slice %156 {offsets = [0, 0], sizes = [1, 96], strides = [1, 1]} : vector<8x96xf32> to vector<1x96xf32>
    %158 = vector.extract_strided_slice %156 {offsets = [1, 0], sizes = [1, 32], strides = [1, 1]} : vector<8x96xf32> to vector<1x32xf32>
    %159 = vector.extract_strided_slice %156 {offsets = [2, 0], sizes = [1, 64], strides = [1, 1]} : vector<8x96xf32> to vector<1x64xf32>
    %160 = vector.extract_strided_slice %156 {offsets = [3, 0], sizes = [1, 32], strides = [1, 1]} : vector<8x96xf32> to vector<1x32xf32>
    %161 = vector.extract_strided_slice %156 {offsets = [4, 0], sizes = [1, 32], strides = [1, 1]} : vector<8x96xf32> to vector<1x32xf32>
    %162 = vector.extract_strided_slice %156 {offsets = [5, 0], sizes = [1, 32], strides = [1, 1]} : vector<8x96xf32> to vector<1x32xf32>
    %163 = vector.extract_strided_slice %156 {offsets = [6, 0], sizes = [1, 32], strides = [1, 1]} : vector<8x96xf32> to vector<1x32xf32>
    %164 = vector.extract_strided_slice %156 {offsets = [7, 0], sizes = [1, 32], strides = [1, 1]} : vector<8x96xf32> to vector<1x32xf32>
    %cst_54 = arith.constant dense<0.000000e+00> : vector<32x96xf32>
    %165 = tpu.matmul %151, %152, %cst_54 {dimension_numbers = #tpu.dot_dimension_numbers<[1], [0], [0], [1], [0, 0, 1, 1], [], []>} : vector<32x32xf32>, vector<32x96xf32>, vector<32x96xf32> -> vector<32x96xf32>
    %166 = vector.broadcast %157 : vector<1x96xf32> to vector<32x96xf32>
    %167 = arith.addf %165, %166 : vector<32x96xf32>
    %168 = vector.extract_strided_slice %167 {offsets = [0, 0], sizes = [32, 8], strides = [1, 1]} : vector<32x96xf32> to vector<32x8xf32>
    %169 = vector.extract_strided_slice %167 {offsets = [0, 32], sizes = [32, 8], strides = [1, 1]} : vector<32x96xf32> to vector<32x8xf32>
    %170 = vector.extract_strided_slice %167 {offsets = [0, 64], sizes = [32, 8], strides = [1, 1]} : vector<32x96xf32> to vector<32x8xf32>
    %cst_55 = arith.constant dense<0.000000e+00> : vector<32x32xf32>
    %171 = tpu.matmul %168, %169, %cst_55 {dimension_numbers = #tpu.dot_dimension_numbers<[1], [1], [0], [0], [0, 0, 1, 0], [], []>} : vector<32x8xf32>, vector<32x8xf32>, vector<32x32xf32> -> vector<32x32xf32>
    %cst_56 = arith.constant 0.353553385 : f32
    %172 = vector.broadcast %cst_56 : f32 to vector<32x32xf32>
    %173 = arith.mulf %171, %172 : vector<32x32xf32>
    %174 = arith.addf %173, %7 : vector<32x32xf32>
    %cst_57 = arith.constant dense<0xFF800000> : vector<32xf32>
    %175 = vector.multi_reduction <maximumf>, %174, %cst_57 [1] : vector<32x32xf32> to vector<32xf32>
    %176 = vector.shape_cast %175 : vector<32xf32> to vector<32x1xf32>
    %177 = vector.broadcast %176 : vector<32x1xf32> to vector<32x32xf32>
    %178 = arith.subf %174, %177 : vector<32x32xf32>
    %179 = math.exp %178 : vector<32x32xf32>
    %cst_58 = arith.constant dense<0.000000e+00> : vector<32xf32>
    %180 = vector.multi_reduction <add>, %179, %cst_58 [1] : vector<32x32xf32> to vector<32xf32>
    %181 = vector.shape_cast %180 : vector<32xf32> to vector<32x1xf32>
    %182 = vector.broadcast %181 : vector<32x1xf32> to vector<32x32xf32>
    %183 = arith.divf %179, %182 : vector<32x32xf32>
    %cst_59 = arith.constant dense<0.000000e+00> : vector<32x8xf32>
    %184 = tpu.matmul %183, %170, %cst_59 {dimension_numbers = #tpu.dot_dimension_numbers<[1], [0], [0], [1], [0, 0, 1, 1], [], []>} : vector<32x32xf32>, vector<32x8xf32>, vector<32x8xf32> -> vector<32x8xf32>
    %185 = vector.extract_strided_slice %167 {offsets = [0, 8], sizes = [32, 8], strides = [1, 1]} : vector<32x96xf32> to vector<32x8xf32>
    %186 = vector.extract_strided_slice %167 {offsets = [0, 40], sizes = [32, 8], strides = [1, 1]} : vector<32x96xf32> to vector<32x8xf32>
    %187 = vector.extract_strided_slice %167 {offsets = [0, 72], sizes = [32, 8], strides = [1, 1]} : vector<32x96xf32> to vector<32x8xf32>
    %cst_60 = arith.constant dense<0.000000e+00> : vector<32x32xf32>
    %188 = tpu.matmul %185, %186, %cst_60 {dimension_numbers = #tpu.dot_dimension_numbers<[1], [1], [0], [0], [0, 0, 1, 0], [], []>} : vector<32x8xf32>, vector<32x8xf32>, vector<32x32xf32> -> vector<32x32xf32>
    %cst_61 = arith.constant 0.353553385 : f32
    %189 = vector.broadcast %cst_61 : f32 to vector<32x32xf32>
    %190 = arith.mulf %188, %189 : vector<32x32xf32>
    %191 = arith.addf %190, %7 : vector<32x32xf32>
    %cst_62 = arith.constant dense<0xFF800000> : vector<32xf32>
    %192 = vector.multi_reduction <maximumf>, %191, %cst_62 [1] : vector<32x32xf32> to vector<32xf32>
    %193 = vector.shape_cast %192 : vector<32xf32> to vector<32x1xf32>
    %194 = vector.broadcast %193 : vector<32x1xf32> to vector<32x32xf32>
    %195 = arith.subf %191, %194 : vector<32x32xf32>
    %196 = math.exp %195 : vector<32x32xf32>
    %cst_63 = arith.constant dense<0.000000e+00> : vector<32xf32>
    %197 = vector.multi_reduction <add>, %196, %cst_63 [1] : vector<32x32xf32> to vector<32xf32>
    %198 = vector.shape_cast %197 : vector<32xf32> to vector<32x1xf32>
    %199 = vector.broadcast %198 : vector<32x1xf32> to vector<32x32xf32>
    %200 = arith.divf %196, %199 : vector<32x32xf32>
    %cst_64 = arith.constant dense<0.000000e+00> : vector<32x8xf32>
    %201 = tpu.matmul %200, %187, %cst_64 {dimension_numbers = #tpu.dot_dimension_numbers<[1], [0], [0], [1], [0, 0, 1, 1], [], []>} : vector<32x32xf32>, vector<32x8xf32>, vector<32x8xf32> -> vector<32x8xf32>
    %202 = vector.extract_strided_slice %167 {offsets = [0, 16], sizes = [32, 8], strides = [1, 1]} : vector<32x96xf32> to vector<32x8xf32>
    %203 = vector.extract_strided_slice %167 {offsets = [0, 48], sizes = [32, 8], strides = [1, 1]} : vector<32x96xf32> to vector<32x8xf32>
    %204 = vector.extract_strided_slice %167 {offsets = [0, 80], sizes = [32, 8], strides = [1, 1]} : vector<32x96xf32> to vector<32x8xf32>
    %cst_65 = arith.constant dense<0.000000e+00> : vector<32x32xf32>
    %205 = tpu.matmul %202, %203, %cst_65 {dimension_numbers = #tpu.dot_dimension_numbers<[1], [1], [0], [0], [0, 0, 1, 0], [], []>} : vector<32x8xf32>, vector<32x8xf32>, vector<32x32xf32> -> vector<32x32xf32>
    %cst_66 = arith.constant 0.353553385 : f32
    %206 = vector.broadcast %cst_66 : f32 to vector<32x32xf32>
    %207 = arith.mulf %205, %206 : vector<32x32xf32>
    %208 = arith.addf %207, %7 : vector<32x32xf32>
    %cst_67 = arith.constant dense<0xFF800000> : vector<32xf32>
    %209 = vector.multi_reduction <maximumf>, %208, %cst_67 [1] : vector<32x32xf32> to vector<32xf32>
    %210 = vector.shape_cast %209 : vector<32xf32> to vector<32x1xf32>
    %211 = vector.broadcast %210 : vector<32x1xf32> to vector<32x32xf32>
    %212 = arith.subf %208, %211 : vector<32x32xf32>
    %213 = math.exp %212 : vector<32x32xf32>
    %cst_68 = arith.constant dense<0.000000e+00> : vector<32xf32>
    %214 = vector.multi_reduction <add>, %213, %cst_68 [1] : vector<32x32xf32> to vector<32xf32>
    %215 = vector.shape_cast %214 : vector<32xf32> to vector<32x1xf32>
    %216 = vector.broadcast %215 : vector<32x1xf32> to vector<32x32xf32>
    %217 = arith.divf %213, %216 : vector<32x32xf32>
    %cst_69 = arith.constant dense<0.000000e+00> : vector<32x8xf32>
    %218 = tpu.matmul %217, %204, %cst_69 {dimension_numbers = #tpu.dot_dimension_numbers<[1], [0], [0], [1], [0, 0, 1, 1], [], []>} : vector<32x32xf32>, vector<32x8xf32>, vector<32x8xf32> -> vector<32x8xf32>
    %219 = vector.extract_strided_slice %167 {offsets = [0, 24], sizes = [32, 8], strides = [1, 1]} : vector<32x96xf32> to vector<32x8xf32>
    %220 = vector.extract_strided_slice %167 {offsets = [0, 56], sizes = [32, 8], strides = [1, 1]} : vector<32x96xf32> to vector<32x8xf32>
    %221 = vector.extract_strided_slice %167 {offsets = [0, 88], sizes = [32, 8], strides = [1, 1]} : vector<32x96xf32> to vector<32x8xf32>
    %cst_70 = arith.constant dense<0.000000e+00> : vector<32x32xf32>
    %222 = tpu.matmul %219, %220, %cst_70 {dimension_numbers = #tpu.dot_dimension_numbers<[1], [1], [0], [0], [0, 0, 1, 0], [], []>} : vector<32x8xf32>, vector<32x8xf32>, vector<32x32xf32> -> vector<32x32xf32>
    %cst_71 = arith.constant 0.353553385 : f32
    %223 = vector.broadcast %cst_71 : f32 to vector<32x32xf32>
    %224 = arith.mulf %222, %223 : vector<32x32xf32>
    %225 = arith.addf %224, %7 : vector<32x32xf32>
    %cst_72 = arith.constant dense<0xFF800000> : vector<32xf32>
    %226 = vector.multi_reduction <maximumf>, %225, %cst_72 [1] : vector<32x32xf32> to vector<32xf32>
    %227 = vector.shape_cast %226 : vector<32xf32> to vector<32x1xf32>
    %228 = vector.broadcast %227 : vector<32x1xf32> to vector<32x32xf32>
    %229 = arith.subf %225, %228 : vector<32x32xf32>
    %230 = math.exp %229 : vector<32x32xf32>
    %cst_73 = arith.constant dense<0.000000e+00> : vector<32xf32>
    %231 = vector.multi_reduction <add>, %230, %cst_73 [1] : vector<32x32xf32> to vector<32xf32>
    %232 = vector.shape_cast %231 : vector<32xf32> to vector<32x1xf32>
    %233 = vector.broadcast %232 : vector<32x1xf32> to vector<32x32xf32>
    %234 = arith.divf %230, %233 : vector<32x32xf32>
    %cst_74 = arith.constant dense<0.000000e+00> : vector<32x8xf32>
    %235 = tpu.matmul %234, %221, %cst_74 {dimension_numbers = #tpu.dot_dimension_numbers<[1], [0], [0], [1], [0, 0, 1, 1], [], []>} : vector<32x32xf32>, vector<32x8xf32>, vector<32x8xf32> -> vector<32x8xf32>
    %236 = tpu.concatenate %184, %201, %218, %235 in 1 : vector<32x8xf32>, vector<32x8xf32>, vector<32x8xf32>, vector<32x8xf32> -> vector<32x32xf32>
    %cst_75 = arith.constant dense<0.000000e+00> : vector<32x32xf32>
    %237 = tpu.matmul %236, %153, %cst_75 {dimension_numbers = #tpu.dot_dimension_numbers<[1], [0], [0], [1], [0, 0, 1, 1], [], []>} : vector<32x32xf32>, vector<32x32xf32>, vector<32x32xf32> -> vector<32x32xf32>
    %238 = vector.broadcast %158 : vector<1x32xf32> to vector<32x32xf32>
    %239 = arith.addf %237, %238 : vector<32x32xf32>
    %240 = arith.addf %151, %239 : vector<32x32xf32>
    %cst_76 = arith.constant dense<0.000000e+00> : vector<32xf32>
    %241 = vector.multi_reduction <add>, %240, %cst_76 [1] : vector<32x32xf32> to vector<32xf32>
    %242 = vector.shape_cast %241 : vector<32xf32> to vector<32x1xf32>
    %cst_77 = arith.constant 3.200000e+01 : f32
    %243 = vector.broadcast %cst_77 : f32 to vector<32x1xf32>
    %244 = arith.divf %242, %243 : vector<32x1xf32>
    %245 = vector.broadcast %244 : vector<32x1xf32> to vector<32x32xf32>
    %246 = arith.subf %240, %245 : vector<32x32xf32>
    %247 = arith.mulf %246, %246 : vector<32x32xf32>
    %cst_78 = arith.constant dense<0.000000e+00> : vector<32xf32>
    %248 = vector.multi_reduction <add>, %247, %cst_78 [1] : vector<32x32xf32> to vector<32xf32>
    %249 = vector.shape_cast %248 : vector<32xf32> to vector<32x1xf32>
    %cst_79 = arith.constant 3.200000e+01 : f32
    %250 = vector.broadcast %cst_79 : f32 to vector<32x1xf32>
    %251 = arith.divf %249, %250 : vector<32x1xf32>
    %252 = vector.broadcast %244 : vector<32x1xf32> to vector<32x32xf32>
    %253 = arith.subf %240, %252 : vector<32x32xf32>
    %cst_80 = arith.constant 9.99999974E-6 : f32
    %254 = vector.broadcast %cst_80 : f32 to vector<32x1xf32>
    %255 = arith.addf %251, %254 : vector<32x1xf32>
    %256 = math.rsqrt %255 : vector<32x1xf32>
    %257 = vector.broadcast %256 : vector<32x1xf32> to vector<32x32xf32>
    %258 = arith.mulf %253, %257 : vector<32x32xf32>
    %259 = vector.broadcast %161 : vector<1x32xf32> to vector<32x32xf32>
    %260 = arith.mulf %258, %259 : vector<32x32xf32>
    %261 = vector.broadcast %162 : vector<1x32xf32> to vector<32x32xf32>
    %262 = arith.addf %260, %261 : vector<32x32xf32>
    %cst_81 = arith.constant dense<0.000000e+00> : vector<32x64xf32>
    %263 = tpu.matmul %262, %154, %cst_81 {dimension_numbers = #tpu.dot_dimension_numbers<[1], [0], [0], [1], [0, 0, 1, 1], [], []>} : vector<32x32xf32>, vector<32x64xf32>, vector<32x64xf32> -> vector<32x64xf32>
    %264 = vector.broadcast %159 : vector<1x64xf32> to vector<32x64xf32>
    %265 = arith.addf %263, %264 : vector<32x64xf32>
    %cst_82 = arith.constant 0.000000e+00 : f32
    %266 = vector.broadcast %cst_82 : f32 to vector<32x64xf32>
    %267 = arith.maximumf %265, %266 : vector<32x64xf32>
    %cst_83 = arith.constant dense<0.000000e+00> : vector<32x32xf32>
    %268 = tpu.matmul %267, %155, %cst_83 {dimension_numbers = #tpu.dot_dimension_numbers<[1], [0], [0], [1], [0, 0, 1, 1], [], []>} : vector<32x64xf32>, vector<64x32xf32>, vector<32x32xf32> -> vector<32x32xf32>
    %269 = vector.broadcast %160 : vector<1x32xf32> to vector<32x32xf32>
    %270 = arith.addf %268, %269 : vector<32x32xf32>
    %271 = arith.addf %262, %270 : vector<32x32xf32>
    %cst_84 = arith.constant dense<0.000000e+00> : vector<32xf32>
    %272 = vector.multi_reduction <add>, %271, %cst_84 [1] : vector<32x32xf32> to vector<32xf32>
    %273 = vector.shape_cast %272 : vector<32xf32> to vector<32x1xf32>
    %cst_85 = arith.constant 3.200000e+01 : f32
    %274 = vector.broadcast %cst_85 : f32 to vector<32x1xf32>
    %275 = arith.divf %273, %274 : vector<32x1xf32>
    %276 = vector.broadcast %275 : vector<32x1xf32> to vector<32x32xf32>
    %277 = arith.subf %271, %276 : vector<32x32xf32>
    %278 = arith.mulf %277, %277 : vector<32x32xf32>
    %cst_86 = arith.constant dense<0.000000e+00> : vector<32xf32>
    %279 = vector.multi_reduction <add>, %278, %cst_86 [1] : vector<32x32xf32> to vector<32xf32>
    %280 = vector.shape_cast %279 : vector<32xf32> to vector<32x1xf32>
    %cst_87 = arith.constant 3.200000e+01 : f32
    %281 = vector.broadcast %cst_87 : f32 to vector<32x1xf32>
    %282 = arith.divf %280, %281 : vector<32x1xf32>
    %283 = vector.broadcast %275 : vector<32x1xf32> to vector<32x32xf32>
    %284 = arith.subf %271, %283 : vector<32x32xf32>
    %cst_88 = arith.constant 9.99999974E-6 : f32
    %285 = vector.broadcast %cst_88 : f32 to vector<32x1xf32>
    %286 = arith.addf %282, %285 : vector<32x1xf32>
    %287 = math.rsqrt %286 : vector<32x1xf32>
    %288 = vector.broadcast %287 : vector<32x1xf32> to vector<32x32xf32>
    %289 = arith.mulf %284, %288 : vector<32x32xf32>
    %290 = vector.broadcast %163 : vector<1x32xf32> to vector<32x32xf32>
    %291 = arith.mulf %289, %290 : vector<32x32xf32>
    %292 = vector.broadcast %164 : vector<1x32xf32> to vector<32x32xf32>
    %293 = arith.addf %291, %292 : vector<32x32xf32>
    %294 = vector.shape_cast %293 : vector<32x32xf32> to vector<4x8x32xf32>
    %cst_89 = arith.constant dense<0.000000e+00> : vector<4x32xf32>
    %295 = vector.multi_reduction <add>, %294, %cst_89 [1] : vector<4x8x32xf32> to vector<4x32xf32>
    %cst_90 = arith.constant 8.000000e+00 : f32
    %296 = vector.broadcast %cst_90 : f32 to vector<4x32xf32>
    %297 = arith.divf %295, %296 : vector<4x32xf32>
    %298 = vector.extract_strided_slice %297 {offsets = [0, 0], sizes = [2, 32], strides = [1, 1]} : vector<4x32xf32> to vector<2x32xf32>
    %299 = vector.extract_strided_slice %297 {offsets = [2, 0], sizes = [2, 32], strides = [1, 1]} : vector<4x32xf32> to vector<2x32xf32>
    %300 = arith.subf %298, %299 : vector<2x32xf32>
    %301 = math.absf %300 : vector<2x32xf32>
    %c416 = arith.constant 416 : index
    %c0_91 = arith.constant 0 : index
    %302 = vector.load %arg2[%c416, %c0_91] : memref<456x128xf32, #tpu.memory_space<vmem>>, vector<32x32xf32>
    %c448 = arith.constant 448 : index
    %c0_92 = arith.constant 0 : index
    %303 = vector.load %arg2[%c448, %c0_92] : memref<456x128xf32, #tpu.memory_space<vmem>>, vector<8x32xf32>
    %304 = vector.extract_strided_slice %303 {offsets = [0, 0], sizes = [1, 32], strides = [1, 1]} : vector<8x32xf32> to vector<1x32xf32>
    %305 = vector.extract_strided_slice %303 {offsets = [1, 0], sizes = [1, 32], strides = [1, 1]} : vector<8x32xf32> to vector<1x32xf32>
    %306 = vector.extract_strided_slice %303 {offsets = [2, 0], sizes = [1, 1], strides = [1, 1]} : vector<8x32xf32> to vector<1x1xf32>
    %cst_93 = arith.constant dense<0.000000e+00> : vector<2x32xf32>
    %307 = tpu.matmul %301, %302, %cst_93 {dimension_numbers = #tpu.dot_dimension_numbers<[1], [0], [0], [1], [0, 0, 1, 1], [], []>} : vector<2x32xf32>, vector<32x32xf32>, vector<2x32xf32> -> vector<2x32xf32>
    %308 = vector.broadcast %304 : vector<1x32xf32> to vector<2x32xf32>
    %309 = arith.addf %307, %308 : vector<2x32xf32>
    %cst_94 = arith.constant 0.000000e+00 : f32
    %310 = vector.broadcast %cst_94 : f32 to vector<2x32xf32>
    %311 = arith.maximumf %309, %310 : vector<2x32xf32>
    %312 = vector.broadcast %305 : vector<1x32xf32> to vector<2x32xf32>
    %313 = arith.mulf %311, %312 : vector<2x32xf32>
    %cst_95 = arith.constant dense<0.000000e+00> : vector<2xf32>
    %314 = vector.multi_reduction <add>, %313, %cst_95 [1] : vector<2x32xf32> to vector<2xf32>
    %315 = vector.shape_cast %314 : vector<2xf32> to vector<2x1xf32>
    %316 = vector.broadcast %306 : vector<1x1xf32> to vector<2x1xf32>
    %317 = arith.addf %315, %316 : vector<2x1xf32>
    %318 = arith.negf %317 : vector<2x1xf32>
    %319 = math.exp %318 : vector<2x1xf32>
    %cst_96 = arith.constant 1.000000e+00 : f32
    %320 = vector.broadcast %cst_96 : f32 to vector<2x1xf32>
    %321 = arith.addf %320, %319 : vector<2x1xf32>
    %322 = arith.divf %320, %321 : vector<2x1xf32>
    %c0_97 = arith.constant 0 : index
    %c0_98 = arith.constant 0 : index
    %323 = vector.load %arg3[%c0_97, %c0_98] : memref<2x1xf32, #tpu.memory_space<vmem>>, vector<2x1xf32>
    tpu.vector_store %arg3[%c0_97, %c0_98], %322 {strides = array<i32>} : memref<2x1xf32, #tpu.memory_space<vmem>>, vector<2x1xf32>,
    return
  }
}

</mosaic_0001>

<llo_original>
// kernel: forward.1
$region0: #{forward.1}
  #allocation0 [shape = 'u32[]', space=smem, size = 0x4, offset = 0x4, fixed_abs, tag = 'smem constant byte address 0x4 - core index']
  #allocation1 [shape = 'u32[144,128]{1,0:T(1,128)}', space=vmem, size = 0x12000, scoped, tag = 'internal scratch']
  %s0 = inlined_call_operand.hbm [shape: f32[2,8,16], index: 0, kind: input, shape index: {}]
  %s1 = inlined_call_operand.hbm [shape: f32[2,8,16], index: 1, kind: input, shape index: {}]
  %s2 = inlined_call_operand.hbm [shape: f32[456,128], index: 2, kind: input, shape index: {}]
  %s3 = inlined_call_operand.vmem [shape: f32[2,1], index: 3, kind: output, shape index: {}]
  %s4 = sld [smem:[#allocation0]]
  $region34: #{forward.1} parent=0
    _
  %s6 = ssub.s32 1, %s4
  %s7 = scalar_select 0, %s6, %s4
  $region1: #{forward.1} parent=0
    #allocation2 [shape = 'u8[8192]{0}', space=vmem, size = 0x2000, scoped, tag = 'input window, operand 0, single buffered']
    #allocation3 [shape = 's32[1]{0}', space=sflag, size = 0x4, scoped, tag = 'scoped memory for forward.1']
    #allocation4 [shape = 'u8[8192]{0}', space=vmem, size = 0x2000, scoped, tag = 'input window, operand 1, single buffered']
    #allocation5 [shape = 's32[1]{0}', space=sflag, size = 0x4, scoped, tag = 'scoped memory for forward.1']
    #allocation6 [shape = 'u8[233472]{0}', space=vmem, size = 0x39000, scoped, tag = 'input window, operand 2, single buffered']
    %8 = vsyncpa [#allocation3], 0
    %9 = vsyncpa [#allocation5], 0
    // Predicated region
    $region2: #{forward.1} parent=1 // pred_check
      _
    $region3: #{forward.1} parent=1 // pred_check_branch
      %11 = sbr.rel (0) target = $region5
    $region4: #{forward.1} parent=1 // pred_region
      %s13 = ssub.s32 256, 256
      %14 = vsyncadd [#allocation3], %s13
      %s15 = sshll.u32 [#allocation2], 4
      %s16 = int_to_ptr.vmem [resolvable:$true] %s15
      %21 = dma.hbm_to_vmem [thread:$0]  %s0, 256, %s16, [#allocation3], 128, 128, 8
    $region5: #{forward.1} parent=1 // pred_fallthru
      _
    // Predicated region
    $region6: #{forward.1} parent=1 // pred_check
      _
    $region7: #{forward.1} parent=1 // pred_check_branch
      %23 = sbr.rel (0) target = $region9
    $region8: #{forward.1} parent=1 // pred_region
      %s25 = ssub.s32 256, 256
      %26 = vsyncadd [#allocation5], %s25
      %s27 = sshll.u32 [#allocation4], 4
      %s28 = int_to_ptr.vmem [resolvable:$true] %s27
      %33 = dma.hbm_to_vmem [thread:$0]  %s1, 256, %s28, [#allocation5], 128, 128, 8
    $region9: #{forward.1} parent=1 // pred_fallthru
      _
    // Predicated region
    $region10: #{forward.1} parent=1 // pred_check
      _
    $region11: #{forward.1} parent=1 // pred_check_branch
      %35 = sbr.rel (0) target = $region13
    $region12: #{forward.1} parent=1 // pred_region
      %s37 = ssub.s32 7296, 7296
      %38 = vsyncadd [#allocation5], %s37
      %s39 = sshll.u32 [#allocation6], 4
      %s40 = int_to_ptr.vmem [resolvable:$true] %s39
      %45 = dma.hbm_to_vmem [thread:$0]  %s2, 7296, %s40, [#allocation5], 128, 128, 8
    $region13: #{forward.1} parent=1 // pred_fallthru
      _
    // Predicated region
    $region14: #{forward.1} parent=1 // pred_check
      _
    $region15: #{forward.1} parent=1 // pred_check_branch
      %47 = sbr.rel (0) target = $region17
    $region16: #{forward.1} parent=1 // pred_region
      %48 = dma.done [#allocation3], 256
    $region17: #{forward.1} parent=1 // pred_fallthru
      _
    // Predicated region
    $region18: #{forward.1} parent=1 // pred_check
      _
    $region19: #{forward.1} parent=1 // pred_check_branch
      %50 = sbr.rel (0) target = $region21
    $region20: #{forward.1} parent=1 // pred_region
      %51 = dma.done [#allocation5], 256
    $region21: #{forward.1} parent=1 // pred_fallthru
      _
    // Predicated region
    $region22: #{forward.1} parent=1 // pred_check
      _
    $region23: #{forward.1} parent=1 // pred_check_branch
      %53 = sbr.rel (0) target = $region25
    $region24: #{forward.1} parent=1 // pred_region
      %54 = dma.done [#allocation5], 7296
    $region25: #{forward.1} parent=1 // pred_fallthru
      _
    %v55 = vld [vmem:[#allocation2] sm:$0xff]
    %v56 = vld [vmem:[#allocation2 + $0x8] sm:$0xff]
    %v57 = vld [vmem:[#allocation4] sm:$0xff]
    %v58 = vld [vmem:[#allocation4 + $0x8] sm:$0xff]
    %v59 = vld [vmem:[#allocation6] sm:$0xff]
    %v60 = vld [vmem:[#allocation6 + $0x8] sm:$0xff]
    %v61 = vld [vmem:[#allocation6 + $0x10] sm:$0xff]
    %v62 = vld [vmem:[#allocation6 + $0x18] sm:$0xff]
    %v63 = vld [vmem:[#allocation6 + $0x20] sm:$0xff]
    %v64 = vld [vmem:[#allocation6 + $0x28] sm:$0xff]
    %v65 = vld [vmem:[#allocation6 + $0x30] sm:$0xff]
    %v66 = vld [vmem:[#allocation6 + $0x38] sm:$0xff]
    %v67 = vld [vmem:[#allocation6 + $0x40] sm:$0xff]
    %v68 = vld [vmem:[#allocation6 + $0x48] sm:$0xff]
    %vm69 = vcmask 130048
    %v71 = vsel %vm69, %v55, 0
    %v74 = vsel %vm69, %v56, 0
    %v77 = vsel %vm69, %v57, 0
    %v80 = vsel %vm69, %v58, 0
    %82 = vmatprep.subr.mxu0 0.0
    %83 = vmatpush1.msra.mxu0 0.0
    %84 = vmatprep.subr.mxu0 0.0
    %85 = vmatpush1.msra.mxu0 0.0
    %86 = vmatprep.subr.mxu0 0.0
    %87 = vmatpush1.msra.mxu0 0.0
    %88 = vmatprep.subr.mxu0 0.0
    %89 = vmatpush1.msra.mxu0 0.0
    %90 = vmatprep.subr.mxu0 0.0
    %91 = vmatpush1.msra.mxu0 0.0
    %92 = vmatprep.subr.mxu0 0.0
    %93 = vmatpush1.msra.mxu0 0.0
    %94 = vmatprep.subr.mxu0 0.0
    %95 = vmatpush1.msra.mxu0 0.0
    %96 = vmatprep.subr.mxu0 0.0
    %97 = vmatpush1.msra.mxu0 0.0
    %98 = vmatprep.subr.mxu0 0.0
    %99 = vmatpush1.msra.mxu0 0.0
    %100 = vmatprep.subr.mxu0 0.0
    %101 = vmatpush1.msra.mxu0 0.0
    %102 = vmatprep.subr.mxu0 0.0
    %103 = vmatpush1.msra.mxu0 0.0
    %104 = vmatprep.subr.mxu0 0.0
    %105 = vmatpush1.msra.mxu0 0.0
    %106 = vmatprep.subr.mxu0 0.0
    %107 = vmatpush1.msra.mxu0 0.0
    %108 = vmatprep.subr.mxu0 0.0
    %109 = vmatpush1.msra.mxu0 0.0
    %110 = vmatprep.subr.mxu0 0.0
    %111 = vmatpush1.msra.mxu0 %v60
    %112 = vmatprep.subr.mxu0 0.0
    %113 = vmatpush1.msra.mxu0 %v59
    %114 = vmatprep.subr.mxu0 0.0
    %115 = vmatpush2.msra.mxu0 0.0
    %116 = vmatprep.subr.mxu0 0.0
    %117 = vmatpush2.msra.mxu0 0.0
    %118 = vmatprep.subr.mxu0 0.0
    %119 = vmatpush2.msra.mxu0 0.0
    %120 = vmatprep.subr.mxu0 0.0
    %121 = vmatpush2.msra.mxu0 0.0
    %122 = vmatprep.subr.mxu0 0.0
    %123 = vmatpush2.msra.mxu0 0.0
    %124 = vmatprep.subr.mxu0 0.0
    %125 = vmatpush2.msra.mxu0 0.0
    %126 = vmatprep.subr.mxu0 0.0
    %127 = vmatpush2.msra.mxu0 0.0
    %128 = vmatprep.subr.mxu0 0.0
    %129 = vmatpush2.msra.mxu0 0.0
    %130 = vmatprep.subr.mxu0 0.0
    %131 = vmatpush2.msra.mxu0 0.0
    %132 = vmatprep.subr.mxu0 0.0
    %133 = vmatpush2.msra.mxu0 0.0
    %134 = vmatprep.subr.mxu0 0.0
    %135 = vmatpush2.msra.mxu0 0.0
    %136 = vmatprep.subr.mxu0 0.0
    %137 = vmatpush2.msra.mxu0 0.0
    %138 = vmatprep.subr.mxu0 0.0
    %139 = vmatpush2.msra.mxu0 0.0
    %140 = vmatprep.subr.mxu0 0.0
    %141 = vmatpush2.msra.mxu0 0.0
    %142 = vmatprep.subr.mxu0 0.0
    %143 = vmatpush2.msra.mxu0 0.0
    %144 = vmatprep.subr.mxu0 0.0
    %145 = vmatpush2.msra.mxu0 0.0
    %146 = vmatprep.mubr.f32.mxu0 0.0
    %147 = vmatmul.mubr.f32.gmra.mxu0 %v71
    %v148 = vpop.f32.mrf.mxu0
    %v149 = vadd.f32 %v61, %v148
    %v150 = vpop.f32.mrf.mxu0
    %151 = vmatprep.mubr.f32.mxu0 0.0
    %152 = vmatmul.mubr.f32.gmra.mxu0 %v74
    %v153 = vpop.f32.mrf.mxu0
    %v154 = vadd.f32 %v62, %v153
    %v155 = vpop.f32.mrf.mxu0
    %156 = vmatprep.mubr.f32.mxu0 0.0
    %157 = vmatmul.mubr.f32.gmra.mxu0 %v77
    %v158 = vpop.f32.mrf.mxu0
    %v159 = vadd.f32 %v63, %v158
    %v160 = vpop.f32.mrf.mxu0
    %161 = vmatprep.mubr.f32.mxu0 0.0
    %162 = vmatmul.mubr.f32.gmra.mxu0 %v80
    %v163 = vpop.f32.mrf.mxu0
    %v164 = vadd.f32 %v64, %v163
    %v165 = vpop.f32.mrf.mxu0
    %166 = vdwg.mxu0
    %v167 = vld [vmem:[#allocation6 + $0x50] sm:$0xff]
    %v168 = vld [vmem:[#allocation6 + $0x58] sm:$0xff]
    %v169 = vld [vmem:[#allocation6 + $0x60] sm:$0xff]
    %v170 = vld [vmem:[#allocation6 + $0x68] sm:$0xff]
    %v171 = vld [vmem:[#allocation6 + $0x70] sm:$0xff]
    %v172 = vld [vmem:[#allocation6 + $0x78] sm:$0xff]
    %v173 = vld [vmem:[#allocation6 + $0x80] sm:$0xff]
    %v174 = vld [vmem:[#allocation6 + $0x88] sm:$0xff]
    %v175 = vld [vmem:[#allocation6 + $0x90] sm:$0xff]
    %v176 = vld [vmem:[#allocation6 + $0x98] sm:$0xff]
    %v177 = vld [vmem:[#allocation6 + $0xa0] sm:$0xff]
    %v178 = vld [vmem:[#allocation6 + $0xa8] sm:$0xff]
    %v179 = vld [vmem:[#allocation6 + $0xb0] sm:$0xff]
    %v180 = vld [vmem:[#allocation6 + $0xb8] sm:$0xff]
    %v181 = vld [vmem:[#allocation6 + $0xc0] sm:$0xff]
    %v182 = vld [vmem:[#allocation6 + $0xc8] sm:$0xff]
    %v183 = vld [vmem:[#allocation6 + $0xd0] sm:$0xff]
    %v184 = vld [vmem:[#allocation6 + $0xd8] sm:$0xff]
    %v185 = vld [vmem:[#allocation6 + $0xe0] sm:$0xff]
    %v186 = vld [vmem:[#allocation6 + $0xe8] sm:$0xff]
    %v187 = vld [vmem:[#allocation6 + $0xf0] sm:$0xff]
    %v188 = vlaneseq
    %v189 = vshrl.u32 %v188, 7
    %v190 = vsub.s32 0, %v189
    %v191 = vrot.slane %v187, %v190
    %vm192 = vcmask 261120
    %v194 = vsel %vm192, %v149, 0
    %v197 = vsel %vm192, %v154, 0
    %v200 = vsel %vm192, %v159, 0
    %v203 = vsel %vm192, %v164, 0
    %205 = vmatprep.subr.mxu0 0.0
    %206 = vmatpush1.msra.mxu0 0.0
    %207 = vmatprep.subr.mxu0 0.0
    %208 = vmatpush1.msra.mxu0 0.0
    %209 = vmatprep.subr.mxu0 0.0
    %210 = vmatpush1.msra.mxu0 0.0
    %211 = vmatprep.subr.mxu0 0.0
    %212 = vmatpush1.msra.mxu0 0.0
    %213 = vmatprep.subr.mxu0 0.0
    %214 = vmatpush1.msra.mxu0 0.0
    %215 = vmatprep.subr.mxu0 0.0
    %216 = vmatpush1.msra.mxu0 0.0
    %217 = vmatprep.subr.mxu0 0.0
    %218 = vmatpush1.msra.mxu0 0.0
    %219 = vmatprep.subr.mxu0 0.0
    %220 = vmatpush1.msra.mxu0 0.0
    %221 = vmatprep.subr.mxu0 0.0
    %222 = vmatpush1.msra.mxu0 0.0
    %223 = vmatprep.subr.mxu0 0.0
    %224 = vmatpush1.msra.mxu0 0.0
    %225 = vmatprep.subr.mxu0 0.0
    %226 = vmatpush1.msra.mxu0 0.0
    %227 = vmatprep.subr.mxu0 0.0
    %228 = vmatpush1.msra.mxu0 0.0
    %229 = vmatprep.subr.mxu0 0.0
    %230 = vmatpush1.msra.mxu0 %v170
    %231 = vmatprep.subr.mxu0 0.0
    %232 = vmatpush1.msra.mxu0 %v169
    %233 = vmatprep.subr.mxu0 0.0
    %234 = vmatpush1.msra.mxu0 %v168
    %235 = vmatprep.subr.mxu0 0.0
    %236 = vmatpush1.msra.mxu0 %v167
    %237 = vmatprep.subr.mxu0 0.0
    %238 = vmatpush2.msra.mxu0 0.0
    %239 = vmatprep.subr.mxu0 0.0
    %240 = vmatpush2.msra.mxu0 0.0
    %241 = vmatprep.subr.mxu0 0.0
    %242 = vmatpush2.msra.mxu0 0.0
    %243 = vmatprep.subr.mxu0 0.0
    %244 = vmatpush2.msra.mxu0 0.0
    %245 = vmatprep.subr.mxu0 0.0
    %246 = vmatpush2.msra.mxu0 0.0
    %247 = vmatprep.subr.mxu0 0.0
    %248 = vmatpush2.msra.mxu0 0.0
    %249 = vmatprep.subr.mxu0 0.0
    %250 = vmatpush2.msra.mxu0 0.0
    %251 = vmatprep.subr.mxu0 0.0
    %252 = vmatpush2.msra.mxu0 0.0
    %253 = vmatprep.subr.mxu0 0.0
    %254 = vmatpush2.msra.mxu0 0.0
    %255 = vmatprep.subr.mxu0 0.0
    %256 = vmatpush2.msra.mxu0 0.0
    %257 = vmatprep.subr.mxu0 0.0
    %258 = vmatpush2.msra.mxu0 0.0
    %259 = vmatprep.subr.mxu0 0.0
    %260 = vmatpush2.msra.mxu0 0.0
    %261 = vmatprep.subr.mxu0 0.0
    %262 = vmatpush2.msra.mxu0 0.0
    %263 = vmatprep.subr.mxu0 0.0
    %264 = vmatpush2.msra.mxu0 0.0
    %265 = vmatprep.subr.mxu0 0.0
    %266 = vmatpush2.msra.mxu0 0.0
    %267 = vmatprep.subr.mxu0 0.0
    %268 = vmatpush2.msra.mxu0 0.0
    %269 = vmatprep.mubr.f32.mxu0 0.0
    %270 = vmatmul.mubr.f32.gmra.mxu0 %v194
    %v271 = vpop.f32.mrf.mxu0
    %v272 = vadd.f32 %v191, %v271
    %v273 = vpop.f32.mrf.mxu0
    %274 = vmatprep.mubr.f32.mxu0 0.0
    %275 = vmatmul.mubr.f32.gmra.mxu0 %v197
    %v276 = vpop.f32.mrf.mxu0
    %v277 = vadd.f32 %v191, %v276
    %v278 = vpop.f32.mrf.mxu0
    %279 = vmatprep.mubr.f32.mxu0 0.0
    %280 = vmatmul.mubr.f32.gmra.mxu0 %v200
    %v281 = vpop.f32.mrf.mxu0
    %v282 = vadd.f32 %v191, %v281
    %v283 = vpop.f32.mrf.mxu0
    %284 = vmatprep.mubr.f32.mxu0 0.0
    %285 = vmatmul.mubr.f32.gmra.mxu0 %v203
    %v286 = vpop.f32.mrf.mxu0
    %v287 = vadd.f32 %v191, %v286
    %v288 = vpop.f32.mrf.mxu0
    %289 = vdwg.mxu0
    %294 = vrot.lane.b32.xlu0 %v272, 96
    %v295 = vpop.permute.xlu0 %294
    %296 = vrot.lane.b32.xlu0 %v277, 96
    %v297 = vpop.permute.xlu0 %296
    %298 = vrot.lane.b32.xlu0 %v282, 96
    %v299 = vpop.permute.xlu0 %298
    %300 = vrot.lane.b32.xlu0 %v287, 96
    %v301 = vpop.permute.xlu0 %300
    %vm302 = vcmask 64512
    %v303 = vsel %vm302, %v272, 0
    %v305 = vsel %vm302, %v277, 0
    %v307 = vsel %vm302, %v282, 0
    %v309 = vsel %vm302, %v287, 0
    %v311 = vsel %vm302, %v295, 0
    %v313 = vsel %vm302, %v297, 0
    %v315 = vsel %vm302, %v299, 0
    %v317 = vsel %vm302, %v301, 0
    %319 = vmatprep.subr.mxu0 0.0
    %320 = vmatpush1.xpose.msra.mxu0 0.0
    %321 = vmatprep.subr.mxu0 0.0
    %322 = vmatpush1.xpose.msra.mxu0 0.0
    %323 = vmatprep.subr.mxu0 0.0
    %324 = vmatpush1.xpose.msra.mxu0 0.0
    %325 = vmatprep.subr.mxu0 0.0
    %326 = vmatpush1.xpose.msra.mxu0 0.0
    %327 = vmatprep.subr.mxu0 0.0
    %328 = vmatpush1.xpose.msra.mxu0 0.0
    %329 = vmatprep.subr.mxu0 0.0
    %330 = vmatpush1.xpose.msra.mxu0 0.0
    %331 = vmatprep.subr.mxu0 0.0
    %332 = vmatpush1.xpose.msra.mxu0 0.0
    %333 = vmatprep.subr.mxu0 0.0
    %334 = vmatpush1.xpose.msra.mxu0 0.0
    %335 = vmatprep.subr.mxu0 0.0
    %336 = vmatpush1.xpose.msra.mxu0 0.0
    %337 = vmatprep.subr.mxu0 0.0
    %338 = vmatpush1.xpose.msra.mxu0 0.0
    %339 = vmatprep.subr.mxu0 0.0
    %340 = vmatpush1.xpose.msra.mxu0 0.0
    %341 = vmatprep.subr.mxu0 0.0
    %342 = vmatpush1.xpose.msra.mxu0 0.0
    %343 = vmatprep.subr.mxu0 0.0
    %344 = vmatpush1.xpose.msra.mxu0 %v317
    %345 = vmatprep.subr.mxu0 0.0
    %346 = vmatpush1.xpose.msra.mxu0 %v315
    %347 = vmatprep.subr.mxu0 0.0
    %348 = vmatpush1.xpose.msra.mxu0 %v313
    %349 = vmatprep.subr.mxu0 0.0
    %350 = vmatpush1.xpose.msra.mxu0 %v311
    %351 = vmatprep.subr.mxu0 0.0
    %352 = vmatpush2.xpose.msra.mxu0 0.0
    %353 = vmatprep.subr.mxu0 0.0
    %354 = vmatpush2.xpose.msra.mxu0 0.0
    %355 = vmatprep.subr.mxu0 0.0
    %356 = vmatpush2.xpose.msra.mxu0 0.0
    %357 = vmatprep.subr.mxu0 0.0
    %358 = vmatpush2.xpose.msra.mxu0 0.0
    %359 = vmatprep.subr.mxu0 0.0
    %360 = vmatpush2.xpose.msra.mxu0 0.0
    %361 = vmatprep.subr.mxu0 0.0
    %362 = vmatpush2.xpose.msra.mxu0 0.0
    %363 = vmatprep.subr.mxu0 0.0
    %364 = vmatpush2.xpose.msra.mxu0 0.0
    %365 = vmatprep.subr.mxu0 0.0
    %366 = vmatpush2.xpose.msra.mxu0 0.0
    %367 = vmatprep.subr.mxu0 0.0
    %368 = vmatpush2.xpose.msra.mxu0 0.0
    %369 = vmatprep.subr.mxu0 0.0
    %370 = vmatpush2.xpose.msra.mxu0 0.0
    %371 = vmatprep.subr.mxu0 0.0
    %372 = vmatpush2.xpose.msra.mxu0 0.0
    %373 = vmatprep.subr.mxu0 0.0
    %374 = vmatpush2.xpose.msra.mxu0 0.0
    %375 = vmatprep.subr.mxu0 0.0
    %376 = vmatpush2.xpose.msra.mxu0 0.0
    %377 = vmatprep.subr.mxu0 0.0
    %378 = vmatpush2.xpose.msra.mxu0 0.0
    %379 = vmatprep.subr.mxu0 0.0
    %380 = vmatpush2.xpose.msra.mxu0 0.0
    %381 = vmatprep.subr.mxu0 0.0
    %382 = vmatpush2.xpose.msra.mxu0 0.0
    %383 = vmatprep.mubr.f32.mxu0 0.0
    %384 = vmatmul.mubr.f32.gmra.mxu0 %v303
    %v385 = vpop.f32.mrf.mxu0
    %v386 = vadd.f32 0.0, %v385
    %v387 = vpop.f32.mrf.mxu0
    %388 = vmatprep.mubr.f32.mxu0 0.0
    %389 = vmatmul.mubr.f32.gmra.mxu0 %v305
    %v390 = vpop.f32.mrf.mxu0
    %v391 = vadd.f32 0.0, %v390
    %v392 = vpop.f32.mrf.mxu0
    %393 = vmatprep.mubr.f32.mxu0 0.0
    %394 = vmatmul.mubr.f32.gmra.mxu0 %v307
    %v395 = vpop.f32.mrf.mxu0
    %v396 = vadd.f32 0.0, %v395
    %v397 = vpop.f32.mrf.mxu0
    %398 = vmatprep.mubr.f32.mxu0 0.0
    %399 = vmatmul.mubr.f32.gmra.mxu0 %v309
    %v400 = vpop.f32.mrf.mxu0
    %v401 = vadd.f32 0.0, %v400
    %v402 = vpop.f32.mrf.mxu0
    %403 = vdwg.mxu0
    %v404 = vmul.f32 %v386, 0.35355338
    %v405 = vmul.f32 %v391, 0.35355338
    %v406 = vmul.f32 %v396, 0.35355338
    %v407 = vmul.f32 %v401, 0.35355338
    %v408 = vadd.f32 %v404, %v65
    %v409 = vadd.f32 %v405, %v66
    %v410 = vadd.f32 %v406, %v67
    %v411 = vadd.f32 %v407, %v68
    %v412 = vsel %vm192, %v408, -inf
    %413 = vmax.xlane.f32.xlu0 %v412
    %v414 = vpop.xlane.xlu0 %413
    %v415 = vsel %vm192, %v409, -inf
    %416 = vmax.xlane.f32.xlu0 %v415
    %v417 = vpop.xlane.xlu0 %416
    %v418 = vsel %vm192, %v410, -inf
    %419 = vmax.xlane.f32.xlu0 %v418
    %v420 = vpop.xlane.xlu0 %419
    %v421 = vsel %vm192, %v411, -inf
    %422 = vmax.xlane.f32.xlu0 %v421
    %v423 = vpop.xlane.xlu0 %422
    %v424 = vsub.f32 %v408, %v414
    %v425 = vsub.f32 %v409, %v417
    %v426 = vsub.f32 %v410, %v420
    %v427 = vsub.f32 %v411, %v423
    %v428 = vmul.f32 %v424, 1.442695
    %v429 = vpow.pop %v428
    %v430 = vmul.f32 %v425, 1.442695
    %v431 = vpow.pop %v430
    %v432 = vmul.f32 %v426, 1.442695
    %v433 = vpow.pop %v432
    %v434 = vmul.f32 %v427, 1.442695
    %v435 = vpow.pop %v434
    %v436 = vsel %vm192, %v429, 0.0
    %437 = vadd.xlane.f32.xlu0 %v436
    %v438 = vpop.xlane.xlu0 %437
    %v439 = vsel %vm192, %v431, 0.0
    %440 = vadd.xlane.f32.xlu0 %v439
    %v441 = vpop.xlane.xlu0 %440
    %v442 = vsel %vm192, %v433, 0.0
    %443 = vadd.xlane.f32.xlu0 %v442
    %v444 = vpop.xlane.xlu0 %443
    %v445 = vsel %vm192, %v435, 0.0
    %446 = vadd.xlane.f32.xlu0 %v445
    %v447 = vpop.xlane.xlu0 %446
    %v448 = vrcp.pop %v438
    %v449 = vmul.f32 %v429, %v448
    %v450 = vrcp.pop %v441
    %v451 = vmul.f32 %v431, %v450
    %v452 = vrcp.pop %v444
    %v453 = vmul.f32 %v433, %v452
    %v454 = vrcp.pop %v447
    %v455 = vmul.f32 %v435, %v454
    %456 = vrot.lane.b32.xlu0 %v272, 64
    %v457 = vpop.permute.xlu0 %456
    %458 = vrot.lane.b32.xlu0 %v277, 64
    %v459 = vpop.permute.xlu0 %458
    %460 = vrot.lane.b32.xlu0 %v282, 64
    %v461 = vpop.permute.xlu0 %460
    %462 = vrot.lane.b32.xlu0 %v287, 64
    %v463 = vpop.permute.xlu0 %462
    %v469 = vsel %vm192, %v449, 0
    %v472 = vsel %vm192, %v451, 0
    %v475 = vsel %vm192, %v453, 0
    %v478 = vsel %vm192, %v455, 0
    %480 = vmatprep.subr.mxu0 0.0
    %481 = vmatpush1.msra.mxu0 0.0
    %482 = vmatprep.subr.mxu0 0.0
    %483 = vmatpush1.msra.mxu0 0.0
    %484 = vmatprep.subr.mxu0 0.0
    %485 = vmatpush1.msra.mxu0 0.0
    %486 = vmatprep.subr.mxu0 0.0
    %487 = vmatpush1.msra.mxu0 0.0
    %488 = vmatprep.subr.mxu0 0.0
    %489 = vmatpush1.msra.mxu0 0.0
    %490 = vmatprep.subr.mxu0 0.0
    %491 = vmatpush1.msra.mxu0 0.0
    %492 = vmatprep.subr.mxu0 0.0
    %493 = vmatpush1.msra.mxu0 0.0
    %494 = vmatprep.subr.mxu0 0.0
    %495 = vmatpush1.msra.mxu0 0.0
    %496 = vmatprep.subr.mxu0 0.0
    %497 = vmatpush1.msra.mxu0 0.0
    %498 = vmatprep.subr.mxu0 0.0
    %499 = vmatpush1.msra.mxu0 0.0
    %500 = vmatprep.subr.mxu0 0.0
    %501 = vmatpush1.msra.mxu0 0.0
    %502 = vmatprep.subr.mxu0 0.0
    %503 = vmatpush1.msra.mxu0 0.0
    %504 = vmatprep.subr.mxu0 0.0
    %505 = vmatpush1.msra.mxu0 %v463
    %506 = vmatprep.subr.mxu0 0.0
    %507 = vmatpush1.msra.mxu0 %v461
    %508 = vmatprep.subr.mxu0 0.0
    %509 = vmatpush1.msra.mxu0 %v459
    %510 = vmatprep.subr.mxu0 0.0
    %511 = vmatpush1.msra.mxu0 %v457
    %512 = vmatprep.subr.mxu0 0.0
    %513 = vmatpush2.msra.mxu0 0.0
    %514 = vmatprep.subr.mxu0 0.0
    %515 = vmatpush2.msra.mxu0 0.0
    %516 = vmatprep.subr.mxu0 0.0
    %517 = vmatpush2.msra.mxu0 0.0
    %518 = vmatprep.subr.mxu0 0.0
    %519 = vmatpush2.msra.mxu0 0.0
    %520 = vmatprep.subr.mxu0 0.0
    %521 = vmatpush2.msra.mxu0 0.0
    %522 = vmatprep.subr.mxu0 0.0
    %523 = vmatpush2.msra.mxu0 0.0
    %524 = vmatprep.subr.mxu0 0.0
    %525 = vmatpush2.msra.mxu0 0.0
    %526 = vmatprep.subr.mxu0 0.0
    %527 = vmatpush2.msra.mxu0 0.0
    %528 = vmatprep.subr.mxu0 0.0
    %529 = vmatpush2.msra.mxu0 0.0
    %530 = vmatprep.subr.mxu0 0.0
    %531 = vmatpush2.msra.mxu0 0.0
    %532 = vmatprep.subr.mxu0 0.0
    %533 = vmatpush2.msra.mxu0 0.0
    %534 = vmatprep.subr.mxu0 0.0
    %535 = vmatpush2.msra.mxu0 0.0
    %536 = vmatprep.subr.mxu0 0.0
    %537 = vmatpush2.msra.mxu0 0.0
    %538 = vmatprep.subr.mxu0 0.0
    %539 = vmatpush2.msra.mxu0 0.0
    %540 = vmatprep.subr.mxu0 0.0
    %541 = vmatpush2.msra.mxu0 0.0
    %542 = vmatprep.subr.mxu0 0.0
    %543 = vmatpush2.msra.mxu0 0.0
    %544 = vmatprep.mubr.f32.mxu0 0.0
    %545 = vmatmul.mubr.f32.gmra.mxu0 %v469
    %v546 = vpop.f32.mrf.mxu0
    %v547 = vadd.f32 0.0, %v546
    %v548 = vpop.f32.mrf.mxu0
    %549 = vmatprep.mubr.f32.mxu0 0.0
    %550 = vmatmul.mubr.f32.gmra.mxu0 %v472
    %v551 = vpop.f32.mrf.mxu0
    %v552 = vadd.f32 0.0, %v551
    %v553 = vpop.f32.mrf.mxu0
    %554 = vmatprep.mubr.f32.mxu0 0.0
    %555 = vmatmul.mubr.f32.gmra.mxu0 %v475
    %v556 = vpop.f32.mrf.mxu0
    %v557 = vadd.f32 0.0, %v556
    %v558 = vpop.f32.mrf.mxu0
    %559 = vmatprep.mubr.f32.mxu0 0.0
    %560 = vmatmul.mubr.f32.gmra.mxu0 %v478
    %v561 = vpop.f32.mrf.mxu0
    %v562 = vadd.f32 0.0, %v561
    %v563 = vpop.f32.mrf.mxu0
    %564 = vdwg.mxu0
    %565 = vrot.lane.b32.xlu0 %v272, 120
    %v566 = vpop.permute.xlu0 %565
    %567 = vrot.lane.b32.xlu0 %v277, 120
    %v568 = vpop.permute.xlu0 %567
    %569 = vrot.lane.b32.xlu0 %v282, 120
    %v570 = vpop.permute.xlu0 %569
    %571 = vrot.lane.b32.xlu0 %v287, 120
    %v572 = vpop.permute.xlu0 %571
    %573 = vrot.lane.b32.xlu0 %v272, 88
    %v574 = vpop.permute.xlu0 %573
    %575 = vrot.lane.b32.xlu0 %v277, 88
    %v576 = vpop.permute.xlu0 %575
    %577 = vrot.lane.b32.xlu0 %v282, 88
    %v578 = vpop.permute.xlu0 %577
    %579 = vrot.lane.b32.xlu0 %v287, 88
    %v580 = vpop.permute.xlu0 %579
    %v581 = vsel %vm302, %v566, 0
    %v583 = vsel %vm302, %v568, 0
    %v585 = vsel %vm302, %v570, 0
    %v587 = vsel %vm302, %v572, 0
    %v589 = vsel %vm302, %v574, 0
    %v591 = vsel %vm302, %v576, 0
    %v593 = vsel %vm302, %v578, 0
    %v595 = vsel %vm302, %v580, 0
    %597 = vmatprep.subr.mxu0 0.0
    %598 = vmatpush1.xpose.msra.mxu0 0.0
    %599 = vmatprep.subr.mxu0 0.0
    %600 = vmatpush1.xpose.msra.mxu0 0.0
    %601 = vmatprep.subr.mxu0 0.0
    %602 = vmatpush1.xpose.msra.mxu0 0.0
    %603 = vmatprep.subr.mxu0 0.0
    %604 = vmatpush1.xpose.msra.mxu0 0.0
    %605 = vmatprep.subr.mxu0 0.0
    %606 = vmatpush1.xpose.msra.mxu0 0.0
    %607 = vmatprep.subr.mxu0 0.0
    %608 = vmatpush1.xpose.msra.mxu0 0.0
    %609 = vmatprep.subr.mxu0 0.0
    %610 = vmatpush1.xpose.msra.mxu0 0.0
    %611 = vmatprep.subr.mxu0 0.0
    %612 = vmatpush1.xpose.msra.mxu0 0.0
    %613 = vmatprep.subr.mxu0 0.0
    %614 = vmatpush1.xpose.msra.mxu0 0.0
    %615 = vmatprep.subr.mxu0 0.0
    %616 = vmatpush1.xpose.msra.mxu0 0.0
    %617 = vmatprep.subr.mxu0 0.0
    %618 = vmatpush1.xpose.msra.mxu0 0.0
    %619 = vmatprep.subr.mxu0 0.0
    %620 = vmatpush1.xpose.msra.mxu0 0.0
    %621 = vmatprep.subr.mxu0 0.0
    %622 = vmatpush1.xpose.msra.mxu0 %v595
    %623 = vmatprep.subr.mxu0 0.0
    %624 = vmatpush1.xpose.msra.mxu0 %v593
    %625 = vmatprep.subr.mxu0 0.0
    %626 = vmatpush1.xpose.msra.mxu0 %v591
    %627 = vmatprep.subr.mxu0 0.0
    %628 = vmatpush1.xpose.msra.mxu0 %v589
    %629 = vmatprep.subr.mxu0 0.0
    %630 = vmatpush2.xpose.msra.mxu0 0.0
    %631 = vmatprep.subr.mxu0 0.0
    %632 = vmatpush2.xpose.msra.mxu0 0.0
    %633 = vmatprep.subr.mxu0 0.0
    %634 = vmatpush2.xpose.msra.mxu0 0.0
    %635 = vmatprep.subr.mxu0 0.0
    %636 = vmatpush2.xpose.msra.mxu0 0.0
    %637 = vmatprep.subr.mxu0 0.0
    %638 = vmatpush2.xpose.msra.mxu0 0.0
    %639 = vmatprep.subr.mxu0 0.0
    %640 = vmatpush2.xpose.msra.mxu0 0.0
    %641 = vmatprep.subr.mxu0 0.0
    %642 = vmatpush2.xpose.msra.mxu0 0.0
    %643 = vmatprep.subr.mxu0 0.0
    %644 = vmatpush2.xpose.msra.mxu0 0.0
    %645 = vmatprep.subr.mxu0 0.0
    %646 = vmatpush2.xpose.msra.mxu0 0.0
    %647 = vmatprep.subr.mxu0 0.0
    %648 = vmatpush2.xpose.msra.mxu0 0.0
    %649 = vmatprep.subr.mxu0 0.0
    %650 = vmatpush2.xpose.msra.mxu0 0.0
    %651 = vmatprep.subr.mxu0 0.0
    %652 = vmatpush2.xpose.msra.mxu0 0.0
    %653 = vmatprep.subr.mxu0 0.0
    %654 = vmatpush2.xpose.msra.mxu0 0.0
    %655 = vmatprep.subr.mxu0 0.0
    %656 = vmatpush2.xpose.msra.mxu0 0.0
    %657 = vmatprep.subr.mxu0 0.0
    %658 = vmatpush2.xpose.msra.mxu0 0.0
    %659 = vmatprep.subr.mxu0 0.0
    %660 = vmatpush2.xpose.msra.mxu0 0.0
    %661 = vmatprep.mubr.f32.mxu0 0.0
    %662 = vmatmul.mubr.f32.gmra.mxu0 %v581
    %v663 = vpop.f32.mrf.mxu0
    %v664 = vadd.f32 0.0, %v663
    %v665 = vpop.f32.mrf.mxu0
    %666 = vmatprep.mubr.f32.mxu0 0.0
    %667 = vmatmul.mubr.f32.gmra.mxu0 %v583
    %v668 = vpop.f32.mrf.mxu0
    %v669 = vadd.f32 0.0, %v668
    %v670 = vpop.f32.mrf.mxu0
    %671 = vmatprep.mubr.f32.mxu0 0.0
    %672 = vmatmul.mubr.f32.gmra.mxu0 %v585
    %v673 = vpop.f32.mrf.mxu0
    %v674 = vadd.f32 0.0, %v673
    %v675 = vpop.f32.mrf.mxu0
    %676 = vmatprep.mubr.f32.mxu0 0.0
    %677 = vmatmul.mubr.f32.gmra.mxu0 %v587
    %v678 = vpop.f32.mrf.mxu0
    %v679 = vadd.f32 0.0, %v678
    %v680 = vpop.f32.mrf.mxu0
    %681 = vdwg.mxu0
    %v682 = vmul.f32 %v664, 0.35355338
    %v683 = vmul.f32 %v669, 0.35355338
    %v684 = vmul.f32 %v674, 0.35355338
    %v685 = vmul.f32 %v679, 0.35355338
    %v686 = vadd.f32 %v682, %v65
    %v687 = vadd.f32 %v683, %v66
    %v688 = vadd.f32 %v684, %v67
    %v689 = vadd.f32 %v685, %v68
    %v690 = vsel %vm192, %v686, -inf
    %691 = vmax.xlane.f32.xlu0 %v690
    %v692 = vpop.xlane.xlu0 %691
    %v693 = vsel %vm192, %v687, -inf
    %694 = vmax.xlane.f32.xlu0 %v693
    %v695 = vpop.xlane.xlu0 %694
    %v696 = vsel %vm192, %v688, -inf
    %697 = vmax.xlane.f32.xlu0 %v696
    %v698 = vpop.xlane.xlu0 %697
    %v699 = vsel %vm192, %v689, -inf
    %700 = vmax.xlane.f32.xlu0 %v699
    %v701 = vpop.xlane.xlu0 %700
    %v702 = vsub.f32 %v686, %v692
    %v703 = vsub.f32 %v687, %v695
    %v704 = vsub.f32 %v688, %v698
    %v705 = vsub.f32 %v689, %v701
    %v706 = vmul.f32 %v702, 1.442695
    %v707 = vpow.pop %v706
    %v708 = vmul.f32 %v703, 1.442695
    %v709 = vpow.pop %v708
    %v710 = vmul.f32 %v704, 1.442695
    %v711 = vpow.pop %v710
    %v712 = vmul.f32 %v705, 1.442695
    %v713 = vpow.pop %v712
    %v714 = vsel %vm192, %v707, 0.0
    %715 = vadd.xlane.f32.xlu0 %v714
    %v716 = vpop.xlane.xlu0 %715
    %v717 = vsel %vm192, %v709, 0.0
    %718 = vadd.xlane.f32.xlu0 %v717
    %v719 = vpop.xlane.xlu0 %718
    %v720 = vsel %vm192, %v711, 0.0
    %721 = vadd.xlane.f32.xlu0 %v720
    %v722 = vpop.xlane.xlu0 %721
    %v723 = vsel %vm192, %v713, 0.0
    %724 = vadd.xlane.f32.xlu0 %v723
    %v725 = vpop.xlane.xlu0 %724
    %v726 = vrcp.pop %v716
    %v727 = vmul.f32 %v707, %v726
    %v728 = vrcp.pop %v719
    %v729 = vmul.f32 %v709, %v728
    %v730 = vrcp.pop %v722
    %v731 = vmul.f32 %v711, %v730
    %v732 = vrcp.pop %v725
    %v733 = vmul.f32 %v713, %v732
    %734 = vrot.lane.b32.xlu0 %v272, 56
    %v735 = vpop.permute.xlu0 %734
    %736 = vrot.lane.b32.xlu0 %v277, 56
    %v737 = vpop.permute.xlu0 %736
    %738 = vrot.lane.b32.xlu0 %v282, 56
    %v739 = vpop.permute.xlu0 %738
    %740 = vrot.lane.b32.xlu0 %v287, 56
    %v741 = vpop.permute.xlu0 %740
    %v747 = vsel %vm192, %v727, 0
    %v750 = vsel %vm192, %v729, 0
    %v753 = vsel %vm192, %v731, 0
    %v756 = vsel %vm192, %v733, 0
    %758 = vmatprep.subr.mxu0 0.0
    %759 = vmatpush1.msra.mxu0 0.0
    %760 = vmatprep.subr.mxu0 0.0
    %761 = vmatpush1.msra.mxu0 0.0
    %762 = vmatprep.subr.mxu0 0.0
    %763 = vmatpush1.msra.mxu0 0.0
    %764 = vmatprep.subr.mxu0 0.0
    %765 = vmatpush1.msra.mxu0 0.0
    %766 = vmatprep.subr.mxu0 0.0
    %767 = vmatpush1.msra.mxu0 0.0
    %768 = vmatprep.subr.mxu0 0.0
    %769 = vmatpush1.msra.mxu0 0.0
    %770 = vmatprep.subr.mxu0 0.0
    %771 = vmatpush1.msra.mxu0 0.0
    %772 = vmatprep.subr.mxu0 0.0
    %773 = vmatpush1.msra.mxu0 0.0
    %774 = vmatprep.subr.mxu0 0.0
    %775 = vmatpush1.msra.mxu0 0.0
    %776 = vmatprep.subr.mxu0 0.0
    %777 = vmatpush1.msra.mxu0 0.0
    %778 = vmatprep.subr.mxu0 0.0
    %779 = vmatpush1.msra.mxu0 0.0
    %780 = vmatprep.subr.mxu0 0.0
    %781 = vmatpush1.msra.mxu0 0.0
    %782 = vmatprep.subr.mxu0 0.0
    %783 = vmatpush1.msra.mxu0 %v741
    %784 = vmatprep.subr.mxu0 0.0
    %785 = vmatpush1.msra.mxu0 %v739
    %786 = vmatprep.subr.mxu0 0.0
    %787 = vmatpush1.msra.mxu0 %v737
    %788 = vmatprep.subr.mxu0 0.0
    %789 = vmatpush1.msra.mxu0 %v735
    %790 = vmatprep.subr.mxu0 0.0
    %791 = vmatpush2.msra.mxu0 0.0
    %792 = vmatprep.subr.mxu0 0.0
    %793 = vmatpush2.msra.mxu0 0.0
    %794 = vmatprep.subr.mxu0 0.0
    %795 = vmatpush2.msra.mxu0 0.0
    %796 = vmatprep.subr.mxu0 0.0
    %797 = vmatpush2.msra.mxu0 0.0
    %798 = vmatprep.subr.mxu0 0.0
    %799 = vmatpush2.msra.mxu0 0.0
    %800 = vmatprep.subr.mxu0 0.0
    %801 = vmatpush2.msra.mxu0 0.0
    %802 = vmatprep.subr.mxu0 0.0
    %803 = vmatpush2.msra.mxu0 0.0
    %804 = vmatprep.subr.mxu0 0.0
    %805 = vmatpush2.msra.mxu0 0.0
    %806 = vmatprep.subr.mxu0 0.0
    %807 = vmatpush2.msra.mxu0 0.0
    %808 = vmatprep.subr.mxu0 0.0
    %809 = vmatpush2.msra.mxu0 0.0
    %810 = vmatprep.subr.mxu0 0.0
    %811 = vmatpush2.msra.mxu0 0.0
    %812 = vmatprep.subr.mxu0 0.0
    %813 = vmatpush2.msra.mxu0 0.0
    %814 = vmatprep.subr.mxu0 0.0
    %815 = vmatpush2.msra.mxu0 0.0
    %816 = vmatprep.subr.mxu0 0.0
    %817 = vmatpush2.msra.mxu0 0.0
    %818 = vmatprep.subr.mxu0 0.0
    %819 = vmatpush2.msra.mxu0 0.0
    %820 = vmatprep.subr.mxu0 0.0
    %821 = vmatpush2.msra.mxu0 0.0
    %822 = vmatprep.mubr.f32.mxu0 0.0
    %823 = vmatmul.mubr.f32.gmra.mxu0 %v747
    %v824 = vpop.f32.mrf.mxu0
    %v825 = vadd.f32 0.0, %v824
    %v826 = vpop.f32.mrf.mxu0
    %827 = vmatprep.mubr.f32.mxu0 0.0
    %828 = vmatmul.mubr.f32.gmra.mxu0 %v750
    %v829 = vpop.f32.mrf.mxu0
    %v830 = vadd.f32 0.0, %v829
    %v831 = vpop.f32.mrf.mxu0
    %832 = vmatprep.mubr.f32.mxu0 0.0
    %833 = vmatmul.mubr.f32.gmra.mxu0 %v753
    %v834 = vpop.f32.mrf.mxu0
    %v835 = vadd.f32 0.0, %v834
    %v836 = vpop.f32.mrf.mxu0
    %837 = vmatprep.mubr.f32.mxu0 0.0
    %838 = vmatmul.mubr.f32.gmra.mxu0 %v756
    %v839 = vpop.f32.mrf.mxu0
    %v840 = vadd.f32 0.0, %v839
    %v841 = vpop.f32.mrf.mxu0
    %842 = vdwg.mxu0
    %843 = vrot.lane.b32.xlu0 %v272, 112
    %v844 = vpop.permute.xlu0 %843
    %845 = vrot.lane.b32.xlu0 %v277, 112
    %v846 = vpop.permute.xlu0 %845
    %847 = vrot.lane.b32.xlu0 %v282, 112
    %v848 = vpop.permute.xlu0 %847
    %849 = vrot.lane.b32.xlu0 %v287, 112
    %v850 = vpop.permute.xlu0 %849
    %851 = vrot.lane.b32.xlu0 %v272, 80
    %v852 = vpop.permute.xlu0 %851
    %853 = vrot.lane.b32.xlu0 %v277, 80
    %v854 = vpop.permute.xlu0 %853
    %855 = vrot.lane.b32.xlu0 %v282, 80
    %v856 = vpop.permute.xlu0 %855
    %857 = vrot.lane.b32.xlu0 %v287, 80
    %v858 = vpop.permute.xlu0 %857
    %v859 = vsel %vm302, %v844, 0
    %v861 = vsel %vm302, %v846, 0
    %v863 = vsel %vm302, %v848, 0
    %v865 = vsel %vm302, %v850, 0
    %v867 = vsel %vm302, %v852, 0
    %v869 = vsel %vm302, %v854, 0
    %v871 = vsel %vm302, %v856, 0
    %v873 = vsel %vm302, %v858, 0
    %875 = vmatprep.subr.mxu0 0.0
    %876 = vmatpush1.xpose.msra.mxu0 0.0
    %877 = vmatprep.subr.mxu0 0.0
    %878 = vmatpush1.xpose.msra.mxu0 0.0
    %879 = vmatprep.subr.mxu0 0.0
    %880 = vmatpush1.xpose.msra.mxu0 0.0
    %881 = vmatprep.subr.mxu0 0.0
    %882 = vmatpush1.xpose.msra.mxu0 0.0
    %883 = vmatprep.subr.mxu0 0.0
    %884 = vmatpush1.xpose.msra.mxu0 0.0
    %885 = vmatprep.subr.mxu0 0.0
    %886 = vmatpush1.xpose.msra.mxu0 0.0
    %887 = vmatprep.subr.mxu0 0.0
    %888 = vmatpush1.xpose.msra.mxu0 0.0
    %889 = vmatprep.subr.mxu0 0.0
    %890 = vmatpush1.xpose.msra.mxu0 0.0
    %891 = vmatprep.subr.mxu0 0.0
    %892 = vmatpush1.xpose.msra.mxu0 0.0
    %893 = vmatprep.subr.mxu0 0.0
    %894 = vmatpush1.xpose.msra.mxu0 0.0
    %895 = vmatprep.subr.mxu0 0.0
    %896 = vmatpush1.xpose.msra.mxu0 0.0
    %897 = vmatprep.subr.mxu0 0.0
    %898 = vmatpush1.xpose.msra.mxu0 0.0
    %899 = vmatprep.subr.mxu0 0.0
    %900 = vmatpush1.xpose.msra.mxu0 %v873
    %901 = vmatprep.subr.mxu0 0.0
    %902 = vmatpush1.xpose.msra.mxu0 %v871
    %903 = vmatprep.subr.mxu0 0.0
    %904 = vmatpush1.xpose.msra.mxu0 %v869
    %905 = vmatprep.subr.mxu0 0.0
    %906 = vmatpush1.xpose.msra.mxu0 %v867
    %907 = vmatprep.subr.mxu0 0.0
    %908 = vmatpush2.xpose.msra.mxu0 0.0
    %909 = vmatprep.subr.mxu0 0.0
    %910 = vmatpush2.xpose.msra.mxu0 0.0
    %911 = vmatprep.subr.mxu0 0.0
    %912 = vmatpush2.xpose.msra.mxu0 0.0
    %913 = vmatprep.subr.mxu0 0.0
    %914 = vmatpush2.xpose.msra.mxu0 0.0
    %915 = vmatprep.subr.mxu0 0.0
    %916 = vmatpush2.xpose.msra.mxu0 0.0
    %917 = vmatprep.subr.mxu0 0.0
    %918 = vmatpush2.xpose.msra.mxu0 0.0
    %919 = vmatprep.subr.mxu0 0.0
    %920 = vmatpush2.xpose.msra.mxu0 0.0
    %921 = vmatprep.subr.mxu0 0.0
    %922 = vmatpush2.xpose.msra.mxu0 0.0
    %923 = vmatprep.subr.mxu0 0.0
    %924 = vmatpush2.xpose.msra.mxu0 0.0
    %925 = vmatprep.subr.mxu0 0.0
    %926 = vmatpush2.xpose.msra.mxu0 0.0
    %927 = vmatprep.subr.mxu0 0.0
    %928 = vmatpush2.xpose.msra.mxu0 0.0
    %929 = vmatprep.subr.mxu0 0.0
    %930 = vmatpush2.xpose.msra.mxu0 0.0
    %931 = vmatprep.subr.mxu0 0.0
    %932 = vmatpush2.xpose.msra.mxu0 0.0
    %933 = vmatprep.subr.mxu0 0.0
    %934 = vmatpush2.xpose.msra.mxu0 0.0
    %935 = vmatprep.subr.mxu0 0.0
    %936 = vmatpush2.xpose.msra.mxu0 0.0
    %937 = vmatprep.subr.mxu0 0.0
    %938 = vmatpush2.xpose.msra.mxu0 0.0
    %939 = vmatprep.mubr.f32.mxu0 0.0
    %940 = vmatmul.mubr.f32.gmra.mxu0 %v859
    %v941 = vpop.f32.mrf.mxu0
    %v942 = vadd.f32 0.0, %v941
    %v943 = vpop.f32.mrf.mxu0
    %944 = vmatprep.mubr.f32.mxu0 0.0
    %945 = vmatmul.mubr.f32.gmra.mxu0 %v861
    %v946 = vpop.f32.mrf.mxu0
    %v947 = vadd.f32 0.0, %v946
    %v948 = vpop.f32.mrf.mxu0
    %949 = vmatprep.mubr.f32.mxu0 0.0
    %950 = vmatmul.mubr.f32.gmra.mxu0 %v863
    %v951 = vpop.f32.mrf.mxu0
    %v952 = vadd.f32 0.0, %v951
    %v953 = vpop.f32.mrf.mxu0
    %954 = vmatprep.mubr.f32.mxu0 0.0
    %955 = vmatmul.mubr.f32.gmra.mxu0 %v865
    %v956 = vpop.f32.mrf.mxu0
    %v957 = vadd.f32 0.0, %v956
    %v958 = vpop.f32.mrf.mxu0
    %959 = vdwg.mxu0
    %v960 = vmul.f32 %v942, 0.35355338
    %v961 = vmul.f32 %v947, 0.35355338
    %v962 = vmul.f32 %v952, 0.35355338
    %v963 = vmul.f32 %v957, 0.35355338
    %v964 = vadd.f32 %v960, %v65
    %v965 = vadd.f32 %v961, %v66
    %v966 = vadd.f32 %v962, %v67
    %v967 = vadd.f32 %v963, %v68
    %v968 = vsel %vm192, %v964, -inf
    %969 = vmax.xlane.f32.xlu0 %v968
    %v970 = vpop.xlane.xlu0 %969
    %v971 = vsel %vm192, %v965, -inf
    %972 = vmax.xlane.f32.xlu0 %v971
    %v973 = vpop.xlane.xlu0 %972
    %v974 = vsel %vm192, %v966, -inf
    %975 = vmax.xlane.f32.xlu0 %v974
    %v976 = vpop.xlane.xlu0 %975
    %v977 = vsel %vm192, %v967, -inf
    %978 = vmax.xlane.f32.xlu0 %v977
    %v979 = vpop.xlane.xlu0 %978
    %v980 = vsub.f32 %v964, %v970
    %v981 = vsub.f32 %v965, %v973
    %v982 = vsub.f32 %v966, %v976
    %v983 = vsub.f32 %v967, %v979
    %v984 = vmul.f32 %v980, 1.442695
    %v985 = vpow.pop %v984
    %v986 = vmul.f32 %v981, 1.442695
    %v987 = vpow.pop %v986
    %v988 = vmul.f32 %v982, 1.442695
    %v989 = vpow.pop %v988
    %v990 = vmul.f32 %v983, 1.442695
    %v991 = vpow.pop %v990
    %v992 = vsel %vm192, %v985, 0.0
    %993 = vadd.xlane.f32.xlu0 %v992
    %v994 = vpop.xlane.xlu0 %993
    %v995 = vsel %vm192, %v987, 0.0
    %996 = vadd.xlane.f32.xlu0 %v995
    %v997 = vpop.xlane.xlu0 %996
    %v998 = vsel %vm192, %v989, 0.0
    %999 = vadd.xlane.f32.xlu0 %v998
    %v1000 = vpop.xlane.xlu0 %999
    %v1001 = vsel %vm192, %v991, 0.0
    %1002 = vadd.xlane.f32.xlu0 %v1001
    %v1003 = vpop.xlane.xlu0 %1002
    %v1004 = vrcp.pop %v994
    %v1005 = vmul.f32 %v985, %v1004
    %v1006 = vrcp.pop %v997
    %v1007 = vmul.f32 %v987, %v1006
    %v1008 = vrcp.pop %v1000
    %v1009 = vmul.f32 %v989, %v1008
    %v1010 = vrcp.pop %v1003
    %v1011 = vmul.f32 %v991, %v1010
    %1012 = vrot.lane.b32.xlu0 %v272, 48
    %v1013 = vpop.permute.xlu0 %1012
    %1014 = vrot.lane.b32.xlu0 %v277, 48
    %v1015 = vpop.permute.xlu0 %1014
    %1016 = vrot.lane.b32.xlu0 %v282, 48
    %v1017 = vpop.permute.xlu0 %1016
    %1018 = vrot.lane.b32.xlu0 %v287, 48
    %v1019 = vpop.permute.xlu0 %1018
    %v1025 = vsel %vm192, %v1005, 0
    %v1028 = vsel %vm192, %v1007, 0
    %v1031 = vsel %vm192, %v1009, 0
    %v1034 = vsel %vm192, %v1011, 0
    %1036 = vmatprep.subr.mxu0 0.0
    %1037 = vmatpush1.msra.mxu0 0.0
    %1038 = vmatprep.subr.mxu0 0.0
    %1039 = vmatpush1.msra.mxu0 0.0
    %1040 = vmatprep.subr.mxu0 0.0
    %1041 = vmatpush1.msra.mxu0 0.0
    %1042 = vmatprep.subr.mxu0 0.0
    %1043 = vmatpush1.msra.mxu0 0.0
    %1044 = vmatprep.subr.mxu0 0.0
    %1045 = vmatpush1.msra.mxu0 0.0
    %1046 = vmatprep.subr.mxu0 0.0
    %1047 = vmatpush1.msra.mxu0 0.0
    %1048 = vmatprep.subr.mxu0 0.0
    %1049 = vmatpush1.msra.mxu0 0.0
    %1050 = vmatprep.subr.mxu0 0.0
    %1051 = vmatpush1.msra.mxu0 0.0
    %1052 = vmatprep.subr.mxu0 0.0
    %1053 = vmatpush1.msra.mxu0 0.0
    %1054 = vmatprep.subr.mxu0 0.0
    %1055 = vmatpush1.msra.mxu0 0.0
    %1056 = vmatprep.subr.mxu0 0.0
    %1057 = vmatpush1.msra.mxu0 0.0
    %1058 = vmatprep.subr.mxu0 0.0
    %1059 = vmatpush1.msra.mxu0 0.0
    %1060 = vmatprep.subr.mxu0 0.0
    %1061 = vmatpush1.msra.mxu0 %v1019
    %1062 = vmatprep.subr.mxu0 0.0
    %1063 = vmatpush1.msra.mxu0 %v1017
    %1064 = vmatprep.subr.mxu0 0.0
    %1065 = vmatpush1.msra.mxu0 %v1015
    %1066 = vmatprep.subr.mxu0 0.0
    %1067 = vmatpush1.msra.mxu0 %v1013
    %1068 = vmatprep.subr.mxu0 0.0
    %1069 = vmatpush2.msra.mxu0 0.0
    %1070 = vmatprep.subr.mxu0 0.0
    %1071 = vmatpush2.msra.mxu0 0.0
    %1072 = vmatprep.subr.mxu0 0.0
    %1073 = vmatpush2.msra.mxu0 0.0
    %1074 = vmatprep.subr.mxu0 0.0
    %1075 = vmatpush2.msra.mxu0 0.0
    %1076 = vmatprep.subr.mxu0 0.0
    %1077 = vmatpush2.msra.mxu0 0.0
    %1078 = vmatprep.subr.mxu0 0.0
    %1079 = vmatpush2.msra.mxu0 0.0
    %1080 = vmatprep.subr.mxu0 0.0
    %1081 = vmatpush2.msra.mxu0 0.0
    %1082 = vmatprep.subr.mxu0 0.0
    %1083 = vmatpush2.msra.mxu0 0.0
    %1084 = vmatprep.subr.mxu0 0.0
    %1085 = vmatpush2.msra.mxu0 0.0
    %1086 = vmatprep.subr.mxu0 0.0
    %1087 = vmatpush2.msra.mxu0 0.0
    %1088 = vmatprep.subr.mxu0 0.0
    %1089 = vmatpush2.msra.mxu0 0.0
    %1090 = vmatprep.subr.mxu0 0.0
    %1091 = vmatpush2.msra.mxu0 0.0
    %1092 = vmatprep.subr.mxu0 0.0
    %1093 = vmatpush2.msra.mxu0 0.0
    %1094 = vmatprep.subr.mxu0 0.0
    %1095 = vmatpush2.msra.mxu0 0.0
    %1096 = vmatprep.subr.mxu0 0.0
    %1097 = vmatpush2.msra.mxu0 0.0
    %1098 = vmatprep.subr.mxu0 0.0
    %1099 = vmatpush2.msra.mxu0 0.0
    %1100 = vmatprep.mubr.f32.mxu0 0.0
    %1101 = vmatmul.mubr.f32.gmra.mxu0 %v1025
    %v1102 = vpop.f32.mrf.mxu0
    %v1103 = vadd.f32 0.0, %v1102
    %v1104 = vpop.f32.mrf.mxu0
    %1105 = vmatprep.mubr.f32.mxu0 0.0
    %1106 = vmatmul.mubr.f32.gmra.mxu0 %v1028
    %v1107 = vpop.f32.mrf.mxu0
    %v1108 = vadd.f32 0.0, %v1107
    %v1109 = vpop.f32.mrf.mxu0
    %1110 = vmatprep.mubr.f32.mxu0 0.0
    %1111 = vmatmul.mubr.f32.gmra.mxu0 %v1031
    %v1112 = vpop.f32.mrf.mxu0
    %v1113 = vadd.f32 0.0, %v1112
    %v1114 = vpop.f32.mrf.mxu0
    %1115 = vmatprep.mubr.f32.mxu0 0.0
    %1116 = vmatmul.mubr.f32.gmra.mxu0 %v1034
    %v1117 = vpop.f32.mrf.mxu0
    %v1118 = vadd.f32 0.0, %v1117
    %v1119 = vpop.f32.mrf.mxu0
    %1120 = vdwg.mxu0
    %1121 = vrot.lane.b32.xlu0 %v272, 104
    %v1122 = vpop.permute.xlu0 %1121
    %1123 = vrot.lane.b32.xlu0 %v277, 104
    %v1124 = vpop.permute.xlu0 %1123
    %1125 = vrot.lane.b32.xlu0 %v282, 104
    %v1126 = vpop.permute.xlu0 %1125
    %1127 = vrot.lane.b32.xlu0 %v287, 104
    %v1128 = vpop.permute.xlu0 %1127
    %1129 = vrot.lane.b32.xlu0 %v272, 72
    %v1130 = vpop.permute.xlu0 %1129
    %1131 = vrot.lane.b32.xlu0 %v277, 72
    %v1132 = vpop.permute.xlu0 %1131
    %1133 = vrot.lane.b32.xlu0 %v282, 72
    %v1134 = vpop.permute.xlu0 %1133
    %1135 = vrot.lane.b32.xlu0 %v287, 72
    %v1136 = vpop.permute.xlu0 %1135
    %v1137 = vsel %vm302, %v1122, 0
    %v1139 = vsel %vm302, %v1124, 0
    %v1141 = vsel %vm302, %v1126, 0
    %v1143 = vsel %vm302, %v1128, 0
    %v1145 = vsel %vm302, %v1130, 0
    %v1147 = vsel %vm302, %v1132, 0
    %v1149 = vsel %vm302, %v1134, 0
    %v1151 = vsel %vm302, %v1136, 0
    %1153 = vmatprep.subr.mxu0 0.0
    %1154 = vmatpush1.xpose.msra.mxu0 0.0
    %1155 = vmatprep.subr.mxu0 0.0
    %1156 = vmatpush1.xpose.msra.mxu0 0.0
    %1157 = vmatprep.subr.mxu0 0.0
    %1158 = vmatpush1.xpose.msra.mxu0 0.0
    %1159 = vmatprep.subr.mxu0 0.0
    %1160 = vmatpush1.xpose.msra.mxu0 0.0
    %1161 = vmatprep.subr.mxu0 0.0
    %1162 = vmatpush1.xpose.msra.mxu0 0.0
    %1163 = vmatprep.subr.mxu0 0.0
    %1164 = vmatpush1.xpose.msra.mxu0 0.0
    %1165 = vmatprep.subr.mxu0 0.0
    %1166 = vmatpush1.xpose.msra.mxu0 0.0
    %1167 = vmatprep.subr.mxu0 0.0
    %1168 = vmatpush1.xpose.msra.mxu0 0.0
    %1169 = vmatprep.subr.mxu0 0.0
    %1170 = vmatpush1.xpose.msra.mxu0 0.0
    %1171 = vmatprep.subr.mxu0 0.0
    %1172 = vmatpush1.xpose.msra.mxu0 0.0
    %1173 = vmatprep.subr.mxu0 0.0
    %1174 = vmatpush1.xpose.msra.mxu0 0.0
    %1175 = vmatprep.subr.mxu0 0.0
    %1176 = vmatpush1.xpose.msra.mxu0 0.0
    %1177 = vmatprep.subr.mxu0 0.0
    %1178 = vmatpush1.xpose.msra.mxu0 %v1151
    %1179 = vmatprep.subr.mxu0 0.0
    %1180 = vmatpush1.xpose.msra.mxu0 %v1149
    %1181 = vmatprep.subr.mxu0 0.0
    %1182 = vmatpush1.xpose.msra.mxu0 %v1147
    %1183 = vmatprep.subr.mxu0 0.0
    %1184 = vmatpush1.xpose.msra.mxu0 %v1145
    %1185 = vmatprep.subr.mxu0 0.0
    %1186 = vmatpush2.xpose.msra.mxu0 0.0
    %1187 = vmatprep.subr.mxu0 0.0
    %1188 = vmatpush2.xpose.msra.mxu0 0.0
    %1189 = vmatprep.subr.mxu0 0.0
    %1190 = vmatpush2.xpose.msra.mxu0 0.0
    %1191 = vmatprep.subr.mxu0 0.0
    %1192 = vmatpush2.xpose.msra.mxu0 0.0
    %1193 = vmatprep.subr.mxu0 0.0
    %1194 = vmatpush2.xpose.msra.mxu0 0.0
    %1195 = vmatprep.subr.mxu0 0.0
    %1196 = vmatpush2.xpose.msra.mxu0 0.0
    %1197 = vmatprep.subr.mxu0 0.0
    %1198 = vmatpush2.xpose.msra.mxu0 0.0
    %1199 = vmatprep.subr.mxu0 0.0
    %1200 = vmatpush2.xpose.msra.mxu0 0.0
    %1201 = vmatprep.subr.mxu0 0.0
    %1202 = vmatpush2.xpose.msra.mxu0 0.0
    %1203 = vmatprep.subr.mxu0 0.0
    %1204 = vmatpush2.xpose.msra.mxu0 0.0
    %1205 = vmatprep.subr.mxu0 0.0
    %1206 = vmatpush2.xpose.msra.mxu0 0.0
    %1207 = vmatprep.subr.mxu0 0.0
    %1208 = vmatpush2.xpose.msra.mxu0 0.0
    %1209 = vmatprep.subr.mxu0 0.0
    %1210 = vmatpush2.xpose.msra.mxu0 0.0
    %1211 = vmatprep.subr.mxu0 0.0
    %1212 = vmatpush2.xpose.msra.mxu0 0.0
    %1213 = vmatprep.subr.mxu0 0.0
    %1214 = vmatpush2.xpose.msra.mxu0 0.0
    %1215 = vmatprep.subr.mxu0 0.0
    %1216 = vmatpush2.xpose.msra.mxu0 0.0
    %1217 = vmatprep.mubr.f32.mxu0 0.0
    %1218 = vmatmul.mubr.f32.gmra.mxu0 %v1137
    %v1219 = vpop.f32.mrf.mxu0
    %v1220 = vadd.f32 0.0, %v1219
    %v1221 = vpop.f32.mrf.mxu0
    %1222 = vmatprep.mubr.f32.mxu0 0.0
    %1223 = vmatmul.mubr.f32.gmra.mxu0 %v1139
    %v1224 = vpop.f32.mrf.mxu0
    %v1225 = vadd.f32 0.0, %v1224
    %v1226 = vpop.f32.mrf.mxu0
    %1227 = vmatprep.mubr.f32.mxu0 0.0
    %1228 = vmatmul.mubr.f32.gmra.mxu0 %v1141
    %v1229 = vpop.f32.mrf.mxu0
    %v1230 = vadd.f32 0.0, %v1229
    %v1231 = vpop.f32.mrf.mxu0
    %1232 = vmatprep.mubr.f32.mxu0 0.0
    %1233 = vmatmul.mubr.f32.gmra.mxu0 %v1143
    %v1234 = vpop.f32.mrf.mxu0
    %v1235 = vadd.f32 0.0, %v1234
    %v1236 = vpop.f32.mrf.mxu0
    %1237 = vdwg.mxu0
    %v1238 = vmul.f32 %v1220, 0.35355338
    %v1239 = vmul.f32 %v1225, 0.35355338
    %v1240 = vmul.f32 %v1230, 0.35355338
    %v1241 = vmul.f32 %v1235, 0.35355338
    %v1242 = vadd.f32 %v1238, %v65
    %v1243 = vadd.f32 %v1239, %v66
    %v1244 = vadd.f32 %v1240, %v67
    %v1245 = vadd.f32 %v1241, %v68
    %v1246 = vsel %vm192, %v1242, -inf
    %1247 = vmax.xlane.f32.xlu0 %v1246
    %v1248 = vpop.xlane.xlu0 %1247
    %v1249 = vsel %vm192, %v1243, -inf
    %1250 = vmax.xlane.f32.xlu0 %v1249
    %v1251 = vpop.xlane.xlu0 %1250
    %v1252 = vsel %vm192, %v1244, -inf
    %1253 = vmax.xlane.f32.xlu0 %v1252
    %v1254 = vpop.xlane.xlu0 %1253
    %v1255 = vsel %vm192, %v1245, -inf
    %1256 = vmax.xlane.f32.xlu0 %v1255
    %v1257 = vpop.xlane.xlu0 %1256
    %v1258 = vsub.f32 %v1242, %v1248
    %v1259 = vsub.f32 %v1243, %v1251
    %v1260 = vsub.f32 %v1244, %v1254
    %v1261 = vsub.f32 %v1245, %v1257
    %v1262 = vmul.f32 %v1258, 1.442695
    %v1263 = vpow.pop %v1262
    %v1264 = vmul.f32 %v1259, 1.442695
    %v1265 = vpow.pop %v1264
    %v1266 = vmul.f32 %v1260, 1.442695
    %v1267 = vpow.pop %v1266
    %v1268 = vmul.f32 %v1261, 1.442695
    %v1269 = vpow.pop %v1268
    %v1270 = vsel %vm192, %v1263, 0.0
    %1271 = vadd.xlane.f32.xlu0 %v1270
    %v1272 = vpop.xlane.xlu0 %1271
    %v1273 = vsel %vm192, %v1265, 0.0
    %1274 = vadd.xlane.f32.xlu0 %v1273
    %v1275 = vpop.xlane.xlu0 %1274
    %v1276 = vsel %vm192, %v1267, 0.0
    %1277 = vadd.xlane.f32.xlu0 %v1276
    %v1278 = vpop.xlane.xlu0 %1277
    %v1279 = vsel %vm192, %v1269, 0.0
    %1280 = vadd.xlane.f32.xlu0 %v1279
    %v1281 = vpop.xlane.xlu0 %1280
    %v1282 = vrcp.pop %v1272
    %v1283 = vmul.f32 %v1263, %v1282
    %v1284 = vrcp.pop %v1275
    %v1285 = vmul.f32 %v1265, %v1284
    %v1286 = vrcp.pop %v1278
    %v1287 = vmul.f32 %v1267, %v1286
    %v1288 = vrcp.pop %v1281
    %v1289 = vmul.f32 %v1269, %v1288
    %1290 = vrot.lane.b32.xlu0 %v272, 40
    %v1291 = vpop.permute.xlu0 %1290
    %1292 = vrot.lane.b32.xlu0 %v277, 40
    %v1293 = vpop.permute.xlu0 %1292
    %1294 = vrot.lane.b32.xlu0 %v282, 40
    %v1295 = vpop.permute.xlu0 %1294
    %1296 = vrot.lane.b32.xlu0 %v287, 40
    %v1297 = vpop.permute.xlu0 %1296
    %v1303 = vsel %vm192, %v1283, 0
    %v1306 = vsel %vm192, %v1285, 0
    %v1309 = vsel %vm192, %v1287, 0
    %v1312 = vsel %vm192, %v1289, 0
    %1314 = vmatprep.subr.mxu0 0.0
    %1315 = vmatpush1.msra.mxu0 0.0
    %1316 = vmatprep.subr.mxu0 0.0
    %1317 = vmatpush1.msra.mxu0 0.0
    %1318 = vmatprep.subr.mxu0 0.0
    %1319 = vmatpush1.msra.mxu0 0.0
    %1320 = vmatprep.subr.mxu0 0.0
    %1321 = vmatpush1.msra.mxu0 0.0
    %1322 = vmatprep.subr.mxu0 0.0
    %1323 = vmatpush1.msra.mxu0 0.0
    %1324 = vmatprep.subr.mxu0 0.0
    %1325 = vmatpush1.msra.mxu0 0.0
    %1326 = vmatprep.subr.mxu0 0.0
    %1327 = vmatpush1.msra.mxu0 0.0
    %1328 = vmatprep.subr.mxu0 0.0
    %1329 = vmatpush1.msra.mxu0 0.0
    %1330 = vmatprep.subr.mxu0 0.0
    %1331 = vmatpush1.msra.mxu0 0.0
    %1332 = vmatprep.subr.mxu0 0.0
    %1333 = vmatpush1.msra.mxu0 0.0
    %1334 = vmatprep.subr.mxu0 0.0
    %1335 = vmatpush1.msra.mxu0 0.0
    %1336 = vmatprep.subr.mxu0 0.0
    %1337 = vmatpush1.msra.mxu0 0.0
    %1338 = vmatprep.subr.mxu0 0.0
    %1339 = vmatpush1.msra.mxu0 %v1297
    %1340 = vmatprep.subr.mxu0 0.0
    %1341 = vmatpush1.msra.mxu0 %v1295
    %1342 = vmatprep.subr.mxu0 0.0
    %1343 = vmatpush1.msra.mxu0 %v1293
    %1344 = vmatprep.subr.mxu0 0.0
    %1345 = vmatpush1.msra.mxu0 %v1291
    %1346 = vmatprep.subr.mxu0 0.0
    %1347 = vmatpush2.msra.mxu0 0.0
    %1348 = vmatprep.subr.mxu0 0.0
    %1349 = vmatpush2.msra.mxu0 0.0
    %1350 = vmatprep.subr.mxu0 0.0
    %1351 = vmatpush2.msra.mxu0 0.0
    %1352 = vmatprep.subr.mxu0 0.0
    %1353 = vmatpush2.msra.mxu0 0.0
    %1354 = vmatprep.subr.mxu0 0.0
    %1355 = vmatpush2.msra.mxu0 0.0
    %1356 = vmatprep.subr.mxu0 0.0
    %1357 = vmatpush2.msra.mxu0 0.0
    %1358 = vmatprep.subr.mxu0 0.0
    %1359 = vmatpush2.msra.mxu0 0.0
    %1360 = vmatprep.subr.mxu0 0.0
    %1361 = vmatpush2.msra.mxu0 0.0
    %1362 = vmatprep.subr.mxu0 0.0
    %1363 = vmatpush2.msra.mxu0 0.0
    %1364 = vmatprep.subr.mxu0 0.0
    %1365 = vmatpush2.msra.mxu0 0.0
    %1366 = vmatprep.subr.mxu0 0.0
    %1367 = vmatpush2.msra.mxu0 0.0
    %1368 = vmatprep.subr.mxu0 0.0
    %1369 = vmatpush2.msra.mxu0 0.0
    %1370 = vmatprep.subr.mxu0 0.0
    %1371 = vmatpush2.msra.mxu0 0.0
    %1372 = vmatprep.subr.mxu0 0.0
    %1373 = vmatpush2.msra.mxu0 0.0
    %1374 = vmatprep.subr.mxu0 0.0
    %1375 = vmatpush2.msra.mxu0 0.0
    %1376 = vmatprep.subr.mxu0 0.0
    %1377 = vmatpush2.msra.mxu0 0.0
    %1378 = vmatprep.mubr.f32.mxu0 0.0
    %1379 = vmatmul.mubr.f32.gmra.mxu0 %v1303
    %v1380 = vpop.f32.mrf.mxu0
    %v1381 = vadd.f32 0.0, %v1380
    %v1382 = vpop.f32.mrf.mxu0
    %1383 = vmatprep.mubr.f32.mxu0 0.0
    %1384 = vmatmul.mubr.f32.gmra.mxu0 %v1306
    %v1385 = vpop.f32.mrf.mxu0
    %v1386 = vadd.f32 0.0, %v1385
    %v1387 = vpop.f32.mrf.mxu0
    %1388 = vmatprep.mubr.f32.mxu0 0.0
    %1389 = vmatmul.mubr.f32.gmra.mxu0 %v1309
    %v1390 = vpop.f32.mrf.mxu0
    %v1391 = vadd.f32 0.0, %v1390
    %v1392 = vpop.f32.mrf.mxu0
    %1393 = vmatprep.mubr.f32.mxu0 0.0
    %1394 = vmatmul.mubr.f32.gmra.mxu0 %v1312
    %v1395 = vpop.f32.mrf.mxu0
    %v1396 = vadd.f32 0.0, %v1395
    %v1397 = vpop.f32.mrf.mxu0
    %1398 = vdwg.mxu0
    %1403 = vrot.lane.b32.xlu0 %v825, 8
    %v1404 = vpop.permute.xlu0 %1403
    %1405 = vrot.lane.b32.xlu0 %v830, 8
    %v1406 = vpop.permute.xlu0 %1405
    %1407 = vrot.lane.b32.xlu0 %v835, 8
    %v1408 = vpop.permute.xlu0 %1407
    %1409 = vrot.lane.b32.xlu0 %v840, 8
    %v1410 = vpop.permute.xlu0 %1409
    %1419 = vrot.lane.b32.xlu0 %v1103, 16
    %v1420 = vpop.permute.xlu0 %1419
    %1421 = vrot.lane.b32.xlu0 %v1108, 16
    %v1422 = vpop.permute.xlu0 %1421
    %1423 = vrot.lane.b32.xlu0 %v1113, 16
    %v1424 = vpop.permute.xlu0 %1423
    %1425 = vrot.lane.b32.xlu0 %v1118, 16
    %v1426 = vpop.permute.xlu0 %1425
    %1435 = vrot.lane.b32.xlu0 %v1381, 24
    %v1436 = vpop.permute.xlu0 %1435
    %1437 = vrot.lane.b32.xlu0 %v1386, 24
    %v1438 = vpop.permute.xlu0 %1437
    %1439 = vrot.lane.b32.xlu0 %v1391, 24
    %v1440 = vpop.permute.xlu0 %1439
    %1441 = vrot.lane.b32.xlu0 %v1396, 24
    %v1442 = vpop.permute.xlu0 %1441
    %v1447 = vsel %vm302, %v547, %v1404
    %v1448 = vsel %vm302, %v552, %v1406
    %v1449 = vsel %vm302, %v557, %v1408
    %v1450 = vsel %vm302, %v562, %v1410
    %v1451 = vsel %vm69, %v1447, %v1420
    %v1452 = vsel %vm69, %v1448, %v1422
    %v1453 = vsel %vm69, %v1449, %v1424
    %v1454 = vsel %vm69, %v1450, %v1426
    %vm1455 = vcmask 195584
    %v1456 = vsel %vm1455, %v1451, %v1436
    %v1457 = vsel %vm1455, %v1452, %v1438
    %v1458 = vsel %vm1455, %v1453, %v1440
    %v1459 = vsel %vm1455, %v1454, %v1442
    %v1460 = vlaneseq
    %v1461 = vshrl.u32 %v1460, 7
    %v1462 = vsub.s32 1, %v1461
    %v1463 = vrot.slane %v187, %v1462
    %v1465 = vsel %vm192, %v1456, 0
    %v1468 = vsel %vm192, %v1457, 0
    %v1471 = vsel %vm192, %v1458, 0
    %v1474 = vsel %vm192, %v1459, 0
    %1476 = vmatprep.subr.mxu0 0.0
    %1477 = vmatpush1.msra.mxu0 0.0
    %1478 = vmatprep.subr.mxu0 0.0
    %1479 = vmatpush1.msra.mxu0 0.0
    %1480 = vmatprep.subr.mxu0 0.0
    %1481 = vmatpush1.msra.mxu0 0.0
    %1482 = vmatprep.subr.mxu0 0.0
    %1483 = vmatpush1.msra.mxu0 0.0
    %1484 = vmatprep.subr.mxu0 0.0
    %1485 = vmatpush1.msra.mxu0 0.0
    %1486 = vmatprep.subr.mxu0 0.0
    %1487 = vmatpush1.msra.mxu0 0.0
    %1488 = vmatprep.subr.mxu0 0.0
    %1489 = vmatpush1.msra.mxu0 0.0
    %1490 = vmatprep.subr.mxu0 0.0
    %1491 = vmatpush1.msra.mxu0 0.0
    %1492 = vmatprep.subr.mxu0 0.0
    %1493 = vmatpush1.msra.mxu0 0.0
    %1494 = vmatprep.subr.mxu0 0.0
    %1495 = vmatpush1.msra.mxu0 0.0
    %1496 = vmatprep.subr.mxu0 0.0
    %1497 = vmatpush1.msra.mxu0 0.0
    %1498 = vmatprep.subr.mxu0 0.0
    %1499 = vmatpush1.msra.mxu0 0.0
    %1500 = vmatprep.subr.mxu0 0.0
    %1501 = vmatpush1.msra.mxu0 %v174
    %1502 = vmatprep.subr.mxu0 0.0
    %1503 = vmatpush1.msra.mxu0 %v173
    %1504 = vmatprep.subr.mxu0 0.0
    %1505 = vmatpush1.msra.mxu0 %v172
    %1506 = vmatprep.subr.mxu0 0.0
    %1507 = vmatpush1.msra.mxu0 %v171
    %1508 = vmatprep.subr.mxu0 0.0
    %1509 = vmatpush2.msra.mxu0 0.0
    %1510 = vmatprep.subr.mxu0 0.0
    %1511 = vmatpush2.msra.mxu0 0.0
    %1512 = vmatprep.subr.mxu0 0.0
    %1513 = vmatpush2.msra.mxu0 0.0
    %1514 = vmatprep.subr.mxu0 0.0
    %1515 = vmatpush2.msra.mxu0 0.0
    %1516 = vmatprep.subr.mxu0 0.0
    %1517 = vmatpush2.msra.mxu0 0.0
    %1518 = vmatprep.subr.mxu0 0.0
    %1519 = vmatpush2.msra.mxu0 0.0
    %1520 = vmatprep.subr.mxu0 0.0
    %1521 = vmatpush2.msra.mxu0 0.0
    %1522 = vmatprep.subr.mxu0 0.0
    %1523 = vmatpush2.msra.mxu0 0.0
    %1524 = vmatprep.subr.mxu0 0.0
    %1525 = vmatpush2.msra.mxu0 0.0
    %1526 = vmatprep.subr.mxu0 0.0
    %1527 = vmatpush2.msra.mxu0 0.0
    %1528 = vmatprep.subr.mxu0 0.0
    %1529 = vmatpush2.msra.mxu0 0.0
    %1530 = vmatprep.subr.mxu0 0.0
    %1531 = vmatpush2.msra.mxu0 0.0
    %1532 = vmatprep.subr.mxu0 0.0
    %1533 = vmatpush2.msra.mxu0 0.0
    %1534 = vmatprep.subr.mxu0 0.0
    %1535 = vmatpush2.msra.mxu0 0.0
    %1536 = vmatprep.subr.mxu0 0.0
    %1537 = vmatpush2.msra.mxu0 0.0
    %1538 = vmatprep.subr.mxu0 0.0
    %1539 = vmatpush2.msra.mxu0 0.0
    %1540 = vmatprep.mubr.f32.mxu0 0.0
    %1541 = vmatmul.mubr.f32.gmra.mxu0 %v1465
    %v1542 = vpop.f32.mrf.mxu0
    %v1543 = vadd.f32 %v1463, %v1542
    %v1544 = vpop.f32.mrf.mxu0
    %1545 = vmatprep.mubr.f32.mxu0 0.0
    %1546 = vmatmul.mubr.f32.gmra.mxu0 %v1468
    %v1547 = vpop.f32.mrf.mxu0
    %v1548 = vadd.f32 %v1463, %v1547
    %v1549 = vpop.f32.mrf.mxu0
    %1550 = vmatprep.mubr.f32.mxu0 0.0
    %1551 = vmatmul.mubr.f32.gmra.mxu0 %v1471
    %v1552 = vpop.f32.mrf.mxu0
    %v1553 = vadd.f32 %v1463, %v1552
    %v1554 = vpop.f32.mrf.mxu0
    %1555 = vmatprep.mubr.f32.mxu0 0.0
    %1556 = vmatmul.mubr.f32.gmra.mxu0 %v1474
    %v1557 = vpop.f32.mrf.mxu0
    %v1558 = vadd.f32 %v1463, %v1557
    %v1559 = vpop.f32.mrf.mxu0
    %1560 = vdwg.mxu0
    %v1561 = vadd.f32 %v149, %v1543
    %v1562 = vadd.f32 %v154, %v1548
    %v1563 = vadd.f32 %v159, %v1553
    %v1564 = vadd.f32 %v164, %v1558
    %v1565 = vsel %vm192, %v1561, 0.0
    %1566 = vadd.xlane.f32.xlu0 %v1565
    %v1567 = vpop.xlane.xlu0 %1566
    %v1568 = vsel %vm192, %v1562, 0.0
    %1569 = vadd.xlane.f32.xlu0 %v1568
    %v1570 = vpop.xlane.xlu0 %1569
    %v1571 = vsel %vm192, %v1563, 0.0
    %1572 = vadd.xlane.f32.xlu0 %v1571
    %v1573 = vpop.xlane.xlu0 %1572
    %v1574 = vsel %vm192, %v1564, 0.0
    %1575 = vadd.xlane.f32.xlu0 %v1574
    %v1576 = vpop.xlane.xlu0 %1575
    %v1577 = vrcp.pop 32.0
    %v1578 = vmul.f32 %v1567, %v1577
    %v1579 = vmul.f32 %v1570, %v1577
    %v1580 = vmul.f32 %v1573, %v1577
    %v1581 = vmul.f32 %v1576, %v1577
    %v1582 = vsub.f32 %v1561, %v1578
    %v1583 = vsub.f32 %v1562, %v1579
    %v1584 = vsub.f32 %v1563, %v1580
    %v1585 = vsub.f32 %v1564, %v1581
    %v1586 = vmul.f32 %v1582, %v1582
    %v1587 = vmul.f32 %v1583, %v1583
    %v1588 = vmul.f32 %v1584, %v1584
    %v1589 = vmul.f32 %v1585, %v1585
    %v1590 = vsel %vm192, %v1586, 0.0
    %1591 = vadd.xlane.f32.xlu0 %v1590
    %v1592 = vpop.xlane.xlu0 %1591
    %v1593 = vsel %vm192, %v1587, 0.0
    %1594 = vadd.xlane.f32.xlu0 %v1593
    %v1595 = vpop.xlane.xlu0 %1594
    %v1596 = vsel %vm192, %v1588, 0.0
    %1597 = vadd.xlane.f32.xlu0 %v1596
    %v1598 = vpop.xlane.xlu0 %1597
    %v1599 = vsel %vm192, %v1589, 0.0
    %1600 = vadd.xlane.f32.xlu0 %v1599
    %v1601 = vpop.xlane.xlu0 %1600
    %v1602 = vmul.f32 %v1592, %v1577
    %v1603 = vmul.f32 %v1595, %v1577
    %v1604 = vmul.f32 %v1598, %v1577
    %v1605 = vmul.f32 %v1601, %v1577
    %v1606 = vadd.f32 %v1602, 1e-05
    %v1607 = vadd.f32 %v1603, 1e-05
    %v1608 = vadd.f32 %v1604, 1e-05
    %v1609 = vadd.f32 %v1605, 1e-05
    %v1610 = vrsqrt.pop %v1606
    %v1611 = vrsqrt.pop %v1607
    %v1612 = vrsqrt.pop %v1608
    %v1613 = vrsqrt.pop %v1609
    %v1614 = vmul.f32 %v1582, %v1610
    %v1615 = vmul.f32 %v1583, %v1611
    %v1616 = vmul.f32 %v1584, %v1612
    %v1617 = vmul.f32 %v1585, %v1613
    %v1618 = vlaneseq
    %v1619 = vshrl.u32 %v1618, 7
    %v1620 = vsub.s32 4, %v1619
    %v1621 = vrot.slane %v187, %v1620
    %v1622 = vmul.f32 %v1614, %v1621
    %v1623 = vmul.f32 %v1615, %v1621
    %v1624 = vmul.f32 %v1616, %v1621
    %v1625 = vmul.f32 %v1617, %v1621
    %v1626 = vlaneseq
    %v1627 = vshrl.u32 %v1626, 7
    %v1628 = vsub.s32 5, %v1627
    %v1629 = vrot.slane %v187, %v1628
    %v1630 = vadd.f32 %v1622, %v1629
    %v1631 = vadd.f32 %v1623, %v1629
    %v1632 = vadd.f32 %v1624, %v1629
    %v1633 = vadd.f32 %v1625, %v1629
    %v1634 = vlaneseq
    %v1635 = vshrl.u32 %v1634, 7
    %v1636 = vsub.s32 2, %v1635
    %v1637 = vrot.slane %v187, %v1636
    %v1639 = vsel %vm192, %v1630, 0
    %v1642 = vsel %vm192, %v1631, 0
    %v1645 = vsel %vm192, %v1632, 0
    %v1648 = vsel %vm192, %v1633, 0
    %1650 = vmatprep.subr.mxu0 0.0
    %1651 = vmatpush1.msra.mxu0 0.0
    %1652 = vmatprep.subr.mxu0 0.0
    %1653 = vmatpush1.msra.mxu0 0.0
    %1654 = vmatprep.subr.mxu0 0.0
    %1655 = vmatpush1.msra.mxu0 0.0
    %1656 = vmatprep.subr.mxu0 0.0
    %1657 = vmatpush1.msra.mxu0 0.0
    %1658 = vmatprep.subr.mxu0 0.0
    %1659 = vmatpush1.msra.mxu0 0.0
    %1660 = vmatprep.subr.mxu0 0.0
    %1661 = vmatpush1.msra.mxu0 0.0
    %1662 = vmatprep.subr.mxu0 0.0
    %1663 = vmatpush1.msra.mxu0 0.0
    %1664 = vmatprep.subr.mxu0 0.0
    %1665 = vmatpush1.msra.mxu0 0.0
    %1666 = vmatprep.subr.mxu0 0.0
    %1667 = vmatpush1.msra.mxu0 0.0
    %1668 = vmatprep.subr.mxu0 0.0
    %1669 = vmatpush1.msra.mxu0 0.0
    %1670 = vmatprep.subr.mxu0 0.0
    %1671 = vmatpush1.msra.mxu0 0.0
    %1672 = vmatprep.subr.mxu0 0.0
    %1673 = vmatpush1.msra.mxu0 0.0
    %1674 = vmatprep.subr.mxu0 0.0
    %1675 = vmatpush1.msra.mxu0 %v178
    %1676 = vmatprep.subr.mxu0 0.0
    %1677 = vmatpush1.msra.mxu0 %v177
    %1678 = vmatprep.subr.mxu0 0.0
    %1679 = vmatpush1.msra.mxu0 %v176
    %1680 = vmatprep.subr.mxu0 0.0
    %1681 = vmatpush1.msra.mxu0 %v175
    %1682 = vmatprep.subr.mxu0 0.0
    %1683 = vmatpush2.msra.mxu0 0.0
    %1684 = vmatprep.subr.mxu0 0.0
    %1685 = vmatpush2.msra.mxu0 0.0
    %1686 = vmatprep.subr.mxu0 0.0
    %1687 = vmatpush2.msra.mxu0 0.0
    %1688 = vmatprep.subr.mxu0 0.0
    %1689 = vmatpush2.msra.mxu0 0.0
    %1690 = vmatprep.subr.mxu0 0.0
    %1691 = vmatpush2.msra.mxu0 0.0
    %1692 = vmatprep.subr.mxu0 0.0
    %1693 = vmatpush2.msra.mxu0 0.0
    %1694 = vmatprep.subr.mxu0 0.0
    %1695 = vmatpush2.msra.mxu0 0.0
    %1696 = vmatprep.subr.mxu0 0.0
    %1697 = vmatpush2.msra.mxu0 0.0
    %1698 = vmatprep.subr.mxu0 0.0
    %1699 = vmatpush2.msra.mxu0 0.0
    %1700 = vmatprep.subr.mxu0 0.0
    %1701 = vmatpush2.msra.mxu0 0.0
    %1702 = vmatprep.subr.mxu0 0.0
    %1703 = vmatpush2.msra.mxu0 0.0
    %1704 = vmatprep.subr.mxu0 0.0
    %1705 = vmatpush2.msra.mxu0 0.0
    %1706 = vmatprep.subr.mxu0 0.0
    %1707 = vmatpush2.msra.mxu0 0.0
    %1708 = vmatprep.subr.mxu0 0.0
    %1709 = vmatpush2.msra.mxu0 0.0
    %1710 = vmatprep.subr.mxu0 0.0
    %1711 = vmatpush2.msra.mxu0 0.0
    %1712 = vmatprep.subr.mxu0 0.0
    %1713 = vmatpush2.msra.mxu0 0.0
    %1714 = vmatprep.mubr.f32.mxu0 0.0
    %1715 = vmatmul.mubr.f32.gmra.mxu0 %v1639
    %v1716 = vpop.f32.mrf.mxu0
    %v1717 = vadd.f32 %v1637, %v1716
    %v1718 = vpop.f32.mrf.mxu0
    %1719 = vmatprep.mubr.f32.mxu0 0.0
    %1720 = vmatmul.mubr.f32.gmra.mxu0 %v1642
    %v1721 = vpop.f32.mrf.mxu0
    %v1722 = vadd.f32 %v1637, %v1721
    %v1723 = vpop.f32.mrf.mxu0
    %1724 = vmatprep.mubr.f32.mxu0 0.0
    %1725 = vmatmul.mubr.f32.gmra.mxu0 %v1645
    %v1726 = vpop.f32.mrf.mxu0
    %v1727 = vadd.f32 %v1637, %v1726
    %v1728 = vpop.f32.mrf.mxu0
    %1729 = vmatprep.mubr.f32.mxu0 0.0
    %1730 = vmatmul.mubr.f32.gmra.mxu0 %v1648
    %v1731 = vpop.f32.mrf.mxu0
    %v1732 = vadd.f32 %v1637, %v1731
    %v1733 = vpop.f32.mrf.mxu0
    %1734 = vdwg.mxu0
    %v1735 = vmax.f32 %v1717, 0.0
    %v1736 = vmax.f32 %v1722, 0.0
    %v1737 = vmax.f32 %v1727, 0.0
    %v1738 = vmax.f32 %v1732, 0.0
    %v1739 = vlaneseq
    %v1740 = vshrl.u32 %v1739, 7
    %v1741 = vsub.s32 3, %v1740
    %v1742 = vrot.slane %v187, %v1741
    %vm1743 = vcmask 523264
    %v1745 = vsel %vm1743, %v1735, 0
    %v1748 = vsel %vm1743, %v1736, 0
    %v1751 = vsel %vm1743, %v1737, 0
    %v1754 = vsel %vm1743, %v1738, 0
    %1756 = vmatprep.subr.mxu0 0.0
    %1757 = vmatpush1.msra.mxu0 0.0
    %1758 = vmatprep.subr.mxu0 0.0
    %1759 = vmatpush1.msra.mxu0 0.0
    %1760 = vmatprep.subr.mxu0 0.0
    %1761 = vmatpush1.msra.mxu0 0.0
    %1762 = vmatprep.subr.mxu0 0.0
    %1763 = vmatpush1.msra.mxu0 0.0
    %1764 = vmatprep.subr.mxu0 0.0
    %1765 = vmatpush1.msra.mxu0 0.0
    %1766 = vmatprep.subr.mxu0 0.0
    %1767 = vmatpush1.msra.mxu0 0.0
    %1768 = vmatprep.subr.mxu0 0.0
    %1769 = vmatpush1.msra.mxu0 0.0
    %1770 = vmatprep.subr.mxu0 0.0
    %1771 = vmatpush1.msra.mxu0 0.0
    %1772 = vmatprep.subr.mxu0 0.0
    %1773 = vmatpush1.msra.mxu0 %v186
    %1774 = vmatprep.subr.mxu0 0.0
    %1775 = vmatpush1.msra.mxu0 %v185
    %1776 = vmatprep.subr.mxu0 0.0
    %1777 = vmatpush1.msra.mxu0 %v184
    %1778 = vmatprep.subr.mxu0 0.0
    %1779 = vmatpush1.msra.mxu0 %v183
    %1780 = vmatprep.subr.mxu0 0.0
    %1781 = vmatpush1.msra.mxu0 %v182
    %1782 = vmatprep.subr.mxu0 0.0
    %1783 = vmatpush1.msra.mxu0 %v181
    %1784 = vmatprep.subr.mxu0 0.0
    %1785 = vmatpush1.msra.mxu0 %v180
    %1786 = vmatprep.subr.mxu0 0.0
    %1787 = vmatpush1.msra.mxu0 %v179
    %1788 = vmatprep.subr.mxu0 0.0
    %1789 = vmatpush2.msra.mxu0 0.0
    %1790 = vmatprep.subr.mxu0 0.0
    %1791 = vmatpush2.msra.mxu0 0.0
    %1792 = vmatprep.subr.mxu0 0.0
    %1793 = vmatpush2.msra.mxu0 0.0
    %1794 = vmatprep.subr.mxu0 0.0
    %1795 = vmatpush2.msra.mxu0 0.0
    %1796 = vmatprep.subr.mxu0 0.0
    %1797 = vmatpush2.msra.mxu0 0.0
    %1798 = vmatprep.subr.mxu0 0.0
    %1799 = vmatpush2.msra.mxu0 0.0
    %1800 = vmatprep.subr.mxu0 0.0
    %1801 = vmatpush2.msra.mxu0 0.0
    %1802 = vmatprep.subr.mxu0 0.0
    %1803 = vmatpush2.msra.mxu0 0.0
    %1804 = vmatprep.subr.mxu0 0.0
    %1805 = vmatpush2.msra.mxu0 0.0
    %1806 = vmatprep.subr.mxu0 0.0
    %1807 = vmatpush2.msra.mxu0 0.0
    %1808 = vmatprep.subr.mxu0 0.0
    %1809 = vmatpush2.msra.mxu0 0.0
    %1810 = vmatprep.subr.mxu0 0.0
    %1811 = vmatpush2.msra.mxu0 0.0
    %1812 = vmatprep.subr.mxu0 0.0
    %1813 = vmatpush2.msra.mxu0 0.0
    %1814 = vmatprep.subr.mxu0 0.0
    %1815 = vmatpush2.msra.mxu0 0.0
    %1816 = vmatprep.subr.mxu0 0.0
    %1817 = vmatpush2.msra.mxu0 0.0
    %1818 = vmatprep.subr.mxu0 0.0
    %1819 = vmatpush2.msra.mxu0 0.0
    %1820 = vmatprep.mubr.f32.mxu0 0.0
    %1821 = vmatmul.mubr.f32.gmra.mxu0 %v1745
    %v1822 = vpop.f32.mrf.mxu0
    %v1823 = vadd.f32 %v1742, %v1822
    %v1824 = vpop.f32.mrf.mxu0
    %1825 = vmatprep.mubr.f32.mxu0 0.0
    %1826 = vmatmul.mubr.f32.gmra.mxu0 %v1748
    %v1827 = vpop.f32.mrf.mxu0
    %v1828 = vadd.f32 %v1742, %v1827
    %v1829 = vpop.f32.mrf.mxu0
    %1830 = vmatprep.mubr.f32.mxu0 0.0
    %1831 = vmatmul.mubr.f32.gmra.mxu0 %v1751
    %v1832 = vpop.f32.mrf.mxu0
    %v1833 = vadd.f32 %v1742, %v1832
    %v1834 = vpop.f32.mrf.mxu0
    %1835 = vmatprep.mubr.f32.mxu0 0.0
    %1836 = vmatmul.mubr.f32.gmra.mxu0 %v1754
    %v1837 = vpop.f32.mrf.mxu0
    %v1838 = vadd.f32 %v1742, %v1837
    %v1839 = vpop.f32.mrf.mxu0
    %1840 = vdwg.mxu0
    %v1841 = vadd.f32 %v1630, %v1823
    %v1842 = vadd.f32 %v1631, %v1828
    %v1843 = vadd.f32 %v1632, %v1833
    %v1844 = vadd.f32 %v1633, %v1838
    %v1845 = vsel %vm192, %v1841, 0.0
    %1846 = vadd.xlane.f32.xlu0 %v1845
    %v1847 = vpop.xlane.xlu0 %1846
    %v1848 = vsel %vm192, %v1842, 0.0
    %1849 = vadd.xlane.f32.xlu0 %v1848
    %v1850 = vpop.xlane.xlu0 %1849
    %v1851 = vsel %vm192, %v1843, 0.0
    %1852 = vadd.xlane.f32.xlu0 %v1851
    %v1853 = vpop.xlane.xlu0 %1852
    %v1854 = vsel %vm192, %v1844, 0.0
    %1855 = vadd.xlane.f32.xlu0 %v1854
    %v1856 = vpop.xlane.xlu0 %1855
    %v1857 = vmul.f32 %v1847, %v1577
    %v1858 = vmul.f32 %v1850, %v1577
    %v1859 = vmul.f32 %v1853, %v1577
    %v1860 = vmul.f32 %v1856, %v1577
    %v1861 = vsub.f32 %v1841, %v1857
    %v1862 = vsub.f32 %v1842, %v1858
    %v1863 = vsub.f32 %v1843, %v1859
    %v1864 = vsub.f32 %v1844, %v1860
    %v1865 = vmul.f32 %v1861, %v1861
    %v1866 = vmul.f32 %v1862, %v1862
    %v1867 = vmul.f32 %v1863, %v1863
    %v1868 = vmul.f32 %v1864, %v1864
    %v1869 = vsel %vm192, %v1865, 0.0
    %1870 = vadd.xlane.f32.xlu0 %v1869
    %v1871 = vpop.xlane.xlu0 %1870
    %v1872 = vsel %vm192, %v1866, 0.0
    %1873 = vadd.xlane.f32.xlu0 %v1872
    %v1874 = vpop.xlane.xlu0 %1873
    %v1875 = vsel %vm192, %v1867, 0.0
    %1876 = vadd.xlane.f32.xlu0 %v1875
    %v1877 = vpop.xlane.xlu0 %1876
    %v1878 = vsel %vm192, %v1868, 0.0
    %1879 = vadd.xlane.f32.xlu0 %v1878
    %v1880 = vpop.xlane.xlu0 %1879
    %v1881 = vmul.f32 %v1871, %v1577
    %v1882 = vmul.f32 %v1874, %v1577
    %v1883 = vmul.f32 %v1877, %v1577
    %v1884 = vmul.f32 %v1880, %v1577
    %v1885 = vadd.f32 %v1881, 1e-05
    %v1886 = vadd.f32 %v1882, 1e-05
    %v1887 = vadd.f32 %v1883, 1e-05
    %v1888 = vadd.f32 %v1884, 1e-05
    %v1889 = vrsqrt.pop %v1885
    %v1890 = vrsqrt.pop %v1886
    %v1891 = vrsqrt.pop %v1887
    %v1892 = vrsqrt.pop %v1888
    %v1893 = vmul.f32 %v1861, %v1889
    %v1894 = vmul.f32 %v1862, %v1890
    %v1895 = vmul.f32 %v1863, %v1891
    %v1896 = vmul.f32 %v1864, %v1892
    %v1897 = vlaneseq
    %v1898 = vshrl.u32 %v1897, 7
    %v1899 = vsub.s32 6, %v1898
    %v1900 = vrot.slane %v187, %v1899
    %v1901 = vmul.f32 %v1893, %v1900
    %v1902 = vmul.f32 %v1894, %v1900
    %v1903 = vmul.f32 %v1895, %v1900
    %v1904 = vmul.f32 %v1896, %v1900
    %v1905 = vlaneseq
    %v1906 = vshrl.u32 %v1905, 7
    %v1907 = vsub.s32 7, %v1906
    %v1908 = vrot.slane %v187, %v1907
    %v1909 = vadd.f32 %v1901, %v1908
    %v1910 = vadd.f32 %v1902, %v1908
    %v1911 = vadd.f32 %v1903, %v1908
    %v1912 = vadd.f32 %v1904, %v1908
    %v1913 = vld [vmem:[#allocation6 + $0xf8] sm:$0xff]
    %v1914 = vld [vmem:[#allocation6 + $0x100] sm:$0xff]
    %v1915 = vld [vmem:[#allocation6 + $0x108] sm:$0xff]
    %v1916 = vld [vmem:[#allocation6 + $0x110] sm:$0xff]
    %v1917 = vld [vmem:[#allocation6 + $0x118] sm:$0xff]
    %v1918 = vld [vmem:[#allocation6 + $0x120] sm:$0xff]
    %v1919 = vld [vmem:[#allocation6 + $0x128] sm:$0xff]
    %v1920 = vld [vmem:[#allocation6 + $0x130] sm:$0xff]
    %v1921 = vld [vmem:[#allocation6 + $0x138] sm:$0xff]
    %v1922 = vld [vmem:[#allocation6 + $0x140] sm:$0xff]
    %v1923 = vld [vmem:[#allocation6 + $0x148] sm:$0xff]
    %v1924 = vld [vmem:[#allocation6 + $0x150] sm:$0xff]
    %v1925 = vld [vmem:[#allocation6 + $0x158] sm:$0xff]
    %v1926 = vld [vmem:[#allocation6 + $0x160] sm:$0xff]
    %v1927 = vld [vmem:[#allocation6 + $0x168] sm:$0xff]
    %v1928 = vld [vmem:[#allocation6 + $0x170] sm:$0xff]
    %v1929 = vld [vmem:[#allocation6 + $0x178] sm:$0xff]
    %v1930 = vld [vmem:[#allocation6 + $0x180] sm:$0xff]
    %v1931 = vld [vmem:[#allocation6 + $0x188] sm:$0xff]
    %v1932 = vld [vmem:[#allocation6 + $0x190] sm:$0xff]
    %v1933 = vld [vmem:[#allocation6 + $0x198] sm:$0xff]
    %v1934 = vlaneseq
    %v1935 = vshrl.u32 %v1934, 7
    %v1936 = vsub.s32 0, %v1935
    %v1937 = vrot.slane %v1933, %v1936
    %v1939 = vsel %vm192, %v1909, 0
    %v1942 = vsel %vm192, %v1910, 0
    %v1945 = vsel %vm192, %v1911, 0
    %v1948 = vsel %vm192, %v1912, 0
    %1950 = vmatprep.subr.mxu0 0.0
    %1951 = vmatpush1.msra.mxu0 0.0
    %1952 = vmatprep.subr.mxu0 0.0
    %1953 = vmatpush1.msra.mxu0 0.0
    %1954 = vmatprep.subr.mxu0 0.0
    %1955 = vmatpush1.msra.mxu0 0.0
    %1956 = vmatprep.subr.mxu0 0.0
    %1957 = vmatpush1.msra.mxu0 0.0
    %1958 = vmatprep.subr.mxu0 0.0
    %1959 = vmatpush1.msra.mxu0 0.0
    %1960 = vmatprep.subr.mxu0 0.0
    %1961 = vmatpush1.msra.mxu0 0.0
    %1962 = vmatprep.subr.mxu0 0.0
    %1963 = vmatpush1.msra.mxu0 0.0
    %1964 = vmatprep.subr.mxu0 0.0
    %1965 = vmatpush1.msra.mxu0 0.0
    %1966 = vmatprep.subr.mxu0 0.0
    %1967 = vmatpush1.msra.mxu0 0.0
    %1968 = vmatprep.subr.mxu0 0.0
    %1969 = vmatpush1.msra.mxu0 0.0
    %1970 = vmatprep.subr.mxu0 0.0
    %1971 = vmatpush1.msra.mxu0 0.0
    %1972 = vmatprep.subr.mxu0 0.0
    %1973 = vmatpush1.msra.mxu0 0.0
    %1974 = vmatprep.subr.mxu0 0.0
    %1975 = vmatpush1.msra.mxu0 %v1916
    %1976 = vmatprep.subr.mxu0 0.0
    %1977 = vmatpush1.msra.mxu0 %v1915
    %1978 = vmatprep.subr.mxu0 0.0
    %1979 = vmatpush1.msra.mxu0 %v1914
    %1980 = vmatprep.subr.mxu0 0.0
    %1981 = vmatpush1.msra.mxu0 %v1913
    %1982 = vmatprep.subr.mxu0 0.0
    %1983 = vmatpush2.msra.mxu0 0.0
    %1984 = vmatprep.subr.mxu0 0.0
    %1985 = vmatpush2.msra.mxu0 0.0
    %1986 = vmatprep.subr.mxu0 0.0
    %1987 = vmatpush2.msra.mxu0 0.0
    %1988 = vmatprep.subr.mxu0 0.0
    %1989 = vmatpush2.msra.mxu0 0.0
    %1990 = vmatprep.subr.mxu0 0.0
    %1991 = vmatpush2.msra.mxu0 0.0
    %1992 = vmatprep.subr.mxu0 0.0
    %1993 = vmatpush2.msra.mxu0 0.0
    %1994 = vmatprep.subr.mxu0 0.0
    %1995 = vmatpush2.msra.mxu0 0.0
    %1996 = vmatprep.subr.mxu0 0.0
    %1997 = vmatpush2.msra.mxu0 0.0
    %1998 = vmatprep.subr.mxu0 0.0
    %1999 = vmatpush2.msra.mxu0 0.0
    %2000 = vmatprep.subr.mxu0 0.0
    %2001 = vmatpush2.msra.mxu0 0.0
    %2002 = vmatprep.subr.mxu0 0.0
    %2003 = vmatpush2.msra.mxu0 0.0
    %2004 = vmatprep.subr.mxu0 0.0
    %2005 = vmatpush2.msra.mxu0 0.0
    %2006 = vmatprep.subr.mxu0 0.0
    %2007 = vmatpush2.msra.mxu0 0.0
    %2008 = vmatprep.subr.mxu0 0.0
    %2009 = vmatpush2.msra.mxu0 0.0
    %2010 = vmatprep.subr.mxu0 0.0
    %2011 = vmatpush2.msra.mxu0 0.0
    %2012 = vmatprep.subr.mxu0 0.0
    %2013 = vmatpush2.msra.mxu0 0.0
    %2014 = vmatprep.mubr.f32.mxu0 0.0
    %2015 = vmatmul.mubr.f32.gmra.mxu0 %v1939
    %v2016 = vpop.f32.mrf.mxu0
    %v2017 = vadd.f32 %v1937, %v2016
    %v2018 = vpop.f32.mrf.mxu0
    %2019 = vmatprep.mubr.f32.mxu0 0.0
    %2020 = vmatmul.mubr.f32.gmra.mxu0 %v1942
    %v2021 = vpop.f32.mrf.mxu0
    %v2022 = vadd.f32 %v1937, %v2021
    %v2023 = vpop.f32.mrf.mxu0
    %2024 = vmatprep.mubr.f32.mxu0 0.0
    %2025 = vmatmul.mubr.f32.gmra.mxu0 %v1945
    %v2026 = vpop.f32.mrf.mxu0
    %v2027 = vadd.f32 %v1937, %v2026
    %v2028 = vpop.f32.mrf.mxu0
    %2029 = vmatprep.mubr.f32.mxu0 0.0
    %2030 = vmatmul.mubr.f32.gmra.mxu0 %v1948
    %v2031 = vpop.f32.mrf.mxu0
    %v2032 = vadd.f32 %v1937, %v2031
    %v2033 = vpop.f32.mrf.mxu0
    %2034 = vdwg.mxu0
    %2039 = vrot.lane.b32.xlu0 %v2017, 96
    %v2040 = vpop.permute.xlu0 %2039
    %2041 = vrot.lane.b32.xlu0 %v2022, 96
    %v2042 = vpop.permute.xlu0 %2041
    %2043 = vrot.lane.b32.xlu0 %v2027, 96
    %v2044 = vpop.permute.xlu0 %2043
    %2045 = vrot.lane.b32.xlu0 %v2032, 96
    %v2046 = vpop.permute.xlu0 %2045
    %v2047 = vsel %vm302, %v2017, 0
    %v2049 = vsel %vm302, %v2022, 0
    %v2051 = vsel %vm302, %v2027, 0
    %v2053 = vsel %vm302, %v2032, 0
    %v2055 = vsel %vm302, %v2040, 0
    %v2057 = vsel %vm302, %v2042, 0
    %v2059 = vsel %vm302, %v2044, 0
    %v2061 = vsel %vm302, %v2046, 0
    %2063 = vmatprep.subr.mxu0 0.0
    %2064 = vmatpush1.xpose.msra.mxu0 0.0
    %2065 = vmatprep.subr.mxu0 0.0
    %2066 = vmatpush1.xpose.msra.mxu0 0.0
    %2067 = vmatprep.subr.mxu0 0.0
    %2068 = vmatpush1.xpose.msra.mxu0 0.0
    %2069 = vmatprep.subr.mxu0 0.0
    %2070 = vmatpush1.xpose.msra.mxu0 0.0
    %2071 = vmatprep.subr.mxu0 0.0
    %2072 = vmatpush1.xpose.msra.mxu0 0.0
    %2073 = vmatprep.subr.mxu0 0.0
    %2074 = vmatpush1.xpose.msra.mxu0 0.0
    %2075 = vmatprep.subr.mxu0 0.0
    %2076 = vmatpush1.xpose.msra.mxu0 0.0
    %2077 = vmatprep.subr.mxu0 0.0
    %2078 = vmatpush1.xpose.msra.mxu0 0.0
    %2079 = vmatprep.subr.mxu0 0.0
    %2080 = vmatpush1.xpose.msra.mxu0 0.0
    %2081 = vmatprep.subr.mxu0 0.0
    %2082 = vmatpush1.xpose.msra.mxu0 0.0
    %2083 = vmatprep.subr.mxu0 0.0
    %2084 = vmatpush1.xpose.msra.mxu0 0.0
    %2085 = vmatprep.subr.mxu0 0.0
    %2086 = vmatpush1.xpose.msra.mxu0 0.0
    %2087 = vmatprep.subr.mxu0 0.0
    %2088 = vmatpush1.xpose.msra.mxu0 %v2061
    %2089 = vmatprep.subr.mxu0 0.0
    %2090 = vmatpush1.xpose.msra.mxu0 %v2059
    %2091 = vmatprep.subr.mxu0 0.0
    %2092 = vmatpush1.xpose.msra.mxu0 %v2057
    %2093 = vmatprep.subr.mxu0 0.0
    %2094 = vmatpush1.xpose.msra.mxu0 %v2055
    %2095 = vmatprep.subr.mxu0 0.0
    %2096 = vmatpush2.xpose.msra.mxu0 0.0
    %2097 = vmatprep.subr.mxu0 0.0
    %2098 = vmatpush2.xpose.msra.mxu0 0.0
    %2099 = vmatprep.subr.mxu0 0.0
    %2100 = vmatpush2.xpose.msra.mxu0 0.0
    %2101 = vmatprep.subr.mxu0 0.0
    %2102 = vmatpush2.xpose.msra.mxu0 0.0
    %2103 = vmatprep.subr.mxu0 0.0
    %2104 = vmatpush2.xpose.msra.mxu0 0.0
    %2105 = vmatprep.subr.mxu0 0.0
    %2106 = vmatpush2.xpose.msra.mxu0 0.0
    %2107 = vmatprep.subr.mxu0 0.0
    %2108 = vmatpush2.xpose.msra.mxu0 0.0
    %2109 = vmatprep.subr.mxu0 0.0
    %2110 = vmatpush2.xpose.msra.mxu0 0.0
    %2111 = vmatprep.subr.mxu0 0.0
    %2112 = vmatpush2.xpose.msra.mxu0 0.0
    %2113 = vmatprep.subr.mxu0 0.0
    %2114 = vmatpush2.xpose.msra.mxu0 0.0
    %2115 = vmatprep.subr.mxu0 0.0
    %2116 = vmatpush2.xpose.msra.mxu0 0.0
    %2117 = vmatprep.subr.mxu0 0.0
    %2118 = vmatpush2.xpose.msra.mxu0 0.0
    %2119 = vmatprep.subr.mxu0 0.0
    %2120 = vmatpush2.xpose.msra.mxu0 0.0
    %2121 = vmatprep.subr.mxu0 0.0
    %2122 = vmatpush2.xpose.msra.mxu0 0.0
    %2123 = vmatprep.subr.mxu0 0.0
    %2124 = vmatpush2.xpose.msra.mxu0 0.0
    %2125 = vmatprep.subr.mxu0 0.0
    %2126 = vmatpush2.xpose.msra.mxu0 0.0
    %2127 = vmatprep.mubr.f32.mxu0 0.0
    %2128 = vmatmul.mubr.f32.gmra.mxu0 %v2047
    %v2129 = vpop.f32.mrf.mxu0
    %v2130 = vadd.f32 0.0, %v2129
    %v2131 = vpop.f32.mrf.mxu0
    %2132 = vmatprep.mubr.f32.mxu0 0.0
    %2133 = vmatmul.mubr.f32.gmra.mxu0 %v2049
    %v2134 = vpop.f32.mrf.mxu0
    %v2135 = vadd.f32 0.0, %v2134
    %v2136 = vpop.f32.mrf.mxu0
    %2137 = vmatprep.mubr.f32.mxu0 0.0
    %2138 = vmatmul.mubr.f32.gmra.mxu0 %v2051
    %v2139 = vpop.f32.mrf.mxu0
    %v2140 = vadd.f32 0.0, %v2139
    %v2141 = vpop.f32.mrf.mxu0
    %2142 = vmatprep.mubr.f32.mxu0 0.0
    %2143 = vmatmul.mubr.f32.gmra.mxu0 %v2053
    %v2144 = vpop.f32.mrf.mxu0
    %v2145 = vadd.f32 0.0, %v2144
    %v2146 = vpop.f32.mrf.mxu0
    %2147 = vdwg.mxu0
    %v2148 = vmul.f32 %v2130, 0.35355338
    %v2149 = vmul.f32 %v2135, 0.35355338
    %v2150 = vmul.f32 %v2140, 0.35355338
    %v2151 = vmul.f32 %v2145, 0.35355338
    %v2152 = vadd.f32 %v2148, %v65
    %v2153 = vadd.f32 %v2149, %v66
    %v2154 = vadd.f32 %v2150, %v67
    %v2155 = vadd.f32 %v2151, %v68
    %v2156 = vsel %vm192, %v2152, -inf
    %2157 = vmax.xlane.f32.xlu0 %v2156
    %v2158 = vpop.xlane.xlu0 %2157
    %v2159 = vsel %vm192, %v2153, -inf
    %2160 = vmax.xlane.f32.xlu0 %v2159
    %v2161 = vpop.xlane.xlu0 %2160
    %v2162 = vsel %vm192, %v2154, -inf
    %2163 = vmax.xlane.f32.xlu0 %v2162
    %v2164 = vpop.xlane.xlu0 %2163
    %v2165 = vsel %vm192, %v2155, -inf
    %2166 = vmax.xlane.f32.xlu0 %v2165
    %v2167 = vpop.xlane.xlu0 %2166
    %v2168 = vsub.f32 %v2152, %v2158
    %v2169 = vsub.f32 %v2153, %v2161
    %v2170 = vsub.f32 %v2154, %v2164
    %v2171 = vsub.f32 %v2155, %v2167
    %v2172 = vmul.f32 %v2168, 1.442695
    %v2173 = vpow.pop %v2172
    %v2174 = vmul.f32 %v2169, 1.442695
    %v2175 = vpow.pop %v2174
    %v2176 = vmul.f32 %v2170, 1.442695
    %v2177 = vpow.pop %v2176
    %v2178 = vmul.f32 %v2171, 1.442695
    %v2179 = vpow.pop %v2178
    %v2180 = vsel %vm192, %v2173, 0.0
    %2181 = vadd.xlane.f32.xlu0 %v2180
    %v2182 = vpop.xlane.xlu0 %2181
    %v2183 = vsel %vm192, %v2175, 0.0
    %2184 = vadd.xlane.f32.xlu0 %v2183
    %v2185 = vpop.xlane.xlu0 %2184
    %v2186 = vsel %vm192, %v2177, 0.0
    %2187 = vadd.xlane.f32.xlu0 %v2186
    %v2188 = vpop.xlane.xlu0 %2187
    %v2189 = vsel %vm192, %v2179, 0.0
    %2190 = vadd.xlane.f32.xlu0 %v2189
    %v2191 = vpop.xlane.xlu0 %2190
    %v2192 = vrcp.pop %v2182
    %v2193 = vmul.f32 %v2173, %v2192
    %v2194 = vrcp.pop %v2185
    %v2195 = vmul.f32 %v2175, %v2194
    %v2196 = vrcp.pop %v2188
    %v2197 = vmul.f32 %v2177, %v2196
    %v2198 = vrcp.pop %v2191
    %v2199 = vmul.f32 %v2179, %v2198
    %2200 = vrot.lane.b32.xlu0 %v2017, 64
    %v2201 = vpop.permute.xlu0 %2200
    %2202 = vrot.lane.b32.xlu0 %v2022, 64
    %v2203 = vpop.permute.xlu0 %2202
    %2204 = vrot.lane.b32.xlu0 %v2027, 64
    %v2205 = vpop.permute.xlu0 %2204
    %2206 = vrot.lane.b32.xlu0 %v2032, 64
    %v2207 = vpop.permute.xlu0 %2206
    %v2213 = vsel %vm192, %v2193, 0
    %v2216 = vsel %vm192, %v2195, 0
    %v2219 = vsel %vm192, %v2197, 0
    %v2222 = vsel %vm192, %v2199, 0
    %2224 = vmatprep.subr.mxu0 0.0
    %2225 = vmatpush1.msra.mxu0 0.0
    %2226 = vmatprep.subr.mxu0 0.0
    %2227 = vmatpush1.msra.mxu0 0.0
    %2228 = vmatprep.subr.mxu0 0.0
    %2229 = vmatpush1.msra.mxu0 0.0
    %2230 = vmatprep.subr.mxu0 0.0
    %2231 = vmatpush1.msra.mxu0 0.0
    %2232 = vmatprep.subr.mxu0 0.0
    %2233 = vmatpush1.msra.mxu0 0.0
    %2234 = vmatprep.subr.mxu0 0.0
    %2235 = vmatpush1.msra.mxu0 0.0
    %2236 = vmatprep.subr.mxu0 0.0
    %2237 = vmatpush1.msra.mxu0 0.0
    %2238 = vmatprep.subr.mxu0 0.0
    %2239 = vmatpush1.msra.mxu0 0.0
    %2240 = vmatprep.subr.mxu0 0.0
    %2241 = vmatpush1.msra.mxu0 0.0
    %2242 = vmatprep.subr.mxu0 0.0
    %2243 = vmatpush1.msra.mxu0 0.0
    %2244 = vmatprep.subr.mxu0 0.0
    %2245 = vmatpush1.msra.mxu0 0.0
    %2246 = vmatprep.subr.mxu0 0.0
    %2247 = vmatpush1.msra.mxu0 0.0
    %2248 = vmatprep.subr.mxu0 0.0
    %2249 = vmatpush1.msra.mxu0 %v2207
    %2250 = vmatprep.subr.mxu0 0.0
    %2251 = vmatpush1.msra.mxu0 %v2205
    %2252 = vmatprep.subr.mxu0 0.0
    %2253 = vmatpush1.msra.mxu0 %v2203
    %2254 = vmatprep.subr.mxu0 0.0
    %2255 = vmatpush1.msra.mxu0 %v2201
    %2256 = vmatprep.subr.mxu0 0.0
    %2257 = vmatpush2.msra.mxu0 0.0
    %2258 = vmatprep.subr.mxu0 0.0
    %2259 = vmatpush2.msra.mxu0 0.0
    %2260 = vmatprep.subr.mxu0 0.0
    %2261 = vmatpush2.msra.mxu0 0.0
    %2262 = vmatprep.subr.mxu0 0.0
    %2263 = vmatpush2.msra.mxu0 0.0
    %2264 = vmatprep.subr.mxu0 0.0
    %2265 = vmatpush2.msra.mxu0 0.0
    %2266 = vmatprep.subr.mxu0 0.0
    %2267 = vmatpush2.msra.mxu0 0.0
    %2268 = vmatprep.subr.mxu0 0.0
    %2269 = vmatpush2.msra.mxu0 0.0
    %2270 = vmatprep.subr.mxu0 0.0
    %2271 = vmatpush2.msra.mxu0 0.0
    %2272 = vmatprep.subr.mxu0 0.0
    %2273 = vmatpush2.msra.mxu0 0.0
    %2274 = vmatprep.subr.mxu0 0.0
    %2275 = vmatpush2.msra.mxu0 0.0
    %2276 = vmatprep.subr.mxu0 0.0
    %2277 = vmatpush2.msra.mxu0 0.0
    %2278 = vmatprep.subr.mxu0 0.0
    %2279 = vmatpush2.msra.mxu0 0.0
    %2280 = vmatprep.subr.mxu0 0.0
    %2281 = vmatpush2.msra.mxu0 0.0
    %2282 = vmatprep.subr.mxu0 0.0
    %2283 = vmatpush2.msra.mxu0 0.0
    %2284 = vmatprep.subr.mxu0 0.0
    %2285 = vmatpush2.msra.mxu0 0.0
    %2286 = vmatprep.subr.mxu0 0.0
    %2287 = vmatpush2.msra.mxu0 0.0
    %2288 = vmatprep.mubr.f32.mxu0 0.0
    %2289 = vmatmul.mubr.f32.gmra.mxu0 %v2213
    %v2290 = vpop.f32.mrf.mxu0
    %v2291 = vadd.f32 0.0, %v2290
    %v2292 = vpop.f32.mrf.mxu0
    %2293 = vmatprep.mubr.f32.mxu0 0.0
    %2294 = vmatmul.mubr.f32.gmra.mxu0 %v2216
    %v2295 = vpop.f32.mrf.mxu0
    %v2296 = vadd.f32 0.0, %v2295
    %v2297 = vpop.f32.mrf.mxu0
    %2298 = vmatprep.mubr.f32.mxu0 0.0
    %2299 = vmatmul.mubr.f32.gmra.mxu0 %v2219
    %v2300 = vpop.f32.mrf.mxu0
    %v2301 = vadd.f32 0.0, %v2300
    %v2302 = vpop.f32.mrf.mxu0
    %2303 = vmatprep.mubr.f32.mxu0 0.0
    %2304 = vmatmul.mubr.f32.gmra.mxu0 %v2222
    %v2305 = vpop.f32.mrf.mxu0
    %v2306 = vadd.f32 0.0, %v2305
    %v2307 = vpop.f32.mrf.mxu0
    %2308 = vdwg.mxu0
    %2309 = vrot.lane.b32.xlu0 %v2017, 120
    %v2310 = vpop.permute.xlu0 %2309
    %2311 = vrot.lane.b32.xlu0 %v2022, 120
    %v2312 = vpop.permute.xlu0 %2311
    %2313 = vrot.lane.b32.xlu0 %v2027, 120
    %v2314 = vpop.permute.xlu0 %2313
    %2315 = vrot.lane.b32.xlu0 %v2032, 120
    %v2316 = vpop.permute.xlu0 %2315
    %2317 = vrot.lane.b32.xlu0 %v2017, 88
    %v2318 = vpop.permute.xlu0 %2317
    %2319 = vrot.lane.b32.xlu0 %v2022, 88
    %v2320 = vpop.permute.xlu0 %2319
    %2321 = vrot.lane.b32.xlu0 %v2027, 88
    %v2322 = vpop.permute.xlu0 %2321
    %2323 = vrot.lane.b32.xlu0 %v2032, 88
    %v2324 = vpop.permute.xlu0 %2323
    %v2325 = vsel %vm302, %v2310, 0
    %v2327 = vsel %vm302, %v2312, 0
    %v2329 = vsel %vm302, %v2314, 0
    %v2331 = vsel %vm302, %v2316, 0
    %v2333 = vsel %vm302, %v2318, 0
    %v2335 = vsel %vm302, %v2320, 0
    %v2337 = vsel %vm302, %v2322, 0
    %v2339 = vsel %vm302, %v2324, 0
    %2341 = vmatprep.subr.mxu0 0.0
    %2342 = vmatpush1.xpose.msra.mxu0 0.0
    %2343 = vmatprep.subr.mxu0 0.0
    %2344 = vmatpush1.xpose.msra.mxu0 0.0
    %2345 = vmatprep.subr.mxu0 0.0
    %2346 = vmatpush1.xpose.msra.mxu0 0.0
    %2347 = vmatprep.subr.mxu0 0.0
    %2348 = vmatpush1.xpose.msra.mxu0 0.0
    %2349 = vmatprep.subr.mxu0 0.0
    %2350 = vmatpush1.xpose.msra.mxu0 0.0
    %2351 = vmatprep.subr.mxu0 0.0
    %2352 = vmatpush1.xpose.msra.mxu0 0.0
    %2353 = vmatprep.subr.mxu0 0.0
    %2354 = vmatpush1.xpose.msra.mxu0 0.0
    %2355 = vmatprep.subr.mxu0 0.0
    %2356 = vmatpush1.xpose.msra.mxu0 0.0
    %2357 = vmatprep.subr.mxu0 0.0
    %2358 = vmatpush1.xpose.msra.mxu0 0.0
    %2359 = vmatprep.subr.mxu0 0.0
    %2360 = vmatpush1.xpose.msra.mxu0 0.0
    %2361 = vmatprep.subr.mxu0 0.0
    %2362 = vmatpush1.xpose.msra.mxu0 0.0
    %2363 = vmatprep.subr.mxu0 0.0
    %2364 = vmatpush1.xpose.msra.mxu0 0.0
    %2365 = vmatprep.subr.mxu0 0.0
    %2366 = vmatpush1.xpose.msra.mxu0 %v2339
    %2367 = vmatprep.subr.mxu0 0.0
    %2368 = vmatpush1.xpose.msra.mxu0 %v2337
    %2369 = vmatprep.subr.mxu0 0.0
    %2370 = vmatpush1.xpose.msra.mxu0 %v2335
    %2371 = vmatprep.subr.mxu0 0.0
    %2372 = vmatpush1.xpose.msra.mxu0 %v2333
    %2373 = vmatprep.subr.mxu0 0.0
    %2374 = vmatpush2.xpose.msra.mxu0 0.0
    %2375 = vmatprep.subr.mxu0 0.0
    %2376 = vmatpush2.xpose.msra.mxu0 0.0
    %2377 = vmatprep.subr.mxu0 0.0
    %2378 = vmatpush2.xpose.msra.mxu0 0.0
    %2379 = vmatprep.subr.mxu0 0.0
    %2380 = vmatpush2.xpose.msra.mxu0 0.0
    %2381 = vmatprep.subr.mxu0 0.0
    %2382 = vmatpush2.xpose.msra.mxu0 0.0
    %2383 = vmatprep.subr.mxu0 0.0
    %2384 = vmatpush2.xpose.msra.mxu0 0.0
    %2385 = vmatprep.subr.mxu0 0.0
    %2386 = vmatpush2.xpose.msra.mxu0 0.0
    %2387 = vmatprep.subr.mxu0 0.0
    %2388 = vmatpush2.xpose.msra.mxu0 0.0
    %2389 = vmatprep.subr.mxu0 0.0
    %2390 = vmatpush2.xpose.msra.mxu0 0.0
    %2391 = vmatprep.subr.mxu0 0.0
    %2392 = vmatpush2.xpose.msra.mxu0 0.0
    %2393 = vmatprep.subr.mxu0 0.0
    %2394 = vmatpush2.xpose.msra.mxu0 0.0
    %2395 = vmatprep.subr.mxu0 0.0
    %2396 = vmatpush2.xpose.msra.mxu0 0.0
    %2397 = vmatprep.subr.mxu0 0.0
    %2398 = vmatpush2.xpose.msra.mxu0 0.0
    %2399 = vmatprep.subr.mxu0 0.0
    %2400 = vmatpush2.xpose.msra.mxu0 0.0
    %2401 = vmatprep.subr.mxu0 0.0
    %2402 = vmatpush2.xpose.msra.mxu0 0.0
    %2403 = vmatprep.subr.mxu0 0.0
    %2404 = vmatpush2.xpose.msra.mxu0 0.0
    %2405 = vmatprep.mubr.f32.mxu0 0.0
    %2406 = vmatmul.mubr.f32.gmra.mxu0 %v2325
    %v2407 = vpop.f32.mrf.mxu0
    %v2408 = vadd.f32 0.0, %v2407
    %v2409 = vpop.f32.mrf.mxu0
    %2410 = vmatprep.mubr.f32.mxu0 0.0
    %2411 = vmatmul.mubr.f32.gmra.mxu0 %v2327
    %v2412 = vpop.f32.mrf.mxu0
    %v2413 = vadd.f32 0.0, %v2412
    %v2414 = vpop.f32.mrf.mxu0
    %2415 = vmatprep.mubr.f32.mxu0 0.0
    %2416 = vmatmul.mubr.f32.gmra.mxu0 %v2329
    %v2417 = vpop.f32.mrf.mxu0
    %v2418 = vadd.f32 0.0, %v2417
    %v2419 = vpop.f32.mrf.mxu0
    %2420 = vmatprep.mubr.f32.mxu0 0.0
    %2421 = vmatmul.mubr.f32.gmra.mxu0 %v2331
    %v2422 = vpop.f32.mrf.mxu0
    %v2423 = vadd.f32 0.0, %v2422
    %v2424 = vpop.f32.mrf.mxu0
    %2425 = vdwg.mxu0
    %v2426 = vmul.f32 %v2408, 0.35355338
    %v2427 = vmul.f32 %v2413, 0.35355338
    %v2428 = vmul.f32 %v2418, 0.35355338
    %v2429 = vmul.f32 %v2423, 0.35355338
    %v2430 = vadd.f32 %v2426, %v65
    %v2431 = vadd.f32 %v2427, %v66
    %v2432 = vadd.f32 %v2428, %v67
    %v2433 = vadd.f32 %v2429, %v68
    %v2434 = vsel %vm192, %v2430, -inf
    %2435 = vmax.xlane.f32.xlu0 %v2434
    %v2436 = vpop.xlane.xlu0 %2435
    %v2437 = vsel %vm192, %v2431, -inf
    %2438 = vmax.xlane.f32.xlu0 %v2437
    %v2439 = vpop.xlane.xlu0 %2438
    %v2440 = vsel %vm192, %v2432, -inf
    %2441 = vmax.xlane.f32.xlu0 %v2440
    %v2442 = vpop.xlane.xlu0 %2441
    %v2443 = vsel %vm192, %v2433, -inf
    %2444 = vmax.xlane.f32.xlu0 %v2443
    %v2445 = vpop.xlane.xlu0 %2444
    %v2446 = vsub.f32 %v2430, %v2436
    %v2447 = vsub.f32 %v2431, %v2439
    %v2448 = vsub.f32 %v2432, %v2442
    %v2449 = vsub.f32 %v2433, %v2445
    %v2450 = vmul.f32 %v2446, 1.442695
    %v2451 = vpow.pop %v2450
    %v2452 = vmul.f32 %v2447, 1.442695
    %v2453 = vpow.pop %v2452
    %v2454 = vmul.f32 %v2448, 1.442695
    %v2455 = vpow.pop %v2454
    %v2456 = vmul.f32 %v2449, 1.442695
    %v2457 = vpow.pop %v2456
    %v2458 = vsel %vm192, %v2451, 0.0
    %2459 = vadd.xlane.f32.xlu0 %v2458
    %v2460 = vpop.xlane.xlu0 %2459
    %v2461 = vsel %vm192, %v2453, 0.0
    %2462 = vadd.xlane.f32.xlu0 %v2461
    %v2463 = vpop.xlane.xlu0 %2462
    %v2464 = vsel %vm192, %v2455, 0.0
    %2465 = vadd.xlane.f32.xlu0 %v2464
    %v2466 = vpop.xlane.xlu0 %2465
    %v2467 = vsel %vm192, %v2457, 0.0
    %2468 = vadd.xlane.f32.xlu0 %v2467
    %v2469 = vpop.xlane.xlu0 %2468
    %v2470 = vrcp.pop %v2460
    %v2471 = vmul.f32 %v2451, %v2470
    %v2472 = vrcp.pop %v2463
    %v2473 = vmul.f32 %v2453, %v2472
    %v2474 = vrcp.pop %v2466
    %v2475 = vmul.f32 %v2455, %v2474
    %v2476 = vrcp.pop %v2469
    %v2477 = vmul.f32 %v2457, %v2476
    %2478 = vrot.lane.b32.xlu0 %v2017, 56
    %v2479 = vpop.permute.xlu0 %2478
    %2480 = vrot.lane.b32.xlu0 %v2022, 56
    %v2481 = vpop.permute.xlu0 %2480
    %2482 = vrot.lane.b32.xlu0 %v2027, 56
    %v2483 = vpop.permute.xlu0 %2482
    %2484 = vrot.lane.b32.xlu0 %v2032, 56
    %v2485 = vpop.permute.xlu0 %2484
    %v2491 = vsel %vm192, %v2471, 0
    %v2494 = vsel %vm192, %v2473, 0
    %v2497 = vsel %vm192, %v2475, 0
    %v2500 = vsel %vm192, %v2477, 0
    %2502 = vmatprep.subr.mxu0 0.0
    %2503 = vmatpush1.msra.mxu0 0.0
    %2504 = vmatprep.subr.mxu0 0.0
    %2505 = vmatpush1.msra.mxu0 0.0
    %2506 = vmatprep.subr.mxu0 0.0
    %2507 = vmatpush1.msra.mxu0 0.0
    %2508 = vmatprep.subr.mxu0 0.0
    %2509 = vmatpush1.msra.mxu0 0.0
    %2510 = vmatprep.subr.mxu0 0.0
    %2511 = vmatpush1.msra.mxu0 0.0
    %2512 = vmatprep.subr.mxu0 0.0
    %2513 = vmatpush1.msra.mxu0 0.0
    %2514 = vmatprep.subr.mxu0 0.0
    %2515 = vmatpush1.msra.mxu0 0.0
    %2516 = vmatprep.subr.mxu0 0.0
    %2517 = vmatpush1.msra.mxu0 0.0
    %2518 = vmatprep.subr.mxu0 0.0
    %2519 = vmatpush1.msra.mxu0 0.0
    %2520 = vmatprep.subr.mxu0 0.0
    %2521 = vmatpush1.msra.mxu0 0.0
    %2522 = vmatprep.subr.mxu0 0.0
    %2523 = vmatpush1.msra.mxu0 0.0
    %2524 = vmatprep.subr.mxu0 0.0
    %2525 = vmatpush1.msra.mxu0 0.0
    %2526 = vmatprep.subr.mxu0 0.0
    %2527 = vmatpush1.msra.mxu0 %v2485
    %2528 = vmatprep.subr.mxu0 0.0
    %2529 = vmatpush1.msra.mxu0 %v2483
    %2530 = vmatprep.subr.mxu0 0.0
    %2531 = vmatpush1.msra.mxu0 %v2481
    %2532 = vmatprep.subr.mxu0 0.0
    %2533 = vmatpush1.msra.mxu0 %v2479
    %2534 = vmatprep.subr.mxu0 0.0
    %2535 = vmatpush2.msra.mxu0 0.0
    %2536 = vmatprep.subr.mxu0 0.0
    %2537 = vmatpush2.msra.mxu0 0.0
    %2538 = vmatprep.subr.mxu0 0.0
    %2539 = vmatpush2.msra.mxu0 0.0
    %2540 = vmatprep.subr.mxu0 0.0
    %2541 = vmatpush2.msra.mxu0 0.0
    %2542 = vmatprep.subr.mxu0 0.0
    %2543 = vmatpush2.msra.mxu0 0.0
    %2544 = vmatprep.subr.mxu0 0.0
    %2545 = vmatpush2.msra.mxu0 0.0
    %2546 = vmatprep.subr.mxu0 0.0
    %2547 = vmatpush2.msra.mxu0 0.0
    %2548 = vmatprep.subr.mxu0 0.0
    %2549 = vmatpush2.msra.mxu0 0.0
    %2550 = vmatprep.subr.mxu0 0.0
    %2551 = vmatpush2.msra.mxu0 0.0
    %2552 = vmatprep.subr.mxu0 0.0
    %2553 = vmatpush2.msra.mxu0 0.0
    %2554 = vmatprep.subr.mxu0 0.0
    %2555 = vmatpush2.msra.mxu0 0.0
    %2556 = vmatprep.subr.mxu0 0.0
    %2557 = vmatpush2.msra.mxu0 0.0
    %2558 = vmatprep.subr.mxu0 0.0
    %2559 = vmatpush2.msra.mxu0 0.0
    %2560 = vmatprep.subr.mxu0 0.0
    %2561 = vmatpush2.msra.mxu0 0.0
    %2562 = vmatprep.subr.mxu0 0.0
    %2563 = vmatpush2.msra.mxu0 0.0
    %2564 = vmatprep.subr.mxu0 0.0
    %2565 = vmatpush2.msra.mxu0 0.0
    %2566 = vmatprep.mubr.f32.mxu0 0.0
    %2567 = vmatmul.mubr.f32.gmra.mxu0 %v2491
    %v2568 = vpop.f32.mrf.mxu0
    %v2569 = vadd.f32 0.0, %v2568
    %v2570 = vpop.f32.mrf.mxu0
    %2571 = vmatprep.mubr.f32.mxu0 0.0
    %2572 = vmatmul.mubr.f32.gmra.mxu0 %v2494
    %v2573 = vpop.f32.mrf.mxu0
    %v2574 = vadd.f32 0.0, %v2573
    %v2575 = vpop.f32.mrf.mxu0
    %2576 = vmatprep.mubr.f32.mxu0 0.0
    %2577 = vmatmul.mubr.f32.gmra.mxu0 %v2497
    %v2578 = vpop.f32.mrf.mxu0
    %v2579 = vadd.f32 0.0, %v2578
    %v2580 = vpop.f32.mrf.mxu0
    %2581 = vmatprep.mubr.f32.mxu0 0.0
    %2582 = vmatmul.mubr.f32.gmra.mxu0 %v2500
    %v2583 = vpop.f32.mrf.mxu0
    %v2584 = vadd.f32 0.0, %v2583
    %v2585 = vpop.f32.mrf.mxu0
    %2586 = vdwg.mxu0
    %2587 = vrot.lane.b32.xlu0 %v2017, 112
    %v2588 = vpop.permute.xlu0 %2587
    %2589 = vrot.lane.b32.xlu0 %v2022, 112
    %v2590 = vpop.permute.xlu0 %2589
    %2591 = vrot.lane.b32.xlu0 %v2027, 112
    %v2592 = vpop.permute.xlu0 %2591
    %2593 = vrot.lane.b32.xlu0 %v2032, 112
    %v2594 = vpop.permute.xlu0 %2593
    %2595 = vrot.lane.b32.xlu0 %v2017, 80
    %v2596 = vpop.permute.xlu0 %2595
    %2597 = vrot.lane.b32.xlu0 %v2022, 80
    %v2598 = vpop.permute.xlu0 %2597
    %2599 = vrot.lane.b32.xlu0 %v2027, 80
    %v2600 = vpop.permute.xlu0 %2599
    %2601 = vrot.lane.b32.xlu0 %v2032, 80
    %v2602 = vpop.permute.xlu0 %2601
    %v2603 = vsel %vm302, %v2588, 0
    %v2605 = vsel %vm302, %v2590, 0
    %v2607 = vsel %vm302, %v2592, 0
    %v2609 = vsel %vm302, %v2594, 0
    %v2611 = vsel %vm302, %v2596, 0
    %v2613 = vsel %vm302, %v2598, 0
    %v2615 = vsel %vm302, %v2600, 0
    %v2617 = vsel %vm302, %v2602, 0
    %2619 = vmatprep.subr.mxu0 0.0
    %2620 = vmatpush1.xpose.msra.mxu0 0.0
    %2621 = vmatprep.subr.mxu0 0.0
    %2622 = vmatpush1.xpose.msra.mxu0 0.0
    %2623 = vmatprep.subr.mxu0 0.0
    %2624 = vmatpush1.xpose.msra.mxu0 0.0
    %2625 = vmatprep.subr.mxu0 0.0
    %2626 = vmatpush1.xpose.msra.mxu0 0.0
    %2627 = vmatprep.subr.mxu0 0.0
    %2628 = vmatpush1.xpose.msra.mxu0 0.0
    %2629 = vmatprep.subr.mxu0 0.0
    %2630 = vmatpush1.xpose.msra.mxu0 0.0
    %2631 = vmatprep.subr.mxu0 0.0
    %2632 = vmatpush1.xpose.msra.mxu0 0.0
    %2633 = vmatprep.subr.mxu0 0.0
    %2634 = vmatpush1.xpose.msra.mxu0 0.0
    %2635 = vmatprep.subr.mxu0 0.0
    %2636 = vmatpush1.xpose.msra.mxu0 0.0
    %2637 = vmatprep.subr.mxu0 0.0
    %2638 = vmatpush1.xpose.msra.mxu0 0.0
    %2639 = vmatprep.subr.mxu0 0.0
    %2640 = vmatpush1.xpose.msra.mxu0 0.0
    %2641 = vmatprep.subr.mxu0 0.0
    %2642 = vmatpush1.xpose.msra.mxu0 0.0
    %2643 = vmatprep.subr.mxu0 0.0
    %2644 = vmatpush1.xpose.msra.mxu0 %v2617
    %2645 = vmatprep.subr.mxu0 0.0
    %2646 = vmatpush1.xpose.msra.mxu0 %v2615
    %2647 = vmatprep.subr.mxu0 0.0
    %2648 = vmatpush1.xpose.msra.mxu0 %v2613
    %2649 = vmatprep.subr.mxu0 0.0
    %2650 = vmatpush1.xpose.msra.mxu0 %v2611
    %2651 = vmatprep.subr.mxu0 0.0
    %2652 = vmatpush2.xpose.msra.mxu0 0.0
    %2653 = vmatprep.subr.mxu0 0.0
    %2654 = vmatpush2.xpose.msra.mxu0 0.0
    %2655 = vmatprep.subr.mxu0 0.0
    %2656 = vmatpush2.xpose.msra.mxu0 0.0
    %2657 = vmatprep.subr.mxu0 0.0
    %2658 = vmatpush2.xpose.msra.mxu0 0.0
    %2659 = vmatprep.subr.mxu0 0.0
    %2660 = vmatpush2.xpose.msra.mxu0 0.0
    %2661 = vmatprep.subr.mxu0 0.0
    %2662 = vmatpush2.xpose.msra.mxu0 0.0
    %2663 = vmatprep.subr.mxu0 0.0
    %2664 = vmatpush2.xpose.msra.mxu0 0.0
    %2665 = vmatprep.subr.mxu0 0.0
    %2666 = vmatpush2.xpose.msra.mxu0 0.0
    %2667 = vmatprep.subr.mxu0 0.0
    %2668 = vmatpush2.xpose.msra.mxu0 0.0
    %2669 = vmatprep.subr.mxu0 0.0
    %2670 = vmatpush2.xpose.msra.mxu0 0.0
    %2671 = vmatprep.subr.mxu0 0.0
    %2672 = vmatpush2.xpose.msra.mxu0 0.0
    %2673 = vmatprep.subr.mxu0 0.0
    %2674 = vmatpush2.xpose.msra.mxu0 0.0
    %2675 = vmatprep.subr.mxu0 0.0
    %2676 = vmatpush2.xpose.msra.mxu0 0.0
    %2677 = vmatprep.subr.mxu0 0.0
    %2678 = vmatpush2.xpose.msra.mxu0 0.0
    %2679 = vmatprep.subr.mxu0 0.0
    %2680 = vmatpush2.xpose.msra.mxu0 0.0
    %2681 = vmatprep.subr.mxu0 0.0
    %2682 = vmatpush2.xpose.msra.mxu0 0.0
    %2683 = vmatprep.mubr.f32.mxu0 0.0
    %2684 = vmatmul.mubr.f32.gmra.mxu0 %v2603
    %v2685 = vpop.f32.mrf.mxu0
    %v2686 = vadd.f32 0.0, %v2685
    %v2687 = vpop.f32.mrf.mxu0
    %2688 = vmatprep.mubr.f32.mxu0 0.0
    %2689 = vmatmul.mubr.f32.gmra.mxu0 %v2605
    %v2690 = vpop.f32.mrf.mxu0
    %v2691 = vadd.f32 0.0, %v2690
    %v2692 = vpop.f32.mrf.mxu0
    %2693 = vmatprep.mubr.f32.mxu0 0.0
    %2694 = vmatmul.mubr.f32.gmra.mxu0 %v2607
    %v2695 = vpop.f32.mrf.mxu0
    %v2696 = vadd.f32 0.0, %v2695
    %v2697 = vpop.f32.mrf.mxu0
    %2698 = vmatprep.mubr.f32.mxu0 0.0
    %2699 = vmatmul.mubr.f32.gmra.mxu0 %v2609
    %v2700 = vpop.f32.mrf.mxu0
    %v2701 = vadd.f32 0.0, %v2700
    %v2702 = vpop.f32.mrf.mxu0
    %2703 = vdwg.mxu0
    %v2704 = vmul.f32 %v2686, 0.35355338
    %v2705 = vmul.f32 %v2691, 0.35355338
    %v2706 = vmul.f32 %v2696, 0.35355338
    %v2707 = vmul.f32 %v2701, 0.35355338
    %v2708 = vadd.f32 %v2704, %v65
    %v2709 = vadd.f32 %v2705, %v66
    %v2710 = vadd.f32 %v2706, %v67
    %v2711 = vadd.f32 %v2707, %v68
    %v2712 = vsel %vm192, %v2708, -inf
    %2713 = vmax.xlane.f32.xlu0 %v2712
    %v2714 = vpop.xlane.xlu0 %2713
    %v2715 = vsel %vm192, %v2709, -inf
    %2716 = vmax.xlane.f32.xlu0 %v2715
    %v2717 = vpop.xlane.xlu0 %2716
    %v2718 = vsel %vm192, %v2710, -inf
    %2719 = vmax.xlane.f32.xlu0 %v2718
    %v2720 = vpop.xlane.xlu0 %2719
    %v2721 = vsel %vm192, %v2711, -inf
    %2722 = vmax.xlane.f32.xlu0 %v2721
    %v2723 = vpop.xlane.xlu0 %2722
    %v2724 = vsub.f32 %v2708, %v2714
    %v2725 = vsub.f32 %v2709, %v2717
    %v2726 = vsub.f32 %v2710, %v2720
    %v2727 = vsub.f32 %v2711, %v2723
    %v2728 = vmul.f32 %v2724, 1.442695
    %v2729 = vpow.pop %v2728
    %v2730 = vmul.f32 %v2725, 1.442695
    %v2731 = vpow.pop %v2730
    %v2732 = vmul.f32 %v2726, 1.442695
    %v2733 = vpow.pop %v2732
    %v2734 = vmul.f32 %v2727, 1.442695
    %v2735 = vpow.pop %v2734
    %v2736 = vsel %vm192, %v2729, 0.0
    %2737 = vadd.xlane.f32.xlu0 %v2736
    %v2738 = vpop.xlane.xlu0 %2737
    %v2739 = vsel %vm192, %v2731, 0.0
    %2740 = vadd.xlane.f32.xlu0 %v2739
    %v2741 = vpop.xlane.xlu0 %2740
    %v2742 = vsel %vm192, %v2733, 0.0
    %2743 = vadd.xlane.f32.xlu0 %v2742
    %v2744 = vpop.xlane.xlu0 %2743
    %v2745 = vsel %vm192, %v2735, 0.0
    %2746 = vadd.xlane.f32.xlu0 %v2745
    %v2747 = vpop.xlane.xlu0 %2746
    %v2748 = vrcp.pop %v2738
    %v2749 = vmul.f32 %v2729, %v2748
    %v2750 = vrcp.pop %v2741
    %v2751 = vmul.f32 %v2731, %v2750
    %v2752 = vrcp.pop %v2744
    %v2753 = vmul.f32 %v2733, %v2752
    %v2754 = vrcp.pop %v2747
    %v2755 = vmul.f32 %v2735, %v2754
    %2756 = vrot.lane.b32.xlu0 %v2017, 48
    %v2757 = vpop.permute.xlu0 %2756
    %2758 = vrot.lane.b32.xlu0 %v2022, 48
    %v2759 = vpop.permute.xlu0 %2758
    %2760 = vrot.lane.b32.xlu0 %v2027, 48
    %v2761 = vpop.permute.xlu0 %2760
    %2762 = vrot.lane.b32.xlu0 %v2032, 48
    %v2763 = vpop.permute.xlu0 %2762
    %v2769 = vsel %vm192, %v2749, 0
    %v2772 = vsel %vm192, %v2751, 0
    %v2775 = vsel %vm192, %v2753, 0
    %v2778 = vsel %vm192, %v2755, 0
    %2780 = vmatprep.subr.mxu0 0.0
    %2781 = vmatpush1.msra.mxu0 0.0
    %2782 = vmatprep.subr.mxu0 0.0
    %2783 = vmatpush1.msra.mxu0 0.0
    %2784 = vmatprep.subr.mxu0 0.0
    %2785 = vmatpush1.msra.mxu0 0.0
    %2786 = vmatprep.subr.mxu0 0.0
    %2787 = vmatpush1.msra.mxu0 0.0
    %2788 = vmatprep.subr.mxu0 0.0
    %2789 = vmatpush1.msra.mxu0 0.0
    %2790 = vmatprep.subr.mxu0 0.0
    %2791 = vmatpush1.msra.mxu0 0.0
    %2792 = vmatprep.subr.mxu0 0.0
    %2793 = vmatpush1.msra.mxu0 0.0
    %2794 = vmatprep.subr.mxu0 0.0
    %2795 = vmatpush1.msra.mxu0 0.0
    %2796 = vmatprep.subr.mxu0 0.0
    %2797 = vmatpush1.msra.mxu0 0.0
    %2798 = vmatprep.subr.mxu0 0.0
    %2799 = vmatpush1.msra.mxu0 0.0
    %2800 = vmatprep.subr.mxu0 0.0
    %2801 = vmatpush1.msra.mxu0 0.0
    %2802 = vmatprep.subr.mxu0 0.0
    %2803 = vmatpush1.msra.mxu0 0.0
    %2804 = vmatprep.subr.mxu0 0.0
    %2805 = vmatpush1.msra.mxu0 %v2763
    %2806 = vmatprep.subr.mxu0 0.0
    %2807 = vmatpush1.msra.mxu0 %v2761
    %2808 = vmatprep.subr.mxu0 0.0
    %2809 = vmatpush1.msra.mxu0 %v2759
    %2810 = vmatprep.subr.mxu0 0.0
    %2811 = vmatpush1.msra.mxu0 %v2757
    %2812 = vmatprep.subr.mxu0 0.0
    %2813 = vmatpush2.msra.mxu0 0.0
    %2814 = vmatprep.subr.mxu0 0.0
    %2815 = vmatpush2.msra.mxu0 0.0
    %2816 = vmatprep.subr.mxu0 0.0
    %2817 = vmatpush2.msra.mxu0 0.0
    %2818 = vmatprep.subr.mxu0 0.0
    %2819 = vmatpush2.msra.mxu0 0.0
    %2820 = vmatprep.subr.mxu0 0.0
    %2821 = vmatpush2.msra.mxu0 0.0
    %2822 = vmatprep.subr.mxu0 0.0
    %2823 = vmatpush2.msra.mxu0 0.0
    %2824 = vmatprep.subr.mxu0 0.0
    %2825 = vmatpush2.msra.mxu0 0.0
    %2826 = vmatprep.subr.mxu0 0.0
    %2827 = vmatpush2.msra.mxu0 0.0
    %2828 = vmatprep.subr.mxu0 0.0
    %2829 = vmatpush2.msra.mxu0 0.0
    %2830 = vmatprep.subr.mxu0 0.0
    %2831 = vmatpush2.msra.mxu0 0.0
    %2832 = vmatprep.subr.mxu0 0.0
    %2833 = vmatpush2.msra.mxu0 0.0
    %2834 = vmatprep.subr.mxu0 0.0
    %2835 = vmatpush2.msra.mxu0 0.0
    %2836 = vmatprep.subr.mxu0 0.0
    %2837 = vmatpush2.msra.mxu0 0.0
    %2838 = vmatprep.subr.mxu0 0.0
    %2839 = vmatpush2.msra.mxu0 0.0
    %2840 = vmatprep.subr.mxu0 0.0
    %2841 = vmatpush2.msra.mxu0 0.0
    %2842 = vmatprep.subr.mxu0 0.0
    %2843 = vmatpush2.msra.mxu0 0.0
    %2844 = vmatprep.mubr.f32.mxu0 0.0
    %2845 = vmatmul.mubr.f32.gmra.mxu0 %v2769
    %v2846 = vpop.f32.mrf.mxu0
    %v2847 = vadd.f32 0.0, %v2846
    %v2848 = vpop.f32.mrf.mxu0
    %2849 = vmatprep.mubr.f32.mxu0 0.0
    %2850 = vmatmul.mubr.f32.gmra.mxu0 %v2772
    %v2851 = vpop.f32.mrf.mxu0
    %v2852 = vadd.f32 0.0, %v2851
    %v2853 = vpop.f32.mrf.mxu0
    %2854 = vmatprep.mubr.f32.mxu0 0.0
    %2855 = vmatmul.mubr.f32.gmra.mxu0 %v2775
    %v2856 = vpop.f32.mrf.mxu0
    %v2857 = vadd.f32 0.0, %v2856
    %v2858 = vpop.f32.mrf.mxu0
    %2859 = vmatprep.mubr.f32.mxu0 0.0
    %2860 = vmatmul.mubr.f32.gmra.mxu0 %v2778
    %v2861 = vpop.f32.mrf.mxu0
    %v2862 = vadd.f32 0.0, %v2861
    %v2863 = vpop.f32.mrf.mxu0
    %2864 = vdwg.mxu0
    %2865 = vrot.lane.b32.xlu0 %v2017, 104
    %v2866 = vpop.permute.xlu0 %2865
    %2867 = vrot.lane.b32.xlu0 %v2022, 104
    %v2868 = vpop.permute.xlu0 %2867
    %2869 = vrot.lane.b32.xlu0 %v2027, 104
    %v2870 = vpop.permute.xlu0 %2869
    %2871 = vrot.lane.b32.xlu0 %v2032, 104
    %v2872 = vpop.permute.xlu0 %2871
    %2873 = vrot.lane.b32.xlu0 %v2017, 72
    %v2874 = vpop.permute.xlu0 %2873
    %2875 = vrot.lane.b32.xlu0 %v2022, 72
    %v2876 = vpop.permute.xlu0 %2875
    %2877 = vrot.lane.b32.xlu0 %v2027, 72
    %v2878 = vpop.permute.xlu0 %2877
    %2879 = vrot.lane.b32.xlu0 %v2032, 72
    %v2880 = vpop.permute.xlu0 %2879
    %v2881 = vsel %vm302, %v2866, 0
    %v2883 = vsel %vm302, %v2868, 0
    %v2885 = vsel %vm302, %v2870, 0
    %v2887 = vsel %vm302, %v2872, 0
    %v2889 = vsel %vm302, %v2874, 0
    %v2891 = vsel %vm302, %v2876, 0
    %v2893 = vsel %vm302, %v2878, 0
    %v2895 = vsel %vm302, %v2880, 0
    %2897 = vmatprep.subr.mxu0 0.0
    %2898 = vmatpush1.xpose.msra.mxu0 0.0
    %2899 = vmatprep.subr.mxu0 0.0
    %2900 = vmatpush1.xpose.msra.mxu0 0.0
    %2901 = vmatprep.subr.mxu0 0.0
    %2902 = vmatpush1.xpose.msra.mxu0 0.0
    %2903 = vmatprep.subr.mxu0 0.0
    %2904 = vmatpush1.xpose.msra.mxu0 0.0
    %2905 = vmatprep.subr.mxu0 0.0
    %2906 = vmatpush1.xpose.msra.mxu0 0.0
    %2907 = vmatprep.subr.mxu0 0.0
    %2908 = vmatpush1.xpose.msra.mxu0 0.0
    %2909 = vmatprep.subr.mxu0 0.0
    %2910 = vmatpush1.xpose.msra.mxu0 0.0
    %2911 = vmatprep.subr.mxu0 0.0
    %2912 = vmatpush1.xpose.msra.mxu0 0.0
    %2913 = vmatprep.subr.mxu0 0.0
    %2914 = vmatpush1.xpose.msra.mxu0 0.0
    %2915 = vmatprep.subr.mxu0 0.0
    %2916 = vmatpush1.xpose.msra.mxu0 0.0
    %2917 = vmatprep.subr.mxu0 0.0
    %2918 = vmatpush1.xpose.msra.mxu0 0.0
    %2919 = vmatprep.subr.mxu0 0.0
    %2920 = vmatpush1.xpose.msra.mxu0 0.0
    %2921 = vmatprep.subr.mxu0 0.0
    %2922 = vmatpush1.xpose.msra.mxu0 %v2895
    %2923 = vmatprep.subr.mxu0 0.0
    %2924 = vmatpush1.xpose.msra.mxu0 %v2893
    %2925 = vmatprep.subr.mxu0 0.0
    %2926 = vmatpush1.xpose.msra.mxu0 %v2891
    %2927 = vmatprep.subr.mxu0 0.0
    %2928 = vmatpush1.xpose.msra.mxu0 %v2889
    %2929 = vmatprep.subr.mxu0 0.0
    %2930 = vmatpush2.xpose.msra.mxu0 0.0
    %2931 = vmatprep.subr.mxu0 0.0
    %2932 = vmatpush2.xpose.msra.mxu0 0.0
    %2933 = vmatprep.subr.mxu0 0.0
    %2934 = vmatpush2.xpose.msra.mxu0 0.0
    %2935 = vmatprep.subr.mxu0 0.0
    %2936 = vmatpush2.xpose.msra.mxu0 0.0
    %2937 = vmatprep.subr.mxu0 0.0
    %2938 = vmatpush2.xpose.msra.mxu0 0.0
    %2939 = vmatprep.subr.mxu0 0.0
    %2940 = vmatpush2.xpose.msra.mxu0 0.0
    %2941 = vmatprep.subr.mxu0 0.0
    %2942 = vmatpush2.xpose.msra.mxu0 0.0
    %2943 = vmatprep.subr.mxu0 0.0
    %2944 = vmatpush2.xpose.msra.mxu0 0.0
    %2945 = vmatprep.subr.mxu0 0.0
    %2946 = vmatpush2.xpose.msra.mxu0 0.0
    %2947 = vmatprep.subr.mxu0 0.0
    %2948 = vmatpush2.xpose.msra.mxu0 0.0
    %2949 = vmatprep.subr.mxu0 0.0
    %2950 = vmatpush2.xpose.msra.mxu0 0.0
    %2951 = vmatprep.subr.mxu0 0.0
    %2952 = vmatpush2.xpose.msra.mxu0 0.0
    %2953 = vmatprep.subr.mxu0 0.0
    %2954 = vmatpush2.xpose.msra.mxu0 0.0
    %2955 = vmatprep.subr.mxu0 0.0
    %2956 = vmatpush2.xpose.msra.mxu0 0.0
    %2957 = vmatprep.subr.mxu0 0.0
    %2958 = vmatpush2.xpose.msra.mxu0 0.0
    %2959 = vmatprep.subr.mxu0 0.0
    %2960 = vmatpush2.xpose.msra.mxu0 0.0
    %2961 = vmatprep.mubr.f32.mxu0 0.0
    %2962 = vmatmul.mubr.f32.gmra.mxu0 %v2881
    %v2963 = vpop.f32.mrf.mxu0
    %v2964 = vadd.f32 0.0, %v2963
    %v2965 = vpop.f32.mrf.mxu0
    %2966 = vmatprep.mubr.f32.mxu0 0.0
    %2967 = vmatmul.mubr.f32.gmra.mxu0 %v2883
    %v2968 = vpop.f32.mrf.mxu0
    %v2969 = vadd.f32 0.0, %v2968
    %v2970 = vpop.f32.mrf.mxu0
    %2971 = vmatprep.mubr.f32.mxu0 0.0
    %2972 = vmatmul.mubr.f32.gmra.mxu0 %v2885
    %v2973 = vpop.f32.mrf.mxu0
    %v2974 = vadd.f32 0.0, %v2973
    %v2975 = vpop.f32.mrf.mxu0
    %2976 = vmatprep.mubr.f32.mxu0 0.0
    %2977 = vmatmul.mubr.f32.gmra.mxu0 %v2887
    %v2978 = vpop.f32.mrf.mxu0
    %v2979 = vadd.f32 0.0, %v2978
    %v2980 = vpop.f32.mrf.mxu0
    %2981 = vdwg.mxu0
    %v2982 = vmul.f32 %v2964, 0.35355338
    %v2983 = vmul.f32 %v2969, 0.35355338
    %v2984 = vmul.f32 %v2974, 0.35355338
    %v2985 = vmul.f32 %v2979, 0.35355338
    %v2986 = vadd.f32 %v2982, %v65
    %v2987 = vadd.f32 %v2983, %v66
    %v2988 = vadd.f32 %v2984, %v67
    %v2989 = vadd.f32 %v2985, %v68
    %v2990 = vsel %vm192, %v2986, -inf
    %2991 = vmax.xlane.f32.xlu0 %v2990
    %v2992 = vpop.xlane.xlu0 %2991
    %v2993 = vsel %vm192, %v2987, -inf
    %2994 = vmax.xlane.f32.xlu0 %v2993
    %v2995 = vpop.xlane.xlu0 %2994
    %v2996 = vsel %vm192, %v2988, -inf
    %2997 = vmax.xlane.f32.xlu0 %v2996
    %v2998 = vpop.xlane.xlu0 %2997
    %v2999 = vsel %vm192, %v2989, -inf
    %3000 = vmax.xlane.f32.xlu0 %v2999
    %v3001 = vpop.xlane.xlu0 %3000
    %v3002 = vsub.f32 %v2986, %v2992
    %v3003 = vsub.f32 %v2987, %v2995
    %v3004 = vsub.f32 %v2988, %v2998
    %v3005 = vsub.f32 %v2989, %v3001
    %v3006 = vmul.f32 %v3002, 1.442695
    %v3007 = vpow.pop %v3006
    %v3008 = vmul.f32 %v3003, 1.442695
    %v3009 = vpow.pop %v3008
    %v3010 = vmul.f32 %v3004, 1.442695
    %v3011 = vpow.pop %v3010
    %v3012 = vmul.f32 %v3005, 1.442695
    %v3013 = vpow.pop %v3012
    %v3014 = vsel %vm192, %v3007, 0.0
    %3015 = vadd.xlane.f32.xlu0 %v3014
    %v3016 = vpop.xlane.xlu0 %3015
    %v3017 = vsel %vm192, %v3009, 0.0
    %3018 = vadd.xlane.f32.xlu0 %v3017
    %v3019 = vpop.xlane.xlu0 %3018
    %v3020 = vsel %vm192, %v3011, 0.0
    %3021 = vadd.xlane.f32.xlu0 %v3020
    %v3022 = vpop.xlane.xlu0 %3021
    %v3023 = vsel %vm192, %v3013, 0.0
    %3024 = vadd.xlane.f32.xlu0 %v3023
    %v3025 = vpop.xlane.xlu0 %3024
    %v3026 = vrcp.pop %v3016
    %v3027 = vmul.f32 %v3007, %v3026
    %v3028 = vrcp.pop %v3019
    %v3029 = vmul.f32 %v3009, %v3028
    %v3030 = vrcp.pop %v3022
    %v3031 = vmul.f32 %v3011, %v3030
    %v3032 = vrcp.pop %v3025
    %v3033 = vmul.f32 %v3013, %v3032
    %3034 = vrot.lane.b32.xlu0 %v2017, 40
    %v3035 = vpop.permute.xlu0 %3034
    %3036 = vrot.lane.b32.xlu0 %v2022, 40
    %v3037 = vpop.permute.xlu0 %3036
    %3038 = vrot.lane.b32.xlu0 %v2027, 40
    %v3039 = vpop.permute.xlu0 %3038
    %3040 = vrot.lane.b32.xlu0 %v2032, 40
    %v3041 = vpop.permute.xlu0 %3040
    %v3047 = vsel %vm192, %v3027, 0
    %v3050 = vsel %vm192, %v3029, 0
    %v3053 = vsel %vm192, %v3031, 0
    %v3056 = vsel %vm192, %v3033, 0
    %3058 = vmatprep.subr.mxu0 0.0
    %3059 = vmatpush1.msra.mxu0 0.0
    %3060 = vmatprep.subr.mxu0 0.0
    %3061 = vmatpush1.msra.mxu0 0.0
    %3062 = vmatprep.subr.mxu0 0.0
    %3063 = vmatpush1.msra.mxu0 0.0
    %3064 = vmatprep.subr.mxu0 0.0
    %3065 = vmatpush1.msra.mxu0 0.0
    %3066 = vmatprep.subr.mxu0 0.0
    %3067 = vmatpush1.msra.mxu0 0.0
    %3068 = vmatprep.subr.mxu0 0.0
    %3069 = vmatpush1.msra.mxu0 0.0
    %3070 = vmatprep.subr.mxu0 0.0
    %3071 = vmatpush1.msra.mxu0 0.0
    %3072 = vmatprep.subr.mxu0 0.0
    %3073 = vmatpush1.msra.mxu0 0.0
    %3074 = vmatprep.subr.mxu0 0.0
    %3075 = vmatpush1.msra.mxu0 0.0
    %3076 = vmatprep.subr.mxu0 0.0
    %3077 = vmatpush1.msra.mxu0 0.0
    %3078 = vmatprep.subr.mxu0 0.0
    %3079 = vmatpush1.msra.mxu0 0.0
    %3080 = vmatprep.subr.mxu0 0.0
    %3081 = vmatpush1.msra.mxu0 0.0
    %3082 = vmatprep.subr.mxu0 0.0
    %3083 = vmatpush1.msra.mxu0 %v3041
    %3084 = vmatprep.subr.mxu0 0.0
    %3085 = vmatpush1.msra.mxu0 %v3039
    %3086 = vmatprep.subr.mxu0 0.0
    %3087 = vmatpush1.msra.mxu0 %v3037
    %3088 = vmatprep.subr.mxu0 0.0
    %3089 = vmatpush1.msra.mxu0 %v3035
    %3090 = vmatprep.subr.mxu0 0.0
    %3091 = vmatpush2.msra.mxu0 0.0
    %3092 = vmatprep.subr.mxu0 0.0
    %3093 = vmatpush2.msra.mxu0 0.0
    %3094 = vmatprep.subr.mxu0 0.0
    %3095 = vmatpush2.msra.mxu0 0.0
    %3096 = vmatprep.subr.mxu0 0.0
    %3097 = vmatpush2.msra.mxu0 0.0
    %3098 = vmatprep.subr.mxu0 0.0
    %3099 = vmatpush2.msra.mxu0 0.0
    %3100 = vmatprep.subr.mxu0 0.0
    %3101 = vmatpush2.msra.mxu0 0.0
    %3102 = vmatprep.subr.mxu0 0.0
    %3103 = vmatpush2.msra.mxu0 0.0
    %3104 = vmatprep.subr.mxu0 0.0
    %3105 = vmatpush2.msra.mxu0 0.0
    %3106 = vmatprep.subr.mxu0 0.0
    %3107 = vmatpush2.msra.mxu0 0.0
    %3108 = vmatprep.subr.mxu0 0.0
    %3109 = vmatpush2.msra.mxu0 0.0
    %3110 = vmatprep.subr.mxu0 0.0
    %3111 = vmatpush2.msra.mxu0 0.0
    %3112 = vmatprep.subr.mxu0 0.0
    %3113 = vmatpush2.msra.mxu0 0.0
    %3114 = vmatprep.subr.mxu0 0.0
    %3115 = vmatpush2.msra.mxu0 0.0
    %3116 = vmatprep.subr.mxu0 0.0
    %3117 = vmatpush2.msra.mxu0 0.0
    %3118 = vmatprep.subr.mxu0 0.0
    %3119 = vmatpush2.msra.mxu0 0.0
    %3120 = vmatprep.subr.mxu0 0.0
    %3121 = vmatpush2.msra.mxu0 0.0
    %3122 = vmatprep.mubr.f32.mxu0 0.0
    %3123 = vmatmul.mubr.f32.gmra.mxu0 %v3047
    %v3124 = vpop.f32.mrf.mxu0
    %v3125 = vadd.f32 0.0, %v3124
    %v3126 = vpop.f32.mrf.mxu0
    %3127 = vmatprep.mubr.f32.mxu0 0.0
    %3128 = vmatmul.mubr.f32.gmra.mxu0 %v3050
    %v3129 = vpop.f32.mrf.mxu0
    %v3130 = vadd.f32 0.0, %v3129
    %v3131 = vpop.f32.mrf.mxu0
    %3132 = vmatprep.mubr.f32.mxu0 0.0
    %3133 = vmatmul.mubr.f32.gmra.mxu0 %v3053
    %v3134 = vpop.f32.mrf.mxu0
    %v3135 = vadd.f32 0.0, %v3134
    %v3136 = vpop.f32.mrf.mxu0
    %3137 = vmatprep.mubr.f32.mxu0 0.0
    %3138 = vmatmul.mubr.f32.gmra.mxu0 %v3056
    %v3139 = vpop.f32.mrf.mxu0
    %v3140 = vadd.f32 0.0, %v3139
    %v3141 = vpop.f32.mrf.mxu0
    %3142 = vdwg.mxu0
    %3147 = vrot.lane.b32.xlu0 %v2569, 8
    %v3148 = vpop.permute.xlu0 %3147
    %3149 = vrot.lane.b32.xlu0 %v2574, 8
    %v3150 = vpop.permute.xlu0 %3149
    %3151 = vrot.lane.b32.xlu0 %v2579, 8
    %v3152 = vpop.permute.xlu0 %3151
    %3153 = vrot.lane.b32.xlu0 %v2584, 8
    %v3154 = vpop.permute.xlu0 %3153
    %3163 = vrot.lane.b32.xlu0 %v2847, 16
    %v3164 = vpop.permute.xlu0 %3163
    %3165 = vrot.lane.b32.xlu0 %v2852, 16
    %v3166 = vpop.permute.xlu0 %3165
    %3167 = vrot.lane.b32.xlu0 %v2857, 16
    %v3168 = vpop.permute.xlu0 %3167
    %3169 = vrot.lane.b32.xlu0 %v2862, 16
    %v3170 = vpop.permute.xlu0 %3169
    %3179 = vrot.lane.b32.xlu0 %v3125, 24
    %v3180 = vpop.permute.xlu0 %3179
    %3181 = vrot.lane.b32.xlu0 %v3130, 24
    %v3182 = vpop.permute.xlu0 %3181
    %3183 = vrot.lane.b32.xlu0 %v3135, 24
    %v3184 = vpop.permute.xlu0 %3183
    %3185 = vrot.lane.b32.xlu0 %v3140, 24
    %v3186 = vpop.permute.xlu0 %3185
    %v3191 = vsel %vm302, %v2291, %v3148
    %v3192 = vsel %vm302, %v2296, %v3150
    %v3193 = vsel %vm302, %v2301, %v3152
    %v3194 = vsel %vm302, %v2306, %v3154
    %v3195 = vsel %vm69, %v3191, %v3164
    %v3196 = vsel %vm69, %v3192, %v3166
    %v3197 = vsel %vm69, %v3193, %v3168
    %v3198 = vsel %vm69, %v3194, %v3170
    %v3199 = vsel %vm1455, %v3195, %v3180
    %v3200 = vsel %vm1455, %v3196, %v3182
    %v3201 = vsel %vm1455, %v3197, %v3184
    %v3202 = vsel %vm1455, %v3198, %v3186
    %v3203 = vlaneseq
    %v3204 = vshrl.u32 %v3203, 7
    %v3205 = vsub.s32 1, %v3204
    %v3206 = vrot.slane %v1933, %v3205
    %v3208 = vsel %vm192, %v3199, 0
    %v3211 = vsel %vm192, %v3200, 0
    %v3214 = vsel %vm192, %v3201, 0
    %v3217 = vsel %vm192, %v3202, 0
    %3219 = vmatprep.subr.mxu0 0.0
    %3220 = vmatpush1.msra.mxu0 0.0
    %3221 = vmatprep.subr.mxu0 0.0
    %3222 = vmatpush1.msra.mxu0 0.0
    %3223 = vmatprep.subr.mxu0 0.0
    %3224 = vmatpush1.msra.mxu0 0.0
    %3225 = vmatprep.subr.mxu0 0.0
    %3226 = vmatpush1.msra.mxu0 0.0
    %3227 = vmatprep.subr.mxu0 0.0
    %3228 = vmatpush1.msra.mxu0 0.0
    %3229 = vmatprep.subr.mxu0 0.0
    %3230 = vmatpush1.msra.mxu0 0.0
    %3231 = vmatprep.subr.mxu0 0.0
    %3232 = vmatpush1.msra.mxu0 0.0
    %3233 = vmatprep.subr.mxu0 0.0
    %3234 = vmatpush1.msra.mxu0 0.0
    %3235 = vmatprep.subr.mxu0 0.0
    %3236 = vmatpush1.msra.mxu0 0.0
    %3237 = vmatprep.subr.mxu0 0.0
    %3238 = vmatpush1.msra.mxu0 0.0
    %3239 = vmatprep.subr.mxu0 0.0
    %3240 = vmatpush1.msra.mxu0 0.0
    %3241 = vmatprep.subr.mxu0 0.0
    %3242 = vmatpush1.msra.mxu0 0.0
    %3243 = vmatprep.subr.mxu0 0.0
    %3244 = vmatpush1.msra.mxu0 %v1920
    %3245 = vmatprep.subr.mxu0 0.0
    %3246 = vmatpush1.msra.mxu0 %v1919
    %3247 = vmatprep.subr.mxu0 0.0
    %3248 = vmatpush1.msra.mxu0 %v1918
    %3249 = vmatprep.subr.mxu0 0.0
    %3250 = vmatpush1.msra.mxu0 %v1917
    %3251 = vmatprep.subr.mxu0 0.0
    %3252 = vmatpush2.msra.mxu0 0.0
    %3253 = vmatprep.subr.mxu0 0.0
    %3254 = vmatpush2.msra.mxu0 0.0
    %3255 = vmatprep.subr.mxu0 0.0
    %3256 = vmatpush2.msra.mxu0 0.0
    %3257 = vmatprep.subr.mxu0 0.0
    %3258 = vmatpush2.msra.mxu0 0.0
    %3259 = vmatprep.subr.mxu0 0.0
    %3260 = vmatpush2.msra.mxu0 0.0
    %3261 = vmatprep.subr.mxu0 0.0
    %3262 = vmatpush2.msra.mxu0 0.0
    %3263 = vmatprep.subr.mxu0 0.0
    %3264 = vmatpush2.msra.mxu0 0.0
    %3265 = vmatprep.subr.mxu0 0.0
    %3266 = vmatpush2.msra.mxu0 0.0
    %3267 = vmatprep.subr.mxu0 0.0
    %3268 = vmatpush2.msra.mxu0 0.0
    %3269 = vmatprep.subr.mxu0 0.0
    %3270 = vmatpush2.msra.mxu0 0.0
    %3271 = vmatprep.subr.mxu0 0.0
    %3272 = vmatpush2.msra.mxu0 0.0
    %3273 = vmatprep.subr.mxu0 0.0
    %3274 = vmatpush2.msra.mxu0 0.0
    %3275 = vmatprep.subr.mxu0 0.0
    %3276 = vmatpush2.msra.mxu0 0.0
    %3277 = vmatprep.subr.mxu0 0.0
    %3278 = vmatpush2.msra.mxu0 0.0
    %3279 = vmatprep.subr.mxu0 0.0
    %3280 = vmatpush2.msra.mxu0 0.0
    %3281 = vmatprep.subr.mxu0 0.0
    %3282 = vmatpush2.msra.mxu0 0.0
    %3283 = vmatprep.mubr.f32.mxu0 0.0
    %3284 = vmatmul.mubr.f32.gmra.mxu0 %v3208
    %v3285 = vpop.f32.mrf.mxu0
    %v3286 = vadd.f32 %v3206, %v3285
    %v3287 = vpop.f32.mrf.mxu0
    %3288 = vmatprep.mubr.f32.mxu0 0.0
    %3289 = vmatmul.mubr.f32.gmra.mxu0 %v3211
    %v3290 = vpop.f32.mrf.mxu0
    %v3291 = vadd.f32 %v3206, %v3290
    %v3292 = vpop.f32.mrf.mxu0
    %3293 = vmatprep.mubr.f32.mxu0 0.0
    %3294 = vmatmul.mubr.f32.gmra.mxu0 %v3214
    %v3295 = vpop.f32.mrf.mxu0
    %v3296 = vadd.f32 %v3206, %v3295
    %v3297 = vpop.f32.mrf.mxu0
    %3298 = vmatprep.mubr.f32.mxu0 0.0
    %3299 = vmatmul.mubr.f32.gmra.mxu0 %v3217
    %v3300 = vpop.f32.mrf.mxu0
    %v3301 = vadd.f32 %v3206, %v3300
    %v3302 = vpop.f32.mrf.mxu0
    %3303 = vdwg.mxu0
    %v3304 = vadd.f32 %v1909, %v3286
    %v3305 = vadd.f32 %v1910, %v3291
    %v3306 = vadd.f32 %v1911, %v3296
    %v3307 = vadd.f32 %v1912, %v3301
    %v3308 = vsel %vm192, %v3304, 0.0
    %3309 = vadd.xlane.f32.xlu0 %v3308
    %v3310 = vpop.xlane.xlu0 %3309
    %v3311 = vsel %vm192, %v3305, 0.0
    %3312 = vadd.xlane.f32.xlu0 %v3311
    %v3313 = vpop.xlane.xlu0 %3312
    %v3314 = vsel %vm192, %v3306, 0.0
    %3315 = vadd.xlane.f32.xlu0 %v3314
    %v3316 = vpop.xlane.xlu0 %3315
    %v3317 = vsel %vm192, %v3307, 0.0
    %3318 = vadd.xlane.f32.xlu0 %v3317
    %v3319 = vpop.xlane.xlu0 %3318
    %v3320 = vmul.f32 %v3310, %v1577
    %v3321 = vmul.f32 %v3313, %v1577
    %v3322 = vmul.f32 %v3316, %v1577
    %v3323 = vmul.f32 %v3319, %v1577
    %v3324 = vsub.f32 %v3304, %v3320
    %v3325 = vsub.f32 %v3305, %v3321
    %v3326 = vsub.f32 %v3306, %v3322
    %v3327 = vsub.f32 %v3307, %v3323
    %v3328 = vmul.f32 %v3324, %v3324
    %v3329 = vmul.f32 %v3325, %v3325
    %v3330 = vmul.f32 %v3326, %v3326
    %v3331 = vmul.f32 %v3327, %v3327
    %v3332 = vsel %vm192, %v3328, 0.0
    %3333 = vadd.xlane.f32.xlu0 %v3332
    %v3334 = vpop.xlane.xlu0 %3333
    %v3335 = vsel %vm192, %v3329, 0.0
    %3336 = vadd.xlane.f32.xlu0 %v3335
    %v3337 = vpop.xlane.xlu0 %3336
    %v3338 = vsel %vm192, %v3330, 0.0
    %3339 = vadd.xlane.f32.xlu0 %v3338
    %v3340 = vpop.xlane.xlu0 %3339
    %v3341 = vsel %vm192, %v3331, 0.0
    %3342 = vadd.xlane.f32.xlu0 %v3341
    %v3343 = vpop.xlane.xlu0 %3342
    %v3344 = vmul.f32 %v3334, %v1577
    %v3345 = vmul.f32 %v3337, %v1577
    %v3346 = vmul.f32 %v3340, %v1577
    %v3347 = vmul.f32 %v3343, %v1577
    %v3348 = vadd.f32 %v3344, 1e-05
    %v3349 = vadd.f32 %v3345, 1e-05
    %v3350 = vadd.f32 %v3346, 1e-05
    %v3351 = vadd.f32 %v3347, 1e-05
    %v3352 = vrsqrt.pop %v3348
    %v3353 = vrsqrt.pop %v3349
    %v3354 = vrsqrt.pop %v3350
    %v3355 = vrsqrt.pop %v3351
    %v3356 = vmul.f32 %v3324, %v3352
    %v3357 = vmul.f32 %v3325, %v3353
    %v3358 = vmul.f32 %v3326, %v3354
    %v3359 = vmul.f32 %v3327, %v3355
    %v3360 = vlaneseq
    %v3361 = vshrl.u32 %v3360, 7
    %v3362 = vsub.s32 4, %v3361
    %v3363 = vrot.slane %v1933, %v3362
    %v3364 = vmul.f32 %v3356, %v3363
    %v3365 = vmul.f32 %v3357, %v3363
    %v3366 = vmul.f32 %v3358, %v3363
    %v3367 = vmul.f32 %v3359, %v3363
    %v3368 = vlaneseq
    %v3369 = vshrl.u32 %v3368, 7
    %v3370 = vsub.s32 5, %v3369
    %v3371 = vrot.slane %v1933, %v3370
    %v3372 = vadd.f32 %v3364, %v3371
    %v3373 = vadd.f32 %v3365, %v3371
    %v3374 = vadd.f32 %v3366, %v3371
    %v3375 = vadd.f32 %v3367, %v3371
    %v3376 = vlaneseq
    %v3377 = vshrl.u32 %v3376, 7
    %v3378 = vsub.s32 2, %v3377
    %v3379 = vrot.slane %v1933, %v3378
    %v3381 = vsel %vm192, %v3372, 0
    %v3384 = vsel %vm192, %v3373, 0
    %v3387 = vsel %vm192, %v3374, 0
    %v3390 = vsel %vm192, %v3375, 0
    %3392 = vmatprep.subr.mxu0 0.0
    %3393 = vmatpush1.msra.mxu0 0.0
    %3394 = vmatprep.subr.mxu0 0.0
    %3395 = vmatpush1.msra.mxu0 0.0
    %3396 = vmatprep.subr.mxu0 0.0
    %3397 = vmatpush1.msra.mxu0 0.0
    %3398 = vmatprep.subr.mxu0 0.0
    %3399 = vmatpush1.msra.mxu0 0.0
    %3400 = vmatprep.subr.mxu0 0.0
    %3401 = vmatpush1.msra.mxu0 0.0
    %3402 = vmatprep.subr.mxu0 0.0
    %3403 = vmatpush1.msra.mxu0 0.0
    %3404 = vmatprep.subr.mxu0 0.0
    %3405 = vmatpush1.msra.mxu0 0.0
    %3406 = vmatprep.subr.mxu0 0.0
    %3407 = vmatpush1.msra.mxu0 0.0
    %3408 = vmatprep.subr.mxu0 0.0
    %3409 = vmatpush1.msra.mxu0 0.0
    %3410 = vmatprep.subr.mxu0 0.0
    %3411 = vmatpush1.msra.mxu0 0.0
    %3412 = vmatprep.subr.mxu0 0.0
    %3413 = vmatpush1.msra.mxu0 0.0
    %3414 = vmatprep.subr.mxu0 0.0
    %3415 = vmatpush1.msra.mxu0 0.0
    %3416 = vmatprep.subr.mxu0 0.0
    %3417 = vmatpush1.msra.mxu0 %v1924
    %3418 = vmatprep.subr.mxu0 0.0
    %3419 = vmatpush1.msra.mxu0 %v1923
    %3420 = vmatprep.subr.mxu0 0.0
    %3421 = vmatpush1.msra.mxu0 %v1922
    %3422 = vmatprep.subr.mxu0 0.0
    %3423 = vmatpush1.msra.mxu0 %v1921
    %3424 = vmatprep.subr.mxu0 0.0
    %3425 = vmatpush2.msra.mxu0 0.0
    %3426 = vmatprep.subr.mxu0 0.0
    %3427 = vmatpush2.msra.mxu0 0.0
    %3428 = vmatprep.subr.mxu0 0.0
    %3429 = vmatpush2.msra.mxu0 0.0
    %3430 = vmatprep.subr.mxu0 0.0
    %3431 = vmatpush2.msra.mxu0 0.0
    %3432 = vmatprep.subr.mxu0 0.0
    %3433 = vmatpush2.msra.mxu0 0.0
    %3434 = vmatprep.subr.mxu0 0.0
    %3435 = vmatpush2.msra.mxu0 0.0
    %3436 = vmatprep.subr.mxu0 0.0
    %3437 = vmatpush2.msra.mxu0 0.0
    %3438 = vmatprep.subr.mxu0 0.0
    %3439 = vmatpush2.msra.mxu0 0.0
    %3440 = vmatprep.subr.mxu0 0.0
    %3441 = vmatpush2.msra.mxu0 0.0
    %3442 = vmatprep.subr.mxu0 0.0
    %3443 = vmatpush2.msra.mxu0 0.0
    %3444 = vmatprep.subr.mxu0 0.0
    %3445 = vmatpush2.msra.mxu0 0.0
    %3446 = vmatprep.subr.mxu0 0.0
    %3447 = vmatpush2.msra.mxu0 0.0
    %3448 = vmatprep.subr.mxu0 0.0
    %3449 = vmatpush2.msra.mxu0 0.0
    %3450 = vmatprep.subr.mxu0 0.0
    %3451 = vmatpush2.msra.mxu0 0.0
    %3452 = vmatprep.subr.mxu0 0.0
    %3453 = vmatpush2.msra.mxu0 0.0
    %3454 = vmatprep.subr.mxu0 0.0
    %3455 = vmatpush2.msra.mxu0 0.0
    %3456 = vmatprep.mubr.f32.mxu0 0.0
    %3457 = vmatmul.mubr.f32.gmra.mxu0 %v3381
    %v3458 = vpop.f32.mrf.mxu0
    %v3459 = vadd.f32 %v3379, %v3458
    %v3460 = vpop.f32.mrf.mxu0
    %3461 = vmatprep.mubr.f32.mxu0 0.0
    %3462 = vmatmul.mubr.f32.gmra.mxu0 %v3384
    %v3463 = vpop.f32.mrf.mxu0
    %v3464 = vadd.f32 %v3379, %v3463
    %v3465 = vpop.f32.mrf.mxu0
    %3466 = vmatprep.mubr.f32.mxu0 0.0
    %3467 = vmatmul.mubr.f32.gmra.mxu0 %v3387
    %v3468 = vpop.f32.mrf.mxu0
    %v3469 = vadd.f32 %v3379, %v3468
    %v3470 = vpop.f32.mrf.mxu0
    %3471 = vmatprep.mubr.f32.mxu0 0.0
    %3472 = vmatmul.mubr.f32.gmra.mxu0 %v3390
    %v3473 = vpop.f32.mrf.mxu0
    %v3474 = vadd.f32 %v3379, %v3473
    %v3475 = vpop.f32.mrf.mxu0
    %3476 = vdwg.mxu0
    %v3477 = vmax.f32 %v3459, 0.0
    %v3478 = vmax.f32 %v3464, 0.0
    %v3479 = vmax.f32 %v3469, 0.0
    %v3480 = vmax.f32 %v3474, 0.0
    %v3481 = vlaneseq
    %v3482 = vshrl.u32 %v3481, 7
    %v3483 = vsub.s32 3, %v3482
    %v3484 = vrot.slane %v1933, %v3483
    %v3486 = vsel %vm1743, %v3477, 0
    %v3489 = vsel %vm1743, %v3478, 0
    %v3492 = vsel %vm1743, %v3479, 0
    %v3495 = vsel %vm1743, %v3480, 0
    %3497 = vmatprep.subr.mxu0 0.0
    %3498 = vmatpush1.msra.mxu0 0.0
    %3499 = vmatprep.subr.mxu0 0.0
    %3500 = vmatpush1.msra.mxu0 0.0
    %3501 = vmatprep.subr.mxu0 0.0
    %3502 = vmatpush1.msra.mxu0 0.0
    %3503 = vmatprep.subr.mxu0 0.0
    %3504 = vmatpush1.msra.mxu0 0.0
    %3505 = vmatprep.subr.mxu0 0.0
    %3506 = vmatpush1.msra.mxu0 0.0
    %3507 = vmatprep.subr.mxu0 0.0
    %3508 = vmatpush1.msra.mxu0 0.0
    %3509 = vmatprep.subr.mxu0 0.0
    %3510 = vmatpush1.msra.mxu0 0.0
    %3511 = vmatprep.subr.mxu0 0.0
    %3512 = vmatpush1.msra.mxu0 0.0
    %3513 = vmatprep.subr.mxu0 0.0
    %3514 = vmatpush1.msra.mxu0 %v1932
    %3515 = vmatprep.subr.mxu0 0.0
    %3516 = vmatpush1.msra.mxu0 %v1931
    %3517 = vmatprep.subr.mxu0 0.0
    %3518 = vmatpush1.msra.mxu0 %v1930
    %3519 = vmatprep.subr.mxu0 0.0
    %3520 = vmatpush1.msra.mxu0 %v1929
    %3521 = vmatprep.subr.mxu0 0.0
    %3522 = vmatpush1.msra.mxu0 %v1928
    %3523 = vmatprep.subr.mxu0 0.0
    %3524 = vmatpush1.msra.mxu0 %v1927
    %3525 = vmatprep.subr.mxu0 0.0
    %3526 = vmatpush1.msra.mxu0 %v1926
    %3527 = vmatprep.subr.mxu0 0.0
    %3528 = vmatpush1.msra.mxu0 %v1925
    %3529 = vmatprep.subr.mxu0 0.0
    %3530 = vmatpush2.msra.mxu0 0.0
    %3531 = vmatprep.subr.mxu0 0.0
    %3532 = vmatpush2.msra.mxu0 0.0
    %3533 = vmatprep.subr.mxu0 0.0
    %3534 = vmatpush2.msra.mxu0 0.0
    %3535 = vmatprep.subr.mxu0 0.0
    %3536 = vmatpush2.msra.mxu0 0.0
    %3537 = vmatprep.subr.mxu0 0.0
    %3538 = vmatpush2.msra.mxu0 0.0
    %3539 = vmatprep.subr.mxu0 0.0
    %3540 = vmatpush2.msra.mxu0 0.0
    %3541 = vmatprep.subr.mxu0 0.0
    %3542 = vmatpush2.msra.mxu0 0.0
    %3543 = vmatprep.subr.mxu0 0.0
    %3544 = vmatpush2.msra.mxu0 0.0
    %3545 = vmatprep.subr.mxu0 0.0
    %3546 = vmatpush2.msra.mxu0 0.0
    %3547 = vmatprep.subr.mxu0 0.0
    %3548 = vmatpush2.msra.mxu0 0.0
    %3549 = vmatprep.subr.mxu0 0.0
    %3550 = vmatpush2.msra.mxu0 0.0
    %3551 = vmatprep.subr.mxu0 0.0
    %3552 = vmatpush2.msra.mxu0 0.0
    %3553 = vmatprep.subr.mxu0 0.0
    %3554 = vmatpush2.msra.mxu0 0.0
    %3555 = vmatprep.subr.mxu0 0.0
    %3556 = vmatpush2.msra.mxu0 0.0
    %3557 = vmatprep.subr.mxu0 0.0
    %3558 = vmatpush2.msra.mxu0 0.0
    %3559 = vmatprep.subr.mxu0 0.0
    %3560 = vmatpush2.msra.mxu0 0.0
    %3561 = vmatprep.mubr.f32.mxu0 0.0
    %3562 = vmatmul.mubr.f32.gmra.mxu0 %v3486
    %v3563 = vpop.f32.mrf.mxu0
    %v3564 = vadd.f32 %v3484, %v3563
    %v3565 = vpop.f32.mrf.mxu0
    %3566 = vmatprep.mubr.f32.mxu0 0.0
    %3567 = vmatmul.mubr.f32.gmra.mxu0 %v3489
    %v3568 = vpop.f32.mrf.mxu0
    %v3569 = vadd.f32 %v3484, %v3568
    %v3570 = vpop.f32.mrf.mxu0
    %3571 = vmatprep.mubr.f32.mxu0 0.0
    %3572 = vmatmul.mubr.f32.gmra.mxu0 %v3492
    %v3573 = vpop.f32.mrf.mxu0
    %v3574 = vadd.f32 %v3484, %v3573
    %v3575 = vpop.f32.mrf.mxu0
    %3576 = vmatprep.mubr.f32.mxu0 0.0
    %3577 = vmatmul.mubr.f32.gmra.mxu0 %v3495
    %v3578 = vpop.f32.mrf.mxu0
    %v3579 = vadd.f32 %v3484, %v3578
    %v3580 = vpop.f32.mrf.mxu0
    %3581 = vdwg.mxu0
    %v3582 = vadd.f32 %v3372, %v3564
    %v3583 = vadd.f32 %v3373, %v3569
    %v3584 = vadd.f32 %v3374, %v3574
    %v3585 = vadd.f32 %v3375, %v3579
    %v3586 = vsel %vm192, %v3582, 0.0
    %3587 = vadd.xlane.f32.xlu0 %v3586
    %v3588 = vpop.xlane.xlu0 %3587
    %v3589 = vsel %vm192, %v3583, 0.0
    %3590 = vadd.xlane.f32.xlu0 %v3589
    %v3591 = vpop.xlane.xlu0 %3590
    %v3592 = vsel %vm192, %v3584, 0.0
    %3593 = vadd.xlane.f32.xlu0 %v3592
    %v3594 = vpop.xlane.xlu0 %3593
    %v3595 = vsel %vm192, %v3585, 0.0
    %3596 = vadd.xlane.f32.xlu0 %v3595
    %v3597 = vpop.xlane.xlu0 %3596
    %v3598 = vmul.f32 %v3588, %v1577
    %v3599 = vmul.f32 %v3591, %v1577
    %v3600 = vmul.f32 %v3594, %v1577
    %v3601 = vmul.f32 %v3597, %v1577
    %v3602 = vsub.f32 %v3582, %v3598
    %v3603 = vsub.f32 %v3583, %v3599
    %v3604 = vsub.f32 %v3584, %v3600
    %v3605 = vsub.f32 %v3585, %v3601
    %v3606 = vmul.f32 %v3602, %v3602
    %v3607 = vmul.f32 %v3603, %v3603
    %v3608 = vmul.f32 %v3604, %v3604
    %v3609 = vmul.f32 %v3605, %v3605
    %v3610 = vsel %vm192, %v3606, 0.0
    %3611 = vadd.xlane.f32.xlu0 %v3610
    %v3612 = vpop.xlane.xlu0 %3611
    %v3613 = vsel %vm192, %v3607, 0.0
    %3614 = vadd.xlane.f32.xlu0 %v3613
    %v3615 = vpop.xlane.xlu0 %3614
    %v3616 = vsel %vm192, %v3608, 0.0
    %3617 = vadd.xlane.f32.xlu0 %v3616
    %v3618 = vpop.xlane.xlu0 %3617
    %v3619 = vsel %vm192, %v3609, 0.0
    %3620 = vadd.xlane.f32.xlu0 %v3619
    %v3621 = vpop.xlane.xlu0 %3620
    %v3622 = vmul.f32 %v3612, %v1577
    %v3623 = vmul.f32 %v3615, %v1577
    %v3624 = vmul.f32 %v3618, %v1577
    %v3625 = vmul.f32 %v3621, %v1577
    %v3626 = vadd.f32 %v3622, 1e-05
    %v3627 = vadd.f32 %v3623, 1e-05
    %v3628 = vadd.f32 %v3624, 1e-05
    %v3629 = vadd.f32 %v3625, 1e-05
    %v3630 = vrsqrt.pop %v3626
    %v3631 = vrsqrt.pop %v3627
    %v3632 = vrsqrt.pop %v3628
    %v3633 = vrsqrt.pop %v3629
    %v3634 = vmul.f32 %v3602, %v3630
    %v3635 = vmul.f32 %v3603, %v3631
    %v3636 = vmul.f32 %v3604, %v3632
    %v3637 = vmul.f32 %v3605, %v3633
    %v3638 = vlaneseq
    %v3639 = vshrl.u32 %v3638, 7
    %v3640 = vsub.s32 6, %v3639
    %v3641 = vrot.slane %v1933, %v3640
    %v3642 = vmul.f32 %v3634, %v3641
    %v3643 = vmul.f32 %v3635, %v3641
    %v3644 = vmul.f32 %v3636, %v3641
    %v3645 = vmul.f32 %v3637, %v3641
    %v3646 = vlaneseq
    %v3647 = vshrl.u32 %v3646, 7
    %v3648 = vsub.s32 7, %v3647
    %v3649 = vrot.slane %v1933, %v3648
    %v3650 = vadd.f32 %v3642, %v3649
    %v3651 = vadd.f32 %v3643, %v3649
    %v3652 = vadd.f32 %v3644, %v3649
    %v3653 = vadd.f32 %v3645, %v3649
    %v3654 = vsel %vm192, %v3650, 0.0
    %v3655 = vrot.slane %v3654, 4
    %v3656 = vadd.f32 %v3654, %v3655
    %v3657 = vrot.slane %v3656, 2
    %v3658 = vadd.f32 %v3656, %v3657
    %v3659 = vrot.slane %v3658, 1
    %v3660 = vadd.f32 %v3658, %v3659
    %v3661 = vsel %vm192, %v3651, 0.0
    %v3662 = vrot.slane %v3661, 4
    %v3663 = vadd.f32 %v3661, %v3662
    %v3664 = vrot.slane %v3663, 2
    %v3665 = vadd.f32 %v3663, %v3664
    %v3666 = vrot.slane %v3665, 1
    %v3667 = vadd.f32 %v3665, %v3666
    %v3668 = vsel %vm192, %v3652, 0.0
    %v3669 = vrot.slane %v3668, 4
    %v3670 = vadd.f32 %v3668, %v3669
    %v3671 = vrot.slane %v3670, 2
    %v3672 = vadd.f32 %v3670, %v3671
    %v3673 = vrot.slane %v3672, 1
    %v3674 = vadd.f32 %v3672, %v3673
    %v3675 = vsel %vm192, %v3653, 0.0
    %v3676 = vrot.slane %v3675, 4
    %v3677 = vadd.f32 %v3675, %v3676
    %v3678 = vrot.slane %v3677, 2
    %v3679 = vadd.f32 %v3677, %v3678
    %v3680 = vrot.slane %v3679, 1
    %v3681 = vadd.f32 %v3679, %v3680
    %v3682 = vrcp.pop 8.0
    %v3683 = vmul.f32 %v3660, %v3682
    %v3684 = vmul.f32 %v3667, %v3682
    %v3685 = vmul.f32 %v3674, %v3682
    %v3686 = vmul.f32 %v3681, %v3682
    %v3687 = vsub.f32 %v3683, %v3685
    %v3688 = vsub.f32 %v3684, %v3686
    %v3689 = vand.u32 2147483647, %v3687
    %v3690 = vand.u32 2147483647, %v3688
    %v3691 = vld [vmem:[#allocation6 + $0x1a0] sm:$0xff]
    %v3692 = vld [vmem:[#allocation6 + $0x1a8] sm:$0xff]
    %v3693 = vld [vmem:[#allocation6 + $0x1b0] sm:$0xff]
    %v3694 = vld [vmem:[#allocation6 + $0x1b8] sm:$0xff]
    %v3695 = vld [vmem:[#allocation6 + $0x1c0] sm:$0xff]
    %v3696 = vlaneseq
    %v3697 = vshrl.u32 %v3696, 7
    %v3698 = vsub.s32 0, %v3697
    %v3699 = vrot.slane %v3695, %v3698
    %vm3702 = vcmask 1041409
    %v3703 = vsel %vm3702, %v3690, %v3689
    %v3704 = vsel %vm192, %v3703, 0
    %3706 = vmatprep.subr.mxu0 0.0
    %3707 = vmatpush1.msra.mxu0 0.0
    %3708 = vmatprep.subr.mxu0 0.0
    %3709 = vmatpush1.msra.mxu0 0.0
    %3710 = vmatprep.subr.mxu0 0.0
    %3711 = vmatpush1.msra.mxu0 0.0
    %3712 = vmatprep.subr.mxu0 0.0
    %3713 = vmatpush1.msra.mxu0 0.0
    %3714 = vmatprep.subr.mxu0 0.0
    %3715 = vmatpush1.msra.mxu0 0.0
    %3716 = vmatprep.subr.mxu0 0.0
    %3717 = vmatpush1.msra.mxu0 0.0
    %3718 = vmatprep.subr.mxu0 0.0
    %3719 = vmatpush1.msra.mxu0 0.0
    %3720 = vmatprep.subr.mxu0 0.0
    %3721 = vmatpush1.msra.mxu0 0.0
    %3722 = vmatprep.subr.mxu0 0.0
    %3723 = vmatpush1.msra.mxu0 0.0
    %3724 = vmatprep.subr.mxu0 0.0
    %3725 = vmatpush1.msra.mxu0 0.0
    %3726 = vmatprep.subr.mxu0 0.0
    %3727 = vmatpush1.msra.mxu0 0.0
    %3728 = vmatprep.subr.mxu0 0.0
    %3729 = vmatpush1.msra.mxu0 0.0
    %3730 = vmatprep.subr.mxu0 0.0
    %3731 = vmatpush1.msra.mxu0 %v3694
    %3732 = vmatprep.subr.mxu0 0.0
    %3733 = vmatpush1.msra.mxu0 %v3693
    %3734 = vmatprep.subr.mxu0 0.0
    %3735 = vmatpush1.msra.mxu0 %v3692
    %3736 = vmatprep.subr.mxu0 0.0
    %3737 = vmatpush1.msra.mxu0 %v3691
    %3738 = vmatprep.subr.mxu0 0.0
    %3739 = vmatpush2.msra.mxu0 0.0
    %3740 = vmatprep.subr.mxu0 0.0
    %3741 = vmatpush2.msra.mxu0 0.0
    %3742 = vmatprep.subr.mxu0 0.0
    %3743 = vmatpush2.msra.mxu0 0.0
    %3744 = vmatprep.subr.mxu0 0.0
    %3745 = vmatpush2.msra.mxu0 0.0
    %3746 = vmatprep.subr.mxu0 0.0
    %3747 = vmatpush2.msra.mxu0 0.0
    %3748 = vmatprep.subr.mxu0 0.0
    %3749 = vmatpush2.msra.mxu0 0.0
    %3750 = vmatprep.subr.mxu0 0.0
    %3751 = vmatpush2.msra.mxu0 0.0
    %3752 = vmatprep.subr.mxu0 0.0
    %3753 = vmatpush2.msra.mxu0 0.0
    %3754 = vmatprep.subr.mxu0 0.0
    %3755 = vmatpush2.msra.mxu0 0.0
    %3756 = vmatprep.subr.mxu0 0.0
    %3757 = vmatpush2.msra.mxu0 0.0
    %3758 = vmatprep.subr.mxu0 0.0
    %3759 = vmatpush2.msra.mxu0 0.0
    %3760 = vmatprep.subr.mxu0 0.0
    %3761 = vmatpush2.msra.mxu0 0.0
    %3762 = vmatprep.subr.mxu0 0.0
    %3763 = vmatpush2.msra.mxu0 0.0
    %3764 = vmatprep.subr.mxu0 0.0
    %3765 = vmatpush2.msra.mxu0 0.0
    %3766 = vmatprep.subr.mxu0 0.0
    %3767 = vmatpush2.msra.mxu0 0.0
    %3768 = vmatprep.subr.mxu0 0.0
    %3769 = vmatpush2.msra.mxu0 0.0
    %3770 = vmatprep.mubr.f32.mxu0 0.0
    %3771 = vmatmul.mubr.f32.gmra.mxu0 %v3704
    %v3772 = vpop.f32.mrf.mxu0
    %v3773 = vadd.f32 %v3699, %v3772
    %v3774 = vpop.f32.mrf.mxu0
    %3775 = vdwg.mxu0
    %v3776 = vmax.f32 %v3773, 0.0
    %v3777 = vlaneseq
    %v3778 = vshrl.u32 %v3777, 7
    %v3779 = vsub.s32 1, %v3778
    %v3780 = vrot.slane %v3695, %v3779
    %v3781 = vmul.f32 %v3776, %v3780
    %vm3782 = vcmask 254976
    %v3783 = vsel %vm3782, %v3781, 0.0
    %3784 = vadd.xlane.f32.xlu0 %v3783
    %v3785 = vpop.xlane.xlu0 %3784
    %v3786 = vlaneseq
    %v3787 = vshrl.u32 %v3786, 7
    %v3788 = vsub.s32 2, %v3787
    %v3789 = vrot.slane %v3695, %v3788
    %v3790 = vadd.f32 %v3785, %v3789
    %v3791 = vxor.u32 %v3790, 2147483648
    %v3792 = vmul.f32 %v3791, 1.442695
    %v3793 = vpow.pop %v3792
    %v3794 = vadd.f32 %v3793, 1.0
    %v3795 = vrcp.pop %v3794
    %v3796 = vmul.f32 1.0, %v3795
    %vm3797 = vcmask 1024
    %3798 = vst.msk [vmem:[%s3] sm:$0x3] %vm3797, %v3796
    // Predicated region
    $region26: #{forward.1} parent=1 // pred_check
      _
    $region27: #{forward.1} parent=1 // pred_check_branch
      %3800 = sbr.rel (0) target = $region29
    $region28: #{forward.1} parent=1 // pred_region
      _
    $region29: #{forward.1} parent=1 // pred_fallthru
      _
    // Predicated region
    $region30: #{forward.1} parent=1 // pred_check
      _
    $region31: #{forward.1} parent=1 // pred_check_branch
      %3802 = sbr.rel (0) target = $region33
    $region32: #{forward.1} parent=1 // pred_region
      _
    $region33: #{forward.1} parent=1 // pred_fallthru
      _
    %3803 = vsyncpa [#allocation3], 1
    %3804 = vsyncpa [#allocation5], 1

</llo_original>
